<compile_context>
chip_gen: v7x
topology: tpu7x:2x2x1
jax: 0.10.0
libtpu: 0.0.40
codegen_flags: <defaults>
</compile_context>

<pallas_src>
import functools
import math

import jax
import jax.numpy as jnp
import numpy as np
from jax.experimental import pallas as pl
from jax.experimental.pallas import tpu as pltpu

MATMUL_DTYPE = jnp.bfloat16      # MXU operand dtype; accumulation is always f32


# ---------------------------------------------------------------------------
# small helpers
# ---------------------------------------------------------------------------
def _layer_norm(x, gamma, beta, eps=1e-5):
    mean = jnp.mean(x, axis=-1, keepdims=True)
    var = jnp.mean((x - mean) ** 2, axis=-1, keepdims=True)
    return (x - mean) * jax.lax.rsqrt(var + eps) * gamma + beta


def position_encoding(seq_len, dim_model, dtype=jnp.float32):
    # Faithful reproduction of the module's position_encoding (including the
    # literal `dim // dim_model` floor division, which makes phase == pos).
    pos = jnp.arange(seq_len, dtype=dtype).reshape(1, -1, 1)
    dim = jnp.arange(dim_model, dtype=dtype).reshape(1, 1, -1)
    phase = pos / (10000.0 ** jnp.floor(dim / dim_model))
    return jnp.where(dim.astype(jnp.int32) % 2 == 0, jnp.sin(phase), jnp.cos(phase))


@functools.lru_cache(maxsize=None)
def _vmem_limit_bytes():
    """min(64 MiB, 3/4 of physical VMEM): 64 MiB on v5e/v6e, 48 MiB on v7x."""
    try:
        cap = pltpu.get_tpu_info().vmem_capacity_bytes
    except Exception:
        cap = 128 * 1024 * 1024
    return int(min(64 * 1024 * 1024, (cap * 3) // 4))


# ---------------------------------------------------------------------------
# Pallas kernel: one full encoder layer for a block of (flattened) rows
# ---------------------------------------------------------------------------
def encoder_layer_kernel(x_ref, *rest, num_heads, head_dim, add_pe, seq_len,
                         ff_tile):
    if add_pe:
        pe_ref, rest = rest[0], rest[1:]
    (wq_ref, bq_ref, wk_ref, bk_ref, wv_ref, bv_ref, wo_ref, bo_ref,
     ln1_g_ref, ln1_b_ref, w1_ref, b1_ref, w2_ref, b2_ref,
     ln2_g_ref, ln2_b_ref, out_ref) = rest

    M, D = out_ref.shape                # M = batch_block * seq_len (2-D block)
    S = seq_len
    n_batch = M // S
    mm = MATMUL_DTYPE

    x = x_ref[...].astype(jnp.float32)                    # (M, D), f32
    if add_pe:                                            # fused PE add (layer 0)
        x = x + pe_ref[...]
    xb = x.astype(mm)

    # ---- fused (all heads at once) QKV projections: 3 MXU matmuls ----------
    # 1/sqrt(head_dim) is pre-folded into wq/bq host-side.
    q = jnp.dot(xb, wq_ref[...], preferred_element_type=jnp.float32) + bq_ref[...]
    k = jnp.dot(xb, wk_ref[...], preferred_element_type=jnp.float32) + bk_ref[...]
    v = jnp.dot(xb, wv_ref[...], preferred_element_type=jnp.float32) + bv_ref[...]
    qb, kb, vb = q.astype(mm), k.astype(mm), v.astype(mm)

    # Rows attend only to keys of their own batch element (block-diagonal
    # mask, integer iota + integer // S -> cheap on the scalar/int VPU path).
    if n_batch > 1:
        r = jax.lax.broadcasted_iota(jnp.int32, (M, M), 0)
        c = jax.lax.broadcasted_iota(jnp.int32, (M, M), 1)
        same_batch = (r // S) == (c // S)

    # ---- per-head scaled dot-product attention (ctx kept in registers) -----
    head_ctx = []
    for h in range(num_heads):                            # static small loop
        lo, hi = h * head_dim, (h + 1) * head_dim
        s = jax.lax.dot_general(qb[:, lo:hi], kb[:, lo:hi],
                                (((1,), (1,)), ((), ())),
                                preferred_element_type=jnp.float32)     # (M, M)
        if n_batch > 1:
            s = jnp.where(same_batch, s, -1e30)
        s = s - jnp.max(s, axis=-1, keepdims=True)
        p = jnp.exp(s)
        p = p * pl.reciprocal(jnp.sum(p, axis=-1, keepdims=True), approx=True)
        head_ctx.append(jnp.dot(p.astype(mm), vb[:, lo:hi],
                                preferred_element_type=jnp.float32).astype(mm))
    ctx = head_ctx[0] if num_heads == 1 else jnp.concatenate(head_ctx, axis=-1)

    # ---- single fused output projection over all heads ----------------------
    attn = jnp.dot(ctx, wo_ref[...],
                   preferred_element_type=jnp.float32) + bo_ref[...]

    # residual + LayerNorm (f32; dropout == identity in eval mode)
    y = _layer_norm(x + attn, ln1_g_ref[...], ln1_b_ref[...])
    yb = y.astype(mm)

    # ---- feed-forward block, tiled over dim_feedforward ---------------------
    F = w1_ref.shape[1]
    n_tiles = max(1, (F + ff_tile - 1) // ff_tile)        # static Python loop
    ff = None
    for t in range(n_tiles):
        lo, hi = t * ff_tile, min(F, (t + 1) * ff_tile)
        h1 = jnp.dot(yb, w1_ref[:, lo:hi],
                     preferred_element_type=jnp.float32) + b1_ref[:, lo:hi]
        h1 = jnp.maximum(h1, 0.0)
        part = jnp.dot(h1.astype(mm), w2_ref[lo:hi, :],
                       preferred_element_type=jnp.float32)
        ff = part if ff is None else ff + part
    ff = ff + b2_ref[...]

    out_ref[...] = _layer_norm(y + ff, ln2_g_ref[...],
                               ln2_b_ref[...]).astype(out_ref.dtype)


# ---------------------------------------------------------------------------
# wrappers around pallas_call
# ---------------------------------------------------------------------------
_PARAM_ORDER = ("wq", "bq", "wk", "bk", "wv", "bv", "wo", "bo",
                "ln1_g", "ln1_b", "w1", "b1", "w2", "b2", "ln2_g", "ln2_b")

# Flipped to False (once, process-wide) if this JAX build rejects Buffered(1).
_WEIGHT_BUFFERING = {"single": True}


def _weight_spec(shape, single_buffer):
    # All fused parameters (and the tiled PE block) are 2-D with a constant
    # block index across the grid; single-buffer them when supported.
    assert len(shape) == 2
    if single_buffer:
        return pl.BlockSpec(shape, lambda b: (0, 0), pipeline_mode=pl.Buffered(1))
    return pl.BlockSpec(shape, lambda b: (0, 0))


def _pick_batch_block(batch, seq_len, *, max_rows=512, max_flatten=16,
                      min_grid_steps=2):
    """How many batch elements to flatten into one grid block.

    * Flatten only while S is small (< 128): the block-diagonal trick wastes
      (Bb-1)/Bb of every (M,M) score tile, so Bb is capped at `max_flatten`.
    * Keep at least `min_grid_steps` steps on the 'parallel' grid axis so both
      v7x TensorCores get work (when the batch allows it).
    * Bb*S must be a multiple of 8 (sublane) unless the block covers the whole
      flattened batch dim.
    """
    cap = 1 if seq_len >= 128 else max(1, min(max_rows // seq_len, max_flatten))
    bb = 1
    for d in range(1, batch + 1):
        if batch % d != 0 or d > cap:
            continue
        if d == 1 or batch // d >= min_grid_steps:
            bb = d
    if (bb * seq_len) % 8 != 0 and bb != batch:
        bb = batch                      # full-extent block is always layout-legal
    return bb


def encoder_layer_pallas(x2d, pe_block, params, *, num_heads, head_dim, add_pe,
                         batch_block, seq_len, ff_tile, single_buffer_weights):
    BS, D = x2d.shape
    rows = batch_block * seq_len
    assert BS % rows == 0
    kernel = functools.partial(encoder_layer_kernel, num_heads=num_heads,
                               head_dim=head_dim, add_pe=add_pe,
                               seq_len=seq_len, ff_tile=ff_tile)

    in_specs = [pl.BlockSpec((rows, D), lambda b: (b, 0))]
    args = [x2d]
    if add_pe:
        in_specs.append(_weight_spec(tuple(pe_block.shape), single_buffer_weights))
        args.append(pe_block)
    for name in _PARAM_ORDER:
        in_specs.append(_weight_spec(tuple(params[name].shape),
                                     single_buffer_weights))
        args.append(params[name])

    return pl.pallas_call(
        kernel,
        grid=(BS // rows,),
        in_specs=in_specs,
        out_specs=pl.BlockSpec((rows, D), lambda b: (b, 0)),
        out_shape=jax.ShapeDtypeStruct((BS, D), x2d.dtype),
        compiler_params=pltpu.CompilerParams(
            dimension_semantics=("parallel",),
            vmem_limit_bytes=_vmem_limit_bytes()),
    )(*args)


def _run_layer(x2d, pe_block, params, **kw):
    if _WEIGHT_BUFFERING["single"]:
        try:
            return encoder_layer_pallas(x2d, pe_block, params,
                                        single_buffer_weights=True, **kw)
        except Exception:
            _WEIGHT_BUFFERING["single"] = False   # Buffered(1) unsupported here
    return encoder_layer_pallas(x2d, pe_block, params,
                                single_buffer_weights=False, **kw)


def transformer_encoder_pallas(src, fused_layer_params, *, num_heads, head_dim,
                               batch_block=None, ff_tile=2048):
    B, S, D = src.shape
    if batch_block is None:
        batch_block = _pick_batch_block(B, S)
    assert B % batch_block == 0
    # PE is only consumed by layer 0; pre-tile it to the (Bb*S, D) block shape.
    pe_block = jnp.tile(position_encoding(S, D)[0],
                        (batch_block, 1)).astype(jnp.float32)
    x = src.reshape(B * S, D)                      # 2-D, lane/sublane dense
    for i, p in enumerate(fused_layer_params):
        x = _run_layer(x, pe_block if i == 0 else None, p,
                       num_heads=num_heads, head_dim=head_dim,
                       add_pe=(i == 0), batch_block=batch_block,
                       seq_len=S, ff_tile=ff_tile)
    return x.reshape(B, S, D)


# ---------------------------------------------------------------------------
# parameter init (PyTorch-Linear-style, per-head) + host-side head fusion
# ---------------------------------------------------------------------------
def init_params(key, num_layers, dim_model, num_heads, dim_q, dim_ff):
    D, H, dq, F = dim_model, num_heads, dim_q, dim_ff

    def u(k, shape, fan_in):
        bound = 1.0 / math.sqrt(fan_in)
        return jax.random.uniform(k, shape, jnp.float32, -bound, bound)

    layers = []
    for l in range(num_layers):
        ks = jax.random.split(jax.random.fold_in(key, l), 12)
        layers.append(dict(
            wq=u(ks[0], (H, D, dq), D), bq=u(ks[1], (H, dq), D),
            wk=u(ks[2], (H, D, dq), D), bk=u(ks[3], (H, dq), D),
            wv=u(ks[4], (H, D, dq), D), bv=u(ks[5], (H, dq), D),
            wo=u(ks[6], (H, dq, D), H * dq), bo=u(ks[7], (D,), H * dq),
            ln1_g=jnp.ones((D,), jnp.float32), ln1_b=jnp.zeros((D,), jnp.float32),
            w1=u(ks[8], (D, F), D), b1=u(ks[9], (F,), D),
            w2=u(ks[10], (F, D), F), b2=u(ks[11], (D,), F),
            ln2_g=jnp.ones((D,), jnp.float32), ln2_b=jnp.zeros((D,), jnp.float32),
        ))
    return layers


def fuse_layer_params(p, matmul_dtype=MATMUL_DTYPE):
    """Host-side head stacking, scale folding and dtype prep (done once)."""
    H, D, dq = p["wq"].shape
    F = p["w1"].shape[1]
    scale = 1.0 / math.sqrt(dq)          # folded into wq / bq (not in-kernel)

    def stack_qkv(w):  # (H, D, dq) -> (D, H*dq), columns in head-concat order
        return jnp.transpose(w, (1, 0, 2)).reshape(D, H * dq)

    return dict(
        wq=(stack_qkv(p["wq"]) * scale).astype(matmul_dtype),
        bq=(p["bq"].reshape(1, H * dq) * scale).astype(jnp.float32),
        wk=stack_qkv(p["wk"]).astype(matmul_dtype),
        bk=p["bk"].reshape(1, H * dq).astype(jnp.float32),
        wv=stack_qkv(p["wv"]).astype(matmul_dtype),
        bv=p["bv"].reshape(1, H * dq).astype(jnp.float32),
        wo=p["wo"].reshape(H * dq, D).astype(matmul_dtype),
        bo=p["bo"].reshape(1, D).astype(jnp.float32),
        ln1_g=p["ln1_g"].reshape(1, D).astype(jnp.float32),
        ln1_b=p["ln1_b"].reshape(1, D).astype(jnp.float32),
        w1=p["w1"].astype(matmul_dtype),
        b1=p["b1"].reshape(1, F).astype(jnp.float32),
        w2=p["w2"].astype(matmul_dtype),
        b2=p["b2"].reshape(1, D).astype(jnp.float32),
        ln2_g=p["ln2_g"].reshape(1, D).astype(jnp.float32),
        ln2_b=p["ln2_b"].reshape(1, D).astype(jnp.float32),
    )


# ---------------------------------------------------------------------------
# pure-JAX (XLA) reference with identical mixed precision (bf16 MXU operands,
# f32 accumulation, f32 softmax / LayerNorm / residuals) for correctness check
# ---------------------------------------------------------------------------
def transformer_encoder_ref(src, fused_layer_params, *, num_heads, head_dim):
    B, S, D = src.shape
    H, dq = num_heads, head_dim
    mm = MATMUL_DTYPE
    x = src.astype(jnp.float32) + position_encoding(S, D)
    for p in fused_layer_params:
        xb = x.astype(mm)
        q = jnp.einsum("bsd,de->bse", xb, p["wq"],
                       preferred_element_type=jnp.float32) + p["bq"]
        k = jnp.einsum("bsd,de->bse", xb, p["wk"],
                       preferred_element_type=jnp.float32) + p["bk"]
        v = jnp.einsum("bsd,de->bse", xb, p["wv"],
                       preferred_element_type=jnp.float32) + p["bv"]
        qh = q.reshape(B, S, H, dq).astype(mm)
        kh = k.reshape(B, S, H, dq).astype(mm)
        vh = v.reshape(B, S, H, dq).astype(mm)
        s = jnp.einsum("bqhd,bkhd->bhqk", qh, kh,
                       preferred_element_type=jnp.float32)
        w = jax.nn.softmax(s, axis=-1)
        ctx = jnp.einsum("bhqk,bkhd->bqhd", w.astype(mm), vh,
                         preferred_element_type=jnp.float32).reshape(B, S, H * dq)
        attn = jnp.einsum("bse,ed->bsd", ctx.astype(mm), p["wo"],
                          preferred_element_type=jnp.float32) + p["bo"]
        y = _layer_norm(x + attn, p["ln1_g"], p["ln1_b"])
        h1 = jnp.maximum(
            jnp.einsum("bsd,df->bsf", y.astype(mm), p["w1"],
                       preferred_element_type=jnp.float32) + p["b1"], 0.0)
        ff = jnp.einsum("bsf,fd->bsd", h1.astype(mm), p["w2"],
                        preferred_element_type=jnp.float32) + p["b2"]
        x = _layer_norm(y + ff, p["ln2_g"], p["ln2_b"])
    return x


# ---------------------------------------------------------------------------
if __name__ == "__main__":
    # small config consistent with the module's forward
    B, S = 2, 8
    num_layers, dim_model, num_heads, dim_ff = 2, 32, 4, 64
    dim_q = dim_model // num_heads if dim_model > num_heads else 64   # = 8

    key = jax.random.PRNGKey(0)
    k_x, k_p = jax.random.split(key)
    src = jax.random.normal(k_x, (B, S, dim_model), jnp.float32)
    raw_params = init_params(k_p, num_layers, dim_model, num_heads, dim_q, dim_ff)
    params = [fuse_layer_params(p) for p in raw_params]

    out = transformer_encoder_pallas(src, params,
                                     num_heads=num_heads, head_dim=dim_q)
    out = jax.block_until_ready(out)

    ref = jax.block_until_ready(
        transformer_encoder_ref(src, params, num_heads=num_heads, head_dim=dim_q))
    np.testing.assert_allclose(np.asarray(out), np.asarray(ref),
                               rtol=1e-2, atol=1e-2)

    print("KERNEL_OK")
</pallas_src>

<mosaic_0001>
module attributes {stable_mosaic.version = 11 : i64} {
  func.func @encoder_layer_kernel(%arg0: i32, %arg1: memref<8x32xf32, #tpu.memory_space<vmem>>, %arg2: memref<8x32xf32, #tpu.memory_space<vmem>>, %arg3: memref<32x32xbf16, #tpu.memory_space<vmem>>, %arg4: memref<1x32xf32, #tpu.memory_space<vmem>>, %arg5: memref<32x32xbf16, #tpu.memory_space<vmem>>, %arg6: memref<1x32xf32, #tpu.memory_space<vmem>>, %arg7: memref<32x32xbf16, #tpu.memory_space<vmem>>, %arg8: memref<1x32xf32, #tpu.memory_space<vmem>>, %arg9: memref<32x32xbf16, #tpu.memory_space<vmem>>, %arg10: memref<1x32xf32, #tpu.memory_space<vmem>>, %arg11: memref<1x32xf32, #tpu.memory_space<vmem>>, %arg12: memref<1x32xf32, #tpu.memory_space<vmem>>, %arg13: memref<32x64xbf16, #tpu.memory_space<vmem>>, %arg14: memref<1x64xf32, #tpu.memory_space<vmem>>, %arg15: memref<64x32xbf16, #tpu.memory_space<vmem>>, %arg16: memref<1x32xf32, #tpu.memory_space<vmem>>, %arg17: memref<1x32xf32, #tpu.memory_space<vmem>>, %arg18: memref<1x32xf32, #tpu.memory_space<vmem>>, %arg19: memref<8x32xf32, #tpu.memory_space<vmem>>) attributes {dimension_semantics = [#tpu.dimension_semantics<parallel>], iteration_bounds = array<i64: 2>, scalar_prefetch = 0 : i64, scratch_operands = 0 : i64, tpu.core_type = #tpu.core_type<tc>, window_params = [{transform_indices = @transform_0, window_bounds = array<i64: 8, 32>}, {pipeline_mode = #tpu.pipeline_mode<synchronous>, transform_indices = @transform_1, window_bounds = array<i64: 8, 32>}, {pipeline_mode = #tpu.pipeline_mode<synchronous>, transform_indices = @transform_2, window_bounds = array<i64: 32, 32>}, {pipeline_mode = #tpu.pipeline_mode<synchronous>, transform_indices = @transform_3, window_bounds = array<i64: 1, 32>}, {pipeline_mode = #tpu.pipeline_mode<synchronous>, transform_indices = @transform_4, window_bounds = array<i64: 32, 32>}, {pipeline_mode = #tpu.pipeline_mode<synchronous>, transform_indices = @transform_5, window_bounds = array<i64: 1, 32>}, {pipeline_mode = #tpu.pipeline_mode<synchronous>, transform_indices = @transform_6, window_bounds = array<i64: 32, 32>}, {pipeline_mode = #tpu.pipeline_mode<synchronous>, transform_indices = @transform_7, window_bounds = array<i64: 1, 32>}, {pipeline_mode = #tpu.pipeline_mode<synchronous>, transform_indices = @transform_8, window_bounds = array<i64: 32, 32>}, {pipeline_mode = #tpu.pipeline_mode<synchronous>, transform_indices = @transform_9, window_bounds = array<i64: 1, 32>}, {pipeline_mode = #tpu.pipeline_mode<synchronous>, transform_indices = @transform_10, window_bounds = array<i64: 1, 32>}, {pipeline_mode = #tpu.pipeline_mode<synchronous>, transform_indices = @transform_11, window_bounds = array<i64: 1, 32>}, {pipeline_mode = #tpu.pipeline_mode<synchronous>, transform_indices = @transform_12, window_bounds = array<i64: 32, 64>}, {pipeline_mode = #tpu.pipeline_mode<synchronous>, transform_indices = @transform_13, window_bounds = array<i64: 1, 64>}, {pipeline_mode = #tpu.pipeline_mode<synchronous>, transform_indices = @transform_14, window_bounds = array<i64: 64, 32>}, {pipeline_mode = #tpu.pipeline_mode<synchronous>, transform_indices = @transform_15, window_bounds = array<i64: 1, 32>}, {pipeline_mode = #tpu.pipeline_mode<synchronous>, transform_indices = @transform_16, window_bounds = array<i64: 1, 32>}, {pipeline_mode = #tpu.pipeline_mode<synchronous>, transform_indices = @transform_17, window_bounds = array<i64: 1, 32>}, {transform_indices = @transform_18, window_bounds = array<i64: 8, 32>}]} {
    %c0 = arith.constant 0 : index
    %c0_0 = arith.constant 0 : index
    %0 = vector.load %arg1[%c0, %c0_0] : memref<8x32xf32, #tpu.memory_space<vmem>>, vector<8x32xf32>
    %c0_1 = arith.constant 0 : index
    %c0_2 = arith.constant 0 : index
    %1 = vector.load %arg2[%c0_1, %c0_2] : memref<8x32xf32, #tpu.memory_space<vmem>>, vector<8x32xf32>
    %2 = arith.addf %0, %1 : vector<8x32xf32>
    %3 = arith.truncf %2 : vector<8x32xf32> to vector<8x32xbf16>
    %c0_3 = arith.constant 0 : index
    %c0_4 = arith.constant 0 : index
    %4 = vector.load %arg3[%c0_3, %c0_4] : memref<32x32xbf16, #tpu.memory_space<vmem>>, vector<32x32xbf16>
    %cst = arith.constant dense<0.000000e+00> : vector<8x32xf32>
    %5 = tpu.matmul %3, %4, %cst {dimension_numbers = #tpu.dot_dimension_numbers<[1], [0], [0], [1], [0, 0, 1, 1], [], []>} : vector<8x32xbf16>, vector<32x32xbf16>, vector<8x32xf32> -> vector<8x32xf32>
    %c0_5 = arith.constant 0 : index
    %c0_6 = arith.constant 0 : index
    %6 = vector.load %arg4[%c0_5, %c0_6] : memref<1x32xf32, #tpu.memory_space<vmem>>, vector<1x32xf32>
    %7 = vector.broadcast %6 : vector<1x32xf32> to vector<8x32xf32>
    %8 = arith.addf %5, %7 : vector<8x32xf32>
    %c0_7 = arith.constant 0 : index
    %c0_8 = arith.constant 0 : index
    %9 = vector.load %arg5[%c0_7, %c0_8] : memref<32x32xbf16, #tpu.memory_space<vmem>>, vector<32x32xbf16>
    %cst_9 = arith.constant dense<0.000000e+00> : vector<8x32xf32>
    %10 = tpu.matmul %3, %9, %cst_9 {dimension_numbers = #tpu.dot_dimension_numbers<[1], [0], [0], [1], [0, 0, 1, 1], [], []>} : vector<8x32xbf16>, vector<32x32xbf16>, vector<8x32xf32> -> vector<8x32xf32>
    %c0_10 = arith.constant 0 : index
    %c0_11 = arith.constant 0 : index
    %11 = vector.load %arg6[%c0_10, %c0_11] : memref<1x32xf32, #tpu.memory_space<vmem>>, vector<1x32xf32>
    %12 = vector.broadcast %11 : vector<1x32xf32> to vector<8x32xf32>
    %13 = arith.addf %10, %12 : vector<8x32xf32>
    %c0_12 = arith.constant 0 : index
    %c0_13 = arith.constant 0 : index
    %14 = vector.load %arg7[%c0_12, %c0_13] : memref<32x32xbf16, #tpu.memory_space<vmem>>, vector<32x32xbf16>
    %cst_14 = arith.constant dense<0.000000e+00> : vector<8x32xf32>
    %15 = tpu.matmul %3, %14, %cst_14 {dimension_numbers = #tpu.dot_dimension_numbers<[1], [0], [0], [1], [0, 0, 1, 1], [], []>} : vector<8x32xbf16>, vector<32x32xbf16>, vector<8x32xf32> -> vector<8x32xf32>
    %c0_15 = arith.constant 0 : index
    %c0_16 = arith.constant 0 : index
    %16 = vector.load %arg8[%c0_15, %c0_16] : memref<1x32xf32, #tpu.memory_space<vmem>>, vector<1x32xf32>
    %17 = vector.broadcast %16 : vector<1x32xf32> to vector<8x32xf32>
    %18 = arith.addf %15, %17 : vector<8x32xf32>
    %19 = arith.truncf %8 : vector<8x32xf32> to vector<8x32xbf16>
    %20 = arith.truncf %13 : vector<8x32xf32> to vector<8x32xbf16>
    %21 = arith.truncf %18 : vector<8x32xf32> to vector<8x32xbf16>
    %22 = vector.extract_strided_slice %19 {offsets = [0, 0], sizes = [8, 8], strides = [1, 1]} : vector<8x32xbf16> to vector<8x8xbf16>
    %23 = vector.extract_strided_slice %20 {offsets = [0, 0], sizes = [8, 8], strides = [1, 1]} : vector<8x32xbf16> to vector<8x8xbf16>
    %cst_17 = arith.constant dense<0.000000e+00> : vector<8x8xf32>
    %24 = tpu.matmul %22, %23, %cst_17 {dimension_numbers = #tpu.dot_dimension_numbers<[1], [1], [0], [0], [0, 0, 1, 0], [], []>} : vector<8x8xbf16>, vector<8x8xbf16>, vector<8x8xf32> -> vector<8x8xf32>
    %cst_18 = arith.constant dense<0xFF800000> : vector<8xf32>
    %25 = vector.multi_reduction <maximumf>, %24, %cst_18 [1] : vector<8x8xf32> to vector<8xf32>
    %26 = vector.shape_cast %25 : vector<8xf32> to vector<8x1xf32>
    %27 = vector.broadcast %26 : vector<8x1xf32> to vector<8x8xf32>
    %28 = arith.subf %24, %27 : vector<8x8xf32>
    %29 = math.exp %28 : vector<8x8xf32>
    %cst_19 = arith.constant dense<0.000000e+00> : vector<8xf32>
    %30 = vector.multi_reduction <add>, %29, %cst_19 [1] : vector<8x8xf32> to vector<8xf32>
    %31 = vector.shape_cast %30 : vector<8xf32> to vector<8x1xf32>
    %32 = tpu.reciprocal %31 {approx = true} : vector<8x1xf32> -> vector<8x1xf32>
    %33 = vector.broadcast %32 : vector<8x1xf32> to vector<8x8xf32>
    %34 = arith.mulf %29, %33 : vector<8x8xf32>
    %35 = arith.truncf %34 : vector<8x8xf32> to vector<8x8xbf16>
    %36 = vector.extract_strided_slice %21 {offsets = [0, 0], sizes = [8, 8], strides = [1, 1]} : vector<8x32xbf16> to vector<8x8xbf16>
    %cst_20 = arith.constant dense<0.000000e+00> : vector<8x8xf32>
    %37 = tpu.matmul %35, %36, %cst_20 {dimension_numbers = #tpu.dot_dimension_numbers<[1], [0], [0], [1], [0, 0, 1, 1], [], []>} : vector<8x8xbf16>, vector<8x8xbf16>, vector<8x8xf32> -> vector<8x8xf32>
    %38 = arith.truncf %37 : vector<8x8xf32> to vector<8x8xbf16>
    %39 = vector.extract_strided_slice %19 {offsets = [0, 8], sizes = [8, 8], strides = [1, 1]} : vector<8x32xbf16> to vector<8x8xbf16>
    %40 = vector.extract_strided_slice %20 {offsets = [0, 8], sizes = [8, 8], strides = [1, 1]} : vector<8x32xbf16> to vector<8x8xbf16>
    %cst_21 = arith.constant dense<0.000000e+00> : vector<8x8xf32>
    %41 = tpu.matmul %39, %40, %cst_21 {dimension_numbers = #tpu.dot_dimension_numbers<[1], [1], [0], [0], [0, 0, 1, 0], [], []>} : vector<8x8xbf16>, vector<8x8xbf16>, vector<8x8xf32> -> vector<8x8xf32>
    %cst_22 = arith.constant dense<0xFF800000> : vector<8xf32>
    %42 = vector.multi_reduction <maximumf>, %41, %cst_22 [1] : vector<8x8xf32> to vector<8xf32>
    %43 = vector.shape_cast %42 : vector<8xf32> to vector<8x1xf32>
    %44 = vector.broadcast %43 : vector<8x1xf32> to vector<8x8xf32>
    %45 = arith.subf %41, %44 : vector<8x8xf32>
    %46 = math.exp %45 : vector<8x8xf32>
    %cst_23 = arith.constant dense<0.000000e+00> : vector<8xf32>
    %47 = vector.multi_reduction <add>, %46, %cst_23 [1] : vector<8x8xf32> to vector<8xf32>
    %48 = vector.shape_cast %47 : vector<8xf32> to vector<8x1xf32>
    %49 = tpu.reciprocal %48 {approx = true} : vector<8x1xf32> -> vector<8x1xf32>
    %50 = vector.broadcast %49 : vector<8x1xf32> to vector<8x8xf32>
    %51 = arith.mulf %46, %50 : vector<8x8xf32>
    %52 = arith.truncf %51 : vector<8x8xf32> to vector<8x8xbf16>
    %53 = vector.extract_strided_slice %21 {offsets = [0, 8], sizes = [8, 8], strides = [1, 1]} : vector<8x32xbf16> to vector<8x8xbf16>
    %cst_24 = arith.constant dense<0.000000e+00> : vector<8x8xf32>
    %54 = tpu.matmul %52, %53, %cst_24 {dimension_numbers = #tpu.dot_dimension_numbers<[1], [0], [0], [1], [0, 0, 1, 1], [], []>} : vector<8x8xbf16>, vector<8x8xbf16>, vector<8x8xf32> -> vector<8x8xf32>
    %55 = arith.truncf %54 : vector<8x8xf32> to vector<8x8xbf16>
    %56 = vector.extract_strided_slice %19 {offsets = [0, 16], sizes = [8, 8], strides = [1, 1]} : vector<8x32xbf16> to vector<8x8xbf16>
    %57 = vector.extract_strided_slice %20 {offsets = [0, 16], sizes = [8, 8], strides = [1, 1]} : vector<8x32xbf16> to vector<8x8xbf16>
    %cst_25 = arith.constant dense<0.000000e+00> : vector<8x8xf32>
    %58 = tpu.matmul %56, %57, %cst_25 {dimension_numbers = #tpu.dot_dimension_numbers<[1], [1], [0], [0], [0, 0, 1, 0], [], []>} : vector<8x8xbf16>, vector<8x8xbf16>, vector<8x8xf32> -> vector<8x8xf32>
    %cst_26 = arith.constant dense<0xFF800000> : vector<8xf32>
    %59 = vector.multi_reduction <maximumf>, %58, %cst_26 [1] : vector<8x8xf32> to vector<8xf32>
    %60 = vector.shape_cast %59 : vector<8xf32> to vector<8x1xf32>
    %61 = vector.broadcast %60 : vector<8x1xf32> to vector<8x8xf32>
    %62 = arith.subf %58, %61 : vector<8x8xf32>
    %63 = math.exp %62 : vector<8x8xf32>
    %cst_27 = arith.constant dense<0.000000e+00> : vector<8xf32>
    %64 = vector.multi_reduction <add>, %63, %cst_27 [1] : vector<8x8xf32> to vector<8xf32>
    %65 = vector.shape_cast %64 : vector<8xf32> to vector<8x1xf32>
    %66 = tpu.reciprocal %65 {approx = true} : vector<8x1xf32> -> vector<8x1xf32>
    %67 = vector.broadcast %66 : vector<8x1xf32> to vector<8x8xf32>
    %68 = arith.mulf %63, %67 : vector<8x8xf32>
    %69 = arith.truncf %68 : vector<8x8xf32> to vector<8x8xbf16>
    %70 = vector.extract_strided_slice %21 {offsets = [0, 16], sizes = [8, 8], strides = [1, 1]} : vector<8x32xbf16> to vector<8x8xbf16>
    %cst_28 = arith.constant dense<0.000000e+00> : vector<8x8xf32>
    %71 = tpu.matmul %69, %70, %cst_28 {dimension_numbers = #tpu.dot_dimension_numbers<[1], [0], [0], [1], [0, 0, 1, 1], [], []>} : vector<8x8xbf16>, vector<8x8xbf16>, vector<8x8xf32> -> vector<8x8xf32>
    %72 = arith.truncf %71 : vector<8x8xf32> to vector<8x8xbf16>
    %73 = vector.extract_strided_slice %19 {offsets = [0, 24], sizes = [8, 8], strides = [1, 1]} : vector<8x32xbf16> to vector<8x8xbf16>
    %74 = vector.extract_strided_slice %20 {offsets = [0, 24], sizes = [8, 8], strides = [1, 1]} : vector<8x32xbf16> to vector<8x8xbf16>
    %cst_29 = arith.constant dense<0.000000e+00> : vector<8x8xf32>
    %75 = tpu.matmul %73, %74, %cst_29 {dimension_numbers = #tpu.dot_dimension_numbers<[1], [1], [0], [0], [0, 0, 1, 0], [], []>} : vector<8x8xbf16>, vector<8x8xbf16>, vector<8x8xf32> -> vector<8x8xf32>
    %cst_30 = arith.constant dense<0xFF800000> : vector<8xf32>
    %76 = vector.multi_reduction <maximumf>, %75, %cst_30 [1] : vector<8x8xf32> to vector<8xf32>
    %77 = vector.shape_cast %76 : vector<8xf32> to vector<8x1xf32>
    %78 = vector.broadcast %77 : vector<8x1xf32> to vector<8x8xf32>
    %79 = arith.subf %75, %78 : vector<8x8xf32>
    %80 = math.exp %79 : vector<8x8xf32>
    %cst_31 = arith.constant dense<0.000000e+00> : vector<8xf32>
    %81 = vector.multi_reduction <add>, %80, %cst_31 [1] : vector<8x8xf32> to vector<8xf32>
    %82 = vector.shape_cast %81 : vector<8xf32> to vector<8x1xf32>
    %83 = tpu.reciprocal %82 {approx = true} : vector<8x1xf32> -> vector<8x1xf32>
    %84 = vector.broadcast %83 : vector<8x1xf32> to vector<8x8xf32>
    %85 = arith.mulf %80, %84 : vector<8x8xf32>
    %86 = arith.truncf %85 : vector<8x8xf32> to vector<8x8xbf16>
    %87 = vector.extract_strided_slice %21 {offsets = [0, 24], sizes = [8, 8], strides = [1, 1]} : vector<8x32xbf16> to vector<8x8xbf16>
    %cst_32 = arith.constant dense<0.000000e+00> : vector<8x8xf32>
    %88 = tpu.matmul %86, %87, %cst_32 {dimension_numbers = #tpu.dot_dimension_numbers<[1], [0], [0], [1], [0, 0, 1, 1], [], []>} : vector<8x8xbf16>, vector<8x8xbf16>, vector<8x8xf32> -> vector<8x8xf32>
    %89 = arith.truncf %88 : vector<8x8xf32> to vector<8x8xbf16>
    %90 = tpu.concatenate %38, %55, %72, %89 in 1 : vector<8x8xbf16>, vector<8x8xbf16>, vector<8x8xbf16>, vector<8x8xbf16> -> vector<8x32xbf16>
    %c0_33 = arith.constant 0 : index
    %c0_34 = arith.constant 0 : index
    %91 = vector.load %arg9[%c0_33, %c0_34] : memref<32x32xbf16, #tpu.memory_space<vmem>>, vector<32x32xbf16>
    %cst_35 = arith.constant dense<0.000000e+00> : vector<8x32xf32>
    %92 = tpu.matmul %90, %91, %cst_35 {dimension_numbers = #tpu.dot_dimension_numbers<[1], [0], [0], [1], [0, 0, 1, 1], [], []>} : vector<8x32xbf16>, vector<32x32xbf16>, vector<8x32xf32> -> vector<8x32xf32>
    %c0_36 = arith.constant 0 : index
    %c0_37 = arith.constant 0 : index
    %93 = vector.load %arg10[%c0_36, %c0_37] : memref<1x32xf32, #tpu.memory_space<vmem>>, vector<1x32xf32>
    %94 = vector.broadcast %93 : vector<1x32xf32> to vector<8x32xf32>
    %95 = arith.addf %92, %94 : vector<8x32xf32>
    %96 = arith.addf %2, %95 : vector<8x32xf32>
    %c0_38 = arith.constant 0 : index
    %c0_39 = arith.constant 0 : index
    %97 = vector.load %arg11[%c0_38, %c0_39] : memref<1x32xf32, #tpu.memory_space<vmem>>, vector<1x32xf32>
    %c0_40 = arith.constant 0 : index
    %c0_41 = arith.constant 0 : index
    %98 = vector.load %arg12[%c0_40, %c0_41] : memref<1x32xf32, #tpu.memory_space<vmem>>, vector<1x32xf32>
    %cst_42 = arith.constant dense<0.000000e+00> : vector<8xf32>
    %99 = vector.multi_reduction <add>, %96, %cst_42 [1] : vector<8x32xf32> to vector<8xf32>
    %100 = vector.shape_cast %99 : vector<8xf32> to vector<8x1xf32>
    %cst_43 = arith.constant 3.200000e+01 : f32
    %101 = vector.broadcast %cst_43 : f32 to vector<8x1xf32>
    %102 = arith.divf %100, %101 : vector<8x1xf32>
    %103 = vector.broadcast %102 : vector<8x1xf32> to vector<8x32xf32>
    %104 = arith.subf %96, %103 : vector<8x32xf32>
    %105 = arith.mulf %104, %104 : vector<8x32xf32>
    %cst_44 = arith.constant dense<0.000000e+00> : vector<8xf32>
    %106 = vector.multi_reduction <add>, %105, %cst_44 [1] : vector<8x32xf32> to vector<8xf32>
    %107 = vector.shape_cast %106 : vector<8xf32> to vector<8x1xf32>
    %cst_45 = arith.constant 3.200000e+01 : f32
    %108 = vector.broadcast %cst_45 : f32 to vector<8x1xf32>
    %109 = arith.divf %107, %108 : vector<8x1xf32>
    %110 = vector.broadcast %102 : vector<8x1xf32> to vector<8x32xf32>
    %111 = arith.subf %96, %110 : vector<8x32xf32>
    %cst_46 = arith.constant 9.99999974E-6 : f32
    %112 = vector.broadcast %cst_46 : f32 to vector<8x1xf32>
    %113 = arith.addf %109, %112 : vector<8x1xf32>
    %114 = math.rsqrt %113 : vector<8x1xf32>
    %115 = vector.broadcast %114 : vector<8x1xf32> to vector<8x32xf32>
    %116 = arith.mulf %111, %115 : vector<8x32xf32>
    %117 = vector.broadcast %97 : vector<1x32xf32> to vector<8x32xf32>
    %118 = arith.mulf %116, %117 : vector<8x32xf32>
    %119 = vector.broadcast %98 : vector<1x32xf32> to vector<8x32xf32>
    %120 = arith.addf %118, %119 : vector<8x32xf32>
    %121 = arith.truncf %120 : vector<8x32xf32> to vector<8x32xbf16>
    %c0_47 = arith.constant 0 : index
    %c0_48 = arith.constant 0 : index
    %122 = vector.load %arg13[%c0_47, %c0_48] : memref<32x64xbf16, #tpu.memory_space<vmem>>, vector<32x64xbf16>
    %cst_49 = arith.constant dense<0.000000e+00> : vector<8x64xf32>
    %123 = tpu.matmul %121, %122, %cst_49 {dimension_numbers = #tpu.dot_dimension_numbers<[1], [0], [0], [1], [0, 0, 1, 1], [], []>} : vector<8x32xbf16>, vector<32x64xbf16>, vector<8x64xf32> -> vector<8x64xf32>
    %c0_50 = arith.constant 0 : index
    %c0_51 = arith.constant 0 : index
    %124 = vector.load %arg14[%c0_50, %c0_51] : memref<1x64xf32, #tpu.memory_space<vmem>>, vector<1x64xf32>
    %125 = vector.broadcast %124 : vector<1x64xf32> to vector<8x64xf32>
    %126 = arith.addf %123, %125 : vector<8x64xf32>
    %cst_52 = arith.constant 0.000000e+00 : f32
    %127 = vector.broadcast %cst_52 : f32 to vector<8x64xf32>
    %128 = arith.maximumf %126, %127 : vector<8x64xf32>
    %129 = arith.truncf %128 : vector<8x64xf32> to vector<8x64xbf16>
    %c0_53 = arith.constant 0 : index
    %c0_54 = arith.constant 0 : index
    %130 = vector.load %arg15[%c0_53, %c0_54] : memref<64x32xbf16, #tpu.memory_space<vmem>>, vector<64x32xbf16>
    %cst_55 = arith.constant dense<0.000000e+00> : vector<8x32xf32>
    %131 = tpu.matmul %129, %130, %cst_55 {dimension_numbers = #tpu.dot_dimension_numbers<[1], [0], [0], [1], [0, 0, 1, 1], [], []>} : vector<8x64xbf16>, vector<64x32xbf16>, vector<8x32xf32> -> vector<8x32xf32>
    %c0_56 = arith.constant 0 : index
    %c0_57 = arith.constant 0 : index
    %132 = vector.load %arg16[%c0_56, %c0_57] : memref<1x32xf32, #tpu.memory_space<vmem>>, vector<1x32xf32>
    %133 = vector.broadcast %132 : vector<1x32xf32> to vector<8x32xf32>
    %134 = arith.addf %131, %133 : vector<8x32xf32>
    %135 = arith.addf %120, %134 : vector<8x32xf32>
    %c0_58 = arith.constant 0 : index
    %c0_59 = arith.constant 0 : index
    %136 = vector.load %arg17[%c0_58, %c0_59] : memref<1x32xf32, #tpu.memory_space<vmem>>, vector<1x32xf32>
    %c0_60 = arith.constant 0 : index
    %c0_61 = arith.constant 0 : index
    %137 = vector.load %arg18[%c0_60, %c0_61] : memref<1x32xf32, #tpu.memory_space<vmem>>, vector<1x32xf32>
    %cst_62 = arith.constant dense<0.000000e+00> : vector<8xf32>
    %138 = vector.multi_reduction <add>, %135, %cst_62 [1] : vector<8x32xf32> to vector<8xf32>
    %139 = vector.shape_cast %138 : vector<8xf32> to vector<8x1xf32>
    %cst_63 = arith.constant 3.200000e+01 : f32
    %140 = vector.broadcast %cst_63 : f32 to vector<8x1xf32>
    %141 = arith.divf %139, %140 : vector<8x1xf32>
    %142 = vector.broadcast %141 : vector<8x1xf32> to vector<8x32xf32>
    %143 = arith.subf %135, %142 : vector<8x32xf32>
    %144 = arith.mulf %143, %143 : vector<8x32xf32>
    %cst_64 = arith.constant dense<0.000000e+00> : vector<8xf32>
    %145 = vector.multi_reduction <add>, %144, %cst_64 [1] : vector<8x32xf32> to vector<8xf32>
    %146 = vector.shape_cast %145 : vector<8xf32> to vector<8x1xf32>
    %cst_65 = arith.constant 3.200000e+01 : f32
    %147 = vector.broadcast %cst_65 : f32 to vector<8x1xf32>
    %148 = arith.divf %146, %147 : vector<8x1xf32>
    %149 = vector.broadcast %141 : vector<8x1xf32> to vector<8x32xf32>
    %150 = arith.subf %135, %149 : vector<8x32xf32>
    %cst_66 = arith.constant 9.99999974E-6 : f32
    %151 = vector.broadcast %cst_66 : f32 to vector<8x1xf32>
    %152 = arith.addf %148, %151 : vector<8x1xf32>
    %153 = math.rsqrt %152 : vector<8x1xf32>
    %154 = vector.broadcast %153 : vector<8x1xf32> to vector<8x32xf32>
    %155 = arith.mulf %150, %154 : vector<8x32xf32>
    %156 = vector.broadcast %136 : vector<1x32xf32> to vector<8x32xf32>
    %157 = arith.mulf %155, %156 : vector<8x32xf32>
    %158 = vector.broadcast %137 : vector<1x32xf32> to vector<8x32xf32>
    %159 = arith.addf %157, %158 : vector<8x32xf32>
    %c0_67 = arith.constant 0 : index
    %c0_68 = arith.constant 0 : index
    %160 = vector.load %arg19[%c0_67, %c0_68] : memref<8x32xf32, #tpu.memory_space<vmem>>, vector<8x32xf32>
    tpu.vector_store %arg19[%c0_67, %c0_68], %159 {strides = array<i32>} : memref<8x32xf32, #tpu.memory_space<vmem>>, vector<8x32xf32>,
    return
  }
  func.func @transform_0(%arg0: i32) -> (i32, i32) {
    %c0_i32 = arith.constant 0 : i32
    %c0_i32_0 = arith.constant 0 : i32
    return %arg0, %c0_i32 : i32, i32
  }
  func.func @transform_1(%arg0: i32) -> (i32, i32) {
    %c0_i32 = arith.constant 0 : i32
    %c0_i32_0 = arith.constant 0 : i32
    %c0_i32_1 = arith.constant 0 : i32
    return %c0_i32, %c0_i32_0 : i32, i32
  }
  func.func @transform_2(%arg0: i32) -> (i32, i32) {
    %c0_i32 = arith.constant 0 : i32
    %c0_i32_0 = arith.constant 0 : i32
    %c0_i32_1 = arith.constant 0 : i32
    return %c0_i32, %c0_i32_0 : i32, i32
  }
  func.func @transform_3(%arg0: i32) -> (i32, i32) {
    %c0_i32 = arith.constant 0 : i32
    %c0_i32_0 = arith.constant 0 : i32
    %c0_i32_1 = arith.constant 0 : i32
    return %c0_i32, %c0_i32_0 : i32, i32
  }
  func.func @transform_4(%arg0: i32) -> (i32, i32) {
    %c0_i32 = arith.constant 0 : i32
    %c0_i32_0 = arith.constant 0 : i32
    %c0_i32_1 = arith.constant 0 : i32
    return %c0_i32, %c0_i32_0 : i32, i32
  }
  func.func @transform_5(%arg0: i32) -> (i32, i32) {
    %c0_i32 = arith.constant 0 : i32
    %c0_i32_0 = arith.constant 0 : i32
    %c0_i32_1 = arith.constant 0 : i32
    return %c0_i32, %c0_i32_0 : i32, i32
  }
  func.func @transform_6(%arg0: i32) -> (i32, i32) {
    %c0_i32 = arith.constant 0 : i32
    %c0_i32_0 = arith.constant 0 : i32
    %c0_i32_1 = arith.constant 0 : i32
    return %c0_i32, %c0_i32_0 : i32, i32
  }
  func.func @transform_7(%arg0: i32) -> (i32, i32) {
    %c0_i32 = arith.constant 0 : i32
    %c0_i32_0 = arith.constant 0 : i32
    %c0_i32_1 = arith.constant 0 : i32
    return %c0_i32, %c0_i32_0 : i32, i32
  }
  func.func @transform_8(%arg0: i32) -> (i32, i32) {
    %c0_i32 = arith.constant 0 : i32
    %c0_i32_0 = arith.constant 0 : i32
    %c0_i32_1 = arith.constant 0 : i32
    return %c0_i32, %c0_i32_0 : i32, i32
  }
  func.func @transform_9(%arg0: i32) -> (i32, i32) {
    %c0_i32 = arith.constant 0 : i32
    %c0_i32_0 = arith.constant 0 : i32
    %c0_i32_1 = arith.constant 0 : i32
    return %c0_i32, %c0_i32_0 : i32, i32
  }
  func.func @transform_10(%arg0: i32) -> (i32, i32) {
    %c0_i32 = arith.constant 0 : i32
    %c0_i32_0 = arith.constant 0 : i32
    %c0_i32_1 = arith.constant 0 : i32
    return %c0_i32, %c0_i32_0 : i32, i32
  }
  func.func @transform_11(%arg0: i32) -> (i32, i32) {
    %c0_i32 = arith.constant 0 : i32
    %c0_i32_0 = arith.constant 0 : i32
    %c0_i32_1 = arith.constant 0 : i32
    return %c0_i32, %c0_i32_0 : i32, i32
  }
  func.func @transform_12(%arg0: i32) -> (i32, i32) {
    %c0_i32 = arith.constant 0 : i32
    %c0_i32_0 = arith.constant 0 : i32
    %c0_i32_1 = arith.constant 0 : i32
    return %c0_i32, %c0_i32_0 : i32, i32
  }
  func.func @transform_13(%arg0: i32) -> (i32, i32) {
    %c0_i32 = arith.constant 0 : i32
    %c0_i32_0 = arith.constant 0 : i32
    %c0_i32_1 = arith.constant 0 : i32
    return %c0_i32, %c0_i32_0 : i32, i32
  }
  func.func @transform_14(%arg0: i32) -> (i32, i32) {
    %c0_i32 = arith.constant 0 : i32
    %c0_i32_0 = arith.constant 0 : i32
    %c0_i32_1 = arith.constant 0 : i32
    return %c0_i32, %c0_i32_0 : i32, i32
  }
  func.func @transform_15(%arg0: i32) -> (i32, i32) {
    %c0_i32 = arith.constant 0 : i32
    %c0_i32_0 = arith.constant 0 : i32
    %c0_i32_1 = arith.constant 0 : i32
    return %c0_i32, %c0_i32_0 : i32, i32
  }
  func.func @transform_16(%arg0: i32) -> (i32, i32) {
    %c0_i32 = arith.constant 0 : i32
    %c0_i32_0 = arith.constant 0 : i32
    %c0_i32_1 = arith.constant 0 : i32
    return %c0_i32, %c0_i32_0 : i32, i32
  }
  func.func @transform_17(%arg0: i32) -> (i32, i32) {
    %c0_i32 = arith.constant 0 : i32
    %c0_i32_0 = arith.constant 0 : i32
    %c0_i32_1 = arith.constant 0 : i32
    return %c0_i32, %c0_i32_0 : i32, i32
  }
  func.func @transform_18(%arg0: i32) -> (i32, i32) {
    %c0_i32 = arith.constant 0 : i32
    %c0_i32_0 = arith.constant 0 : i32
    return %arg0, %c0_i32 : i32, i32
  }
}

module attributes {stable_mosaic.version = 11 : i64} {
  func.func @encoder_layer_kernel(%arg0: i32, %arg1: memref<8x32xf32, #tpu.memory_space<vmem>>, %arg2: memref<8x32xf32, #tpu.memory_space<vmem>>, %arg3: memref<32x32xbf16, #tpu.memory_space<vmem>>, %arg4: memref<1x32xf32, #tpu.memory_space<vmem>>, %arg5: memref<32x32xbf16, #tpu.memory_space<vmem>>, %arg6: memref<1x32xf32, #tpu.memory_space<vmem>>, %arg7: memref<32x32xbf16, #tpu.memory_space<vmem>>, %arg8: memref<1x32xf32, #tpu.memory_space<vmem>>, %arg9: memref<32x32xbf16, #tpu.memory_space<vmem>>, %arg10: memref<1x32xf32, #tpu.memory_space<vmem>>, %arg11: memref<1x32xf32, #tpu.memory_space<vmem>>, %arg12: memref<1x32xf32, #tpu.memory_space<vmem>>, %arg13: memref<32x64xbf16, #tpu.memory_space<vmem>>, %arg14: memref<1x64xf32, #tpu.memory_space<vmem>>, %arg15: memref<64x32xbf16, #tpu.memory_space<vmem>>, %arg16: memref<1x32xf32, #tpu.memory_space<vmem>>, %arg17: memref<1x32xf32, #tpu.memory_space<vmem>>, %arg18: memref<1x32xf32, #tpu.memory_space<vmem>>, %arg19: memref<8x32xf32, #tpu.memory_space<vmem>>) attributes {dimension_semantics = [#tpu.dimension_semantics<parallel>], iteration_bounds = array<i64: 2>, scalar_prefetch = 0 : i64, scratch_operands = 0 : i64, tpu.core_type = #tpu.core_type<tc>, window_params = [{transform_indices = @transform_0, window_bounds = array<i64: 8, 32>}, {pipeline_mode = #tpu.pipeline_mode<synchronous>, transform_indices = @transform_1, window_bounds = array<i64: 8, 32>}, {pipeline_mode = #tpu.pipeline_mode<synchronous>, transform_indices = @transform_2, window_bounds = array<i64: 32, 32>}, {pipeline_mode = #tpu.pipeline_mode<synchronous>, transform_indices = @transform_3, window_bounds = array<i64: 1, 32>}, {pipeline_mode = #tpu.pipeline_mode<synchronous>, transform_indices = @transform_4, window_bounds = array<i64: 32, 32>}, {pipeline_mode = #tpu.pipeline_mode<synchronous>, transform_indices = @transform_5, window_bounds = array<i64: 1, 32>}, {pipeline_mode = #tpu.pipeline_mode<synchronous>, transform_indices = @transform_6, window_bounds = array<i64: 32, 32>}, {pipeline_mode = #tpu.pipeline_mode<synchronous>, transform_indices = @transform_7, window_bounds = array<i64: 1, 32>}, {pipeline_mode = #tpu.pipeline_mode<synchronous>, transform_indices = @transform_8, window_bounds = array<i64: 32, 32>}, {pipeline_mode = #tpu.pipeline_mode<synchronous>, transform_indices = @transform_9, window_bounds = array<i64: 1, 32>}, {pipeline_mode = #tpu.pipeline_mode<synchronous>, transform_indices = @transform_10, window_bounds = array<i64: 1, 32>}, {pipeline_mode = #tpu.pipeline_mode<synchronous>, transform_indices = @transform_11, window_bounds = array<i64: 1, 32>}, {pipeline_mode = #tpu.pipeline_mode<synchronous>, transform_indices = @transform_12, window_bounds = array<i64: 32, 64>}, {pipeline_mode = #tpu.pipeline_mode<synchronous>, transform_indices = @transform_13, window_bounds = array<i64: 1, 64>}, {pipeline_mode = #tpu.pipeline_mode<synchronous>, transform_indices = @transform_14, window_bounds = array<i64: 64, 32>}, {pipeline_mode = #tpu.pipeline_mode<synchronous>, transform_indices = @transform_15, window_bounds = array<i64: 1, 32>}, {pipeline_mode = #tpu.pipeline_mode<synchronous>, transform_indices = @transform_16, window_bounds = array<i64: 1, 32>}, {pipeline_mode = #tpu.pipeline_mode<synchronous>, transform_indices = @transform_17, window_bounds = array<i64: 1, 32>}, {transform_indices = @transform_18, window_bounds = array<i64: 8, 32>}]} {
    %c0 = arith.constant 0 : index
    %c0_0 = arith.constant 0 : index
    %0 = vector.load %arg1[%c0, %c0_0] : memref<8x32xf32, #tpu.memory_space<vmem>>, vector<8x32xf32>
    %c0_1 = arith.constant 0 : index
    %c0_2 = arith.constant 0 : index
    %1 = vector.load %arg2[%c0_1, %c0_2] : memref<8x32xf32, #tpu.memory_space<vmem>>, vector<8x32xf32>
    %2 = arith.addf %0, %1 : vector<8x32xf32>
    %3 = arith.truncf %2 : vector<8x32xf32> to vector<8x32xbf16>
    %c0_3 = arith.constant 0 : index
    %c0_4 = arith.constant 0 : index
    %4 = vector.load %arg3[%c0_3, %c0_4] : memref<32x32xbf16, #tpu.memory_space<vmem>>, vector<32x32xbf16>
    %cst = arith.constant dense<0.000000e+00> : vector<8x32xf32>
    %5 = tpu.matmul %3, %4, %cst {dimension_numbers = #tpu.dot_dimension_numbers<[1], [0], [0], [1], [0, 0, 1, 1], [], []>} : vector<8x32xbf16>, vector<32x32xbf16>, vector<8x32xf32> -> vector<8x32xf32>
    %c0_5 = arith.constant 0 : index
    %c0_6 = arith.constant 0 : index
    %6 = vector.load %arg4[%c0_5, %c0_6] : memref<1x32xf32, #tpu.memory_space<vmem>>, vector<1x32xf32>
    %7 = vector.broadcast %6 : vector<1x32xf32> to vector<8x32xf32>
    %8 = arith.addf %5, %7 : vector<8x32xf32>
    %c0_7 = arith.constant 0 : index
    %c0_8 = arith.constant 0 : index
    %9 = vector.load %arg5[%c0_7, %c0_8] : memref<32x32xbf16, #tpu.memory_space<vmem>>, vector<32x32xbf16>
    %cst_9 = arith.constant dense<0.000000e+00> : vector<8x32xf32>
    %10 = tpu.matmul %3, %9, %cst_9 {dimension_numbers = #tpu.dot_dimension_numbers<[1], [0], [0], [1], [0, 0, 1, 1], [], []>} : vector<8x32xbf16>, vector<32x32xbf16>, vector<8x32xf32> -> vector<8x32xf32>
    %c0_10 = arith.constant 0 : index
    %c0_11 = arith.constant 0 : index
    %11 = vector.load %arg6[%c0_10, %c0_11] : memref<1x32xf32, #tpu.memory_space<vmem>>, vector<1x32xf32>
    %12 = vector.broadcast %11 : vector<1x32xf32> to vector<8x32xf32>
    %13 = arith.addf %10, %12 : vector<8x32xf32>
    %c0_12 = arith.constant 0 : index
    %c0_13 = arith.constant 0 : index
    %14 = vector.load %arg7[%c0_12, %c0_13] : memref<32x32xbf16, #tpu.memory_space<vmem>>, vector<32x32xbf16>
    %cst_14 = arith.constant dense<0.000000e+00> : vector<8x32xf32>
    %15 = tpu.matmul %3, %14, %cst_14 {dimension_numbers = #tpu.dot_dimension_numbers<[1], [0], [0], [1], [0, 0, 1, 1], [], []>} : vector<8x32xbf16>, vector<32x32xbf16>, vector<8x32xf32> -> vector<8x32xf32>
    %c0_15 = arith.constant 0 : index
    %c0_16 = arith.constant 0 : index
    %16 = vector.load %arg8[%c0_15, %c0_16] : memref<1x32xf32, #tpu.memory_space<vmem>>, vector<1x32xf32>
    %17 = vector.broadcast %16 : vector<1x32xf32> to vector<8x32xf32>
    %18 = arith.addf %15, %17 : vector<8x32xf32>
    %19 = arith.truncf %8 : vector<8x32xf32> to vector<8x32xbf16>
    %20 = arith.truncf %13 : vector<8x32xf32> to vector<8x32xbf16>
    %21 = arith.truncf %18 : vector<8x32xf32> to vector<8x32xbf16>
    %22 = vector.extract_strided_slice %19 {offsets = [0, 0], sizes = [8, 8], strides = [1, 1]} : vector<8x32xbf16> to vector<8x8xbf16>
    %23 = vector.extract_strided_slice %20 {offsets = [0, 0], sizes = [8, 8], strides = [1, 1]} : vector<8x32xbf16> to vector<8x8xbf16>
    %cst_17 = arith.constant dense<0.000000e+00> : vector<8x8xf32>
    %24 = tpu.matmul %22, %23, %cst_17 {dimension_numbers = #tpu.dot_dimension_numbers<[1], [1], [0], [0], [0, 0, 1, 0], [], []>} : vector<8x8xbf16>, vector<8x8xbf16>, vector<8x8xf32> -> vector<8x8xf32>
    %cst_18 = arith.constant dense<0xFF800000> : vector<8xf32>
    %25 = vector.multi_reduction <maximumf>, %24, %cst_18 [1] : vector<8x8xf32> to vector<8xf32>
    %26 = vector.shape_cast %25 : vector<8xf32> to vector<8x1xf32>
    %27 = vector.broadcast %26 : vector<8x1xf32> to vector<8x8xf32>
    %28 = arith.subf %24, %27 : vector<8x8xf32>
    %29 = math.exp %28 : vector<8x8xf32>
    %cst_19 = arith.constant dense<0.000000e+00> : vector<8xf32>
    %30 = vector.multi_reduction <add>, %29, %cst_19 [1] : vector<8x8xf32> to vector<8xf32>
    %31 = vector.shape_cast %30 : vector<8xf32> to vector<8x1xf32>
    %32 = tpu.reciprocal %31 {approx = true} : vector<8x1xf32> -> vector<8x1xf32>
    %33 = vector.broadcast %32 : vector<8x1xf32> to vector<8x8xf32>
    %34 = arith.mulf %29, %33 : vector<8x8xf32>
    %35 = arith.truncf %34 : vector<8x8xf32> to vector<8x8xbf16>
    %36 = vector.extract_strided_slice %21 {offsets = [0, 0], sizes = [8, 8], strides = [1, 1]} : vector<8x32xbf16> to vector<8x8xbf16>
    %cst_20 = arith.constant dense<0.000000e+00> : vector<8x8xf32>
    %37 = tpu.matmul %35, %36, %cst_20 {dimension_numbers = #tpu.dot_dimension_numbers<[1], [0], [0], [1], [0, 0, 1, 1], [], []>} : vector<8x8xbf16>, vector<8x8xbf16>, vector<8x8xf32> -> vector<8x8xf32>
    %38 = arith.truncf %37 : vector<8x8xf32> to vector<8x8xbf16>
    %39 = vector.extract_strided_slice %19 {offsets = [0, 8], sizes = [8, 8], strides = [1, 1]} : vector<8x32xbf16> to vector<8x8xbf16>
    %40 = vector.extract_strided_slice %20 {offsets = [0, 8], sizes = [8, 8], strides = [1, 1]} : vector<8x32xbf16> to vector<8x8xbf16>
    %cst_21 = arith.constant dense<0.000000e+00> : vector<8x8xf32>
    %41 = tpu.matmul %39, %40, %cst_21 {dimension_numbers = #tpu.dot_dimension_numbers<[1], [1], [0], [0], [0, 0, 1, 0], [], []>} : vector<8x8xbf16>, vector<8x8xbf16>, vector<8x8xf32> -> vector<8x8xf32>
    %cst_22 = arith.constant dense<0xFF800000> : vector<8xf32>
    %42 = vector.multi_reduction <maximumf>, %41, %cst_22 [1] : vector<8x8xf32> to vector<8xf32>
    %43 = vector.shape_cast %42 : vector<8xf32> to vector<8x1xf32>
    %44 = vector.broadcast %43 : vector<8x1xf32> to vector<8x8xf32>
    %45 = arith.subf %41, %44 : vector<8x8xf32>
    %46 = math.exp %45 : vector<8x8xf32>
    %cst_23 = arith.constant dense<0.000000e+00> : vector<8xf32>
    %47 = vector.multi_reduction <add>, %46, %cst_23 [1] : vector<8x8xf32> to vector<8xf32>
    %48 = vector.shape_cast %47 : vector<8xf32> to vector<8x1xf32>
    %49 = tpu.reciprocal %48 {approx = true} : vector<8x1xf32> -> vector<8x1xf32>
    %50 = vector.broadcast %49 : vector<8x1xf32> to vector<8x8xf32>
    %51 = arith.mulf %46, %50 : vector<8x8xf32>
    %52 = arith.truncf %51 : vector<8x8xf32> to vector<8x8xbf16>
    %53 = vector.extract_strided_slice %21 {offsets = [0, 8], sizes = [8, 8], strides = [1, 1]} : vector<8x32xbf16> to vector<8x8xbf16>
    %cst_24 = arith.constant dense<0.000000e+00> : vector<8x8xf32>
    %54 = tpu.matmul %52, %53, %cst_24 {dimension_numbers = #tpu.dot_dimension_numbers<[1], [0], [0], [1], [0, 0, 1, 1], [], []>} : vector<8x8xbf16>, vector<8x8xbf16>, vector<8x8xf32> -> vector<8x8xf32>
    %55 = arith.truncf %54 : vector<8x8xf32> to vector<8x8xbf16>
    %56 = vector.extract_strided_slice %19 {offsets = [0, 16], sizes = [8, 8], strides = [1, 1]} : vector<8x32xbf16> to vector<8x8xbf16>
    %57 = vector.extract_strided_slice %20 {offsets = [0, 16], sizes = [8, 8], strides = [1, 1]} : vector<8x32xbf16> to vector<8x8xbf16>
    %cst_25 = arith.constant dense<0.000000e+00> : vector<8x8xf32>
    %58 = tpu.matmul %56, %57, %cst_25 {dimension_numbers = #tpu.dot_dimension_numbers<[1], [1], [0], [0], [0, 0, 1, 0], [], []>} : vector<8x8xbf16>, vector<8x8xbf16>, vector<8x8xf32> -> vector<8x8xf32>
    %cst_26 = arith.constant dense<0xFF800000> : vector<8xf32>
    %59 = vector.multi_reduction <maximumf>, %58, %cst_26 [1] : vector<8x8xf32> to vector<8xf32>
    %60 = vector.shape_cast %59 : vector<8xf32> to vector<8x1xf32>
    %61 = vector.broadcast %60 : vector<8x1xf32> to vector<8x8xf32>
    %62 = arith.subf %58, %61 : vector<8x8xf32>
    %63 = math.exp %62 : vector<8x8xf32>
    %cst_27 = arith.constant dense<0.000000e+00> : vector<8xf32>
    %64 = vector.multi_reduction <add>, %63, %cst_27 [1] : vector<8x8xf32> to vector<8xf32>
    %65 = vector.shape_cast %64 : vector<8xf32> to vector<8x1xf32>
    %66 = tpu.reciprocal %65 {approx = true} : vector<8x1xf32> -> vector<8x1xf32>
    %67 = vector.broadcast %66 : vector<8x1xf32> to vector<8x8xf32>
    %68 = arith.mulf %63, %67 : vector<8x8xf32>
    %69 = arith.truncf %68 : vector<8x8xf32> to vector<8x8xbf16>
    %70 = vector.extract_strided_slice %21 {offsets = [0, 16], sizes = [8, 8], strides = [1, 1]} : vector<8x32xbf16> to vector<8x8xbf16>
    %cst_28 = arith.constant dense<0.000000e+00> : vector<8x8xf32>
    %71 = tpu.matmul %69, %70, %cst_28 {dimension_numbers = #tpu.dot_dimension_numbers<[1], [0], [0], [1], [0, 0, 1, 1], [], []>} : vector<8x8xbf16>, vector<8x8xbf16>, vector<8x8xf32> -> vector<8x8xf32>
    %72 = arith.truncf %71 : vector<8x8xf32> to vector<8x8xbf16>
    %73 = vector.extract_strided_slice %19 {offsets = [0, 24], sizes = [8, 8], strides = [1, 1]} : vector<8x32xbf16> to vector<8x8xbf16>
    %74 = vector.extract_strided_slice %20 {offsets = [0, 24], sizes = [8, 8], strides = [1, 1]} : vector<8x32xbf16> to vector<8x8xbf16>
    %cst_29 = arith.constant dense<0.000000e+00> : vector<8x8xf32>
    %75 = tpu.matmul %73, %74, %cst_29 {dimension_numbers = #tpu.dot_dimension_numbers<[1], [1], [0], [0], [0, 0, 1, 0], [], []>} : vector<8x8xbf16>, vector<8x8xbf16>, vector<8x8xf32> -> vector<8x8xf32>
    %cst_30 = arith.constant dense<0xFF800000> : vector<8xf32>
    %76 = vector.multi_reduction <maximumf>, %75, %cst_30 [1] : vector<8x8xf32> to vector<8xf32>
    %77 = vector.shape_cast %76 : vector<8xf32> to vector<8x1xf32>
    %78 = vector.broadcast %77 : vector<8x1xf32> to vector<8x8xf32>
    %79 = arith.subf %75, %78 : vector<8x8xf32>
    %80 = math.exp %79 : vector<8x8xf32>
    %cst_31 = arith.constant dense<0.000000e+00> : vector<8xf32>
    %81 = vector.multi_reduction <add>, %80, %cst_31 [1] : vector<8x8xf32> to vector<8xf32>
    %82 = vector.shape_cast %81 : vector<8xf32> to vector<8x1xf32>
    %83 = tpu.reciprocal %82 {approx = true} : vector<8x1xf32> -> vector<8x1xf32>
    %84 = vector.broadcast %83 : vector<8x1xf32> to vector<8x8xf32>
    %85 = arith.mulf %80, %84 : vector<8x8xf32>
    %86 = arith.truncf %85 : vector<8x8xf32> to vector<8x8xbf16>
    %87 = vector.extract_strided_slice %21 {offsets = [0, 24], sizes = [8, 8], strides = [1, 1]} : vector<8x32xbf16> to vector<8x8xbf16>
    %cst_32 = arith.constant dense<0.000000e+00> : vector<8x8xf32>
    %88 = tpu.matmul %86, %87, %cst_32 {dimension_numbers = #tpu.dot_dimension_numbers<[1], [0], [0], [1], [0, 0, 1, 1], [], []>} : vector<8x8xbf16>, vector<8x8xbf16>, vector<8x8xf32> -> vector<8x8xf32>
    %89 = arith.truncf %88 : vector<8x8xf32> to vector<8x8xbf16>
    %90 = tpu.concatenate %38, %55, %72, %89 in 1 : vector<8x8xbf16>, vector<8x8xbf16>, vector<8x8xbf16>, vector<8x8xbf16> -> vector<8x32xbf16>
    %c0_33 = arith.constant 0 : index
    %c0_34 = arith.constant 0 : index
    %91 = vector.load %arg9[%c0_33, %c0_34] : memref<32x32xbf16, #tpu.memory_space<vmem>>, vector<32x32xbf16>
    %cst_35 = arith.constant dense<0.000000e+00> : vector<8x32xf32>
    %92 = tpu.matmul %90, %91, %cst_35 {dimension_numbers = #tpu.dot_dimension_numbers<[1], [0], [0], [1], [0, 0, 1, 1], [], []>} : vector<8x32xbf16>, vector<32x32xbf16>, vector<8x32xf32> -> vector<8x32xf32>
    %c0_36 = arith.constant 0 : index
    %c0_37 = arith.constant 0 : index
    %93 = vector.load %arg10[%c0_36, %c0_37] : memref<1x32xf32, #tpu.memory_space<vmem>>, vector<1x32xf32>
    %94 = vector.broadcast %93 : vector<1x32xf32> to vector<8x32xf32>
    %95 = arith.addf %92, %94 : vector<8x32xf32>
    %96 = arith.addf %2, %95 : vector<8x32xf32>
    %c0_38 = arith.constant 0 : index
    %c0_39 = arith.constant 0 : index
    %97 = vector.load %arg11[%c0_38, %c0_39] : memref<1x32xf32, #tpu.memory_space<vmem>>, vector<1x32xf32>
    %c0_40 = arith.constant 0 : index
    %c0_41 = arith.constant 0 : index
    %98 = vector.load %arg12[%c0_40, %c0_41] : memref<1x32xf32, #tpu.memory_space<vmem>>, vector<1x32xf32>
    %cst_42 = arith.constant dense<0.000000e+00> : vector<8xf32>
    %99 = vector.multi_reduction <add>, %96, %cst_42 [1] : vector<8x32xf32> to vector<8xf32>
    %100 = vector.shape_cast %99 : vector<8xf32> to vector<8x1xf32>
    %cst_43 = arith.constant 3.200000e+01 : f32
    %101 = vector.broadcast %cst_43 : f32 to vector<8x1xf32>
    %102 = arith.divf %100, %101 : vector<8x1xf32>
    %103 = vector.broadcast %102 : vector<8x1xf32> to vector<8x32xf32>
    %104 = arith.subf %96, %103 : vector<8x32xf32>
    %105 = arith.mulf %104, %104 : vector<8x32xf32>
    %cst_44 = arith.constant dense<0.000000e+00> : vector<8xf32>
    %106 = vector.multi_reduction <add>, %105, %cst_44 [1] : vector<8x32xf32> to vector<8xf32>
    %107 = vector.shape_cast %106 : vector<8xf32> to vector<8x1xf32>
    %cst_45 = arith.constant 3.200000e+01 : f32
    %108 = vector.broadcast %cst_45 : f32 to vector<8x1xf32>
    %109 = arith.divf %107, %108 : vector<8x1xf32>
    %110 = vector.broadcast %102 : vector<8x1xf32> to vector<8x32xf32>
    %111 = arith.subf %96, %110 : vector<8x32xf32>
    %cst_46 = arith.constant 9.99999974E-6 : f32
    %112 = vector.broadcast %cst_46 : f32 to vector<8x1xf32>
    %113 = arith.addf %109, %112 : vector<8x1xf32>
    %114 = math.rsqrt %113 : vector<8x1xf32>
    %115 = vector.broadcast %114 : vector<8x1xf32> to vector<8x32xf32>
    %116 = arith.mulf %111, %115 : vector<8x32xf32>
    %117 = vector.broadcast %97 : vector<1x32xf32> to vector<8x32xf32>
    %118 = arith.mulf %116, %117 : vector<8x32xf32>
    %119 = vector.broadcast %98 : vector<1x32xf32> to vector<8x32xf32>
    %120 = arith.addf %118, %119 : vector<8x32xf32>
    %121 = arith.truncf %120 : vector<8x32xf32> to vector<8x32xbf16>
    %c0_47 = arith.constant 0 : index
    %c0_48 = arith.constant 0 : index
    %122 = vector.load %arg13[%c0_47, %c0_48] : memref<32x64xbf16, #tpu.memory_space<vmem>>, vector<32x64xbf16>
    %cst_49 = arith.constant dense<0.000000e+00> : vector<8x64xf32>
    %123 = tpu.matmul %121, %122, %cst_49 {dimension_numbers = #tpu.dot_dimension_numbers<[1], [0], [0], [1], [0, 0, 1, 1], [], []>} : vector<8x32xbf16>, vector<32x64xbf16>, vector<8x64xf32> -> vector<8x64xf32>
    %c0_50 = arith.constant 0 : index
    %c0_51 = arith.constant 0 : index
    %124 = vector.load %arg14[%c0_50, %c0_51] : memref<1x64xf32, #tpu.memory_space<vmem>>, vector<1x64xf32>
    %125 = vector.broadcast %124 : vector<1x64xf32> to vector<8x64xf32>
    %126 = arith.addf %123, %125 : vector<8x64xf32>
    %cst_52 = arith.constant 0.000000e+00 : f32
    %127 = vector.broadcast %cst_52 : f32 to vector<8x64xf32>
    %128 = arith.maximumf %126, %127 : vector<8x64xf32>
    %129 = arith.truncf %128 : vector<8x64xf32> to vector<8x64xbf16>
    %c0_53 = arith.constant 0 : index
    %c0_54 = arith.constant 0 : index
    %130 = vector.load %arg15[%c0_53, %c0_54] : memref<64x32xbf16, #tpu.memory_space<vmem>>, vector<64x32xbf16>
    %cst_55 = arith.constant dense<0.000000e+00> : vector<8x32xf32>
    %131 = tpu.matmul %129, %130, %cst_55 {dimension_numbers = #tpu.dot_dimension_numbers<[1], [0], [0], [1], [0, 0, 1, 1], [], []>} : vector<8x64xbf16>, vector<64x32xbf16>, vector<8x32xf32> -> vector<8x32xf32>
    %c0_56 = arith.constant 0 : index
    %c0_57 = arith.constant 0 : index
    %132 = vector.load %arg16[%c0_56, %c0_57] : memref<1x32xf32, #tpu.memory_space<vmem>>, vector<1x32xf32>
    %133 = vector.broadcast %132 : vector<1x32xf32> to vector<8x32xf32>
    %134 = arith.addf %131, %133 : vector<8x32xf32>
    %135 = arith.addf %120, %134 : vector<8x32xf32>
    %c0_58 = arith.constant 0 : index
    %c0_59 = arith.constant 0 : index
    %136 = vector.load %arg17[%c0_58, %c0_59] : memref<1x32xf32, #tpu.memory_space<vmem>>, vector<1x32xf32>
    %c0_60 = arith.constant 0 : index
    %c0_61 = arith.constant 0 : index
    %137 = vector.load %arg18[%c0_60, %c0_61] : memref<1x32xf32, #tpu.memory_space<vmem>>, vector<1x32xf32>
    %cst_62 = arith.constant dense<0.000000e+00> : vector<8xf32>
    %138 = vector.multi_reduction <add>, %135, %cst_62 [1] : vector<8x32xf32> to vector<8xf32>
    %139 = vector.shape_cast %138 : vector<8xf32> to vector<8x1xf32>
    %cst_63 = arith.constant 3.200000e+01 : f32
    %140 = vector.broadcast %cst_63 : f32 to vector<8x1xf32>
    %141 = arith.divf %139, %140 : vector<8x1xf32>
    %142 = vector.broadcast %141 : vector<8x1xf32> to vector<8x32xf32>
    %143 = arith.subf %135, %142 : vector<8x32xf32>
    %144 = arith.mulf %143, %143 : vector<8x32xf32>
    %cst_64 = arith.constant dense<0.000000e+00> : vector<8xf32>
    %145 = vector.multi_reduction <add>, %144, %cst_64 [1] : vector<8x32xf32> to vector<8xf32>
    %146 = vector.shape_cast %145 : vector<8xf32> to vector<8x1xf32>
    %cst_65 = arith.constant 3.200000e+01 : f32
    %147 = vector.broadcast %cst_65 : f32 to vector<8x1xf32>
    %148 = arith.divf %146, %147 : vector<8x1xf32>
    %149 = vector.broadcast %141 : vector<8x1xf32> to vector<8x32xf32>
    %150 = arith.subf %135, %149 : vector<8x32xf32>
    %cst_66 = arith.constant 9.99999974E-6 : f32
    %151 = vector.broadcast %cst_66 : f32 to vector<8x1xf32>
    %152 = arith.addf %148, %151 : vector<8x1xf32>
    %153 = math.rsqrt %152 : vector<8x1xf32>
    %154 = vector.broadcast %153 : vector<8x1xf32> to vector<8x32xf32>
    %155 = arith.mulf %150, %154 : vector<8x32xf32>
    %156 = vector.broadcast %136 : vector<1x32xf32> to vector<8x32xf32>
    %157 = arith.mulf %155, %156 : vector<8x32xf32>
    %158 = vector.broadcast %137 : vector<1x32xf32> to vector<8x32xf32>
    %159 = arith.addf %157, %158 : vector<8x32xf32>
    %c0_67 = arith.constant 0 : index
    %c0_68 = arith.constant 0 : index
    %160 = vector.load %arg19[%c0_67, %c0_68] : memref<8x32xf32, #tpu.memory_space<vmem>>, vector<8x32xf32>
    tpu.vector_store %arg19[%c0_67, %c0_68], %159 {strides = array<i32>} : memref<8x32xf32, #tpu.memory_space<vmem>>, vector<8x32xf32>,
    return
  }
  func.func @transform_0(%arg0: i32) -> (i32, i32) {
    %c0_i32 = arith.constant 0 : i32
    %c0_i32_0 = arith.constant 0 : i32
    return %arg0, %c0_i32 : i32, i32
  }
  func.func @transform_1(%arg0: i32) -> (i32, i32) {
    %c0_i32 = arith.constant 0 : i32
    %c0_i32_0 = arith.constant 0 : i32
    %c0_i32_1 = arith.constant 0 : i32
    return %c0_i32, %c0_i32_0 : i32, i32
  }
  func.func @transform_2(%arg0: i32) -> (i32, i32) {
    %c0_i32 = arith.constant 0 : i32
    %c0_i32_0 = arith.constant 0 : i32
    %c0_i32_1 = arith.constant 0 : i32
    return %c0_i32, %c0_i32_0 : i32, i32
  }
  func.func @transform_3(%arg0: i32) -> (i32, i32) {
    %c0_i32 = arith.constant 0 : i32
    %c0_i32_0 = arith.constant 0 : i32
    %c0_i32_1 = arith.constant 0 : i32
    return %c0_i32, %c0_i32_0 : i32, i32
  }
  func.func @transform_4(%arg0: i32) -> (i32, i32) {
    %c0_i32 = arith.constant 0 : i32
    %c0_i32_0 = arith.constant 0 : i32
    %c0_i32_1 = arith.constant 0 : i32
    return %c0_i32, %c0_i32_0 : i32, i32
  }
  func.func @transform_5(%arg0: i32) -> (i32, i32) {
    %c0_i32 = arith.constant 0 : i32
    %c0_i32_0 = arith.constant 0 : i32
    %c0_i32_1 = arith.constant 0 : i32
    return %c0_i32, %c0_i32_0 : i32, i32
  }
  func.func @transform_6(%arg0: i32) -> (i32, i32) {
    %c0_i32 = arith.constant 0 : i32
    %c0_i32_0 = arith.constant 0 : i32
    %c0_i32_1 = arith.constant 0 : i32
    return %c0_i32, %c0_i32_0 : i32, i32
  }
  func.func @transform_7(%arg0: i32) -> (i32, i32) {
    %c0_i32 = arith.constant 0 : i32
    %c0_i32_0 = arith.constant 0 : i32
    %c0_i32_1 = arith.constant 0 : i32
    return %c0_i32, %c0_i32_0 : i32, i32
  }
  func.func @transform_8(%arg0: i32) -> (i32, i32) {
    %c0_i32 = arith.constant 0 : i32
    %c0_i32_0 = arith.constant 0 : i32
    %c0_i32_1 = arith.constant 0 : i32
    return %c0_i32, %c0_i32_0 : i32, i32
  }
  func.func @transform_9(%arg0: i32) -> (i32, i32) {
    %c0_i32 = arith.constant 0 : i32
    %c0_i32_0 = arith.constant 0 : i32
    %c0_i32_1 = arith.constant 0 : i32
    return %c0_i32, %c0_i32_0 : i32, i32
  }
  func.func @transform_10(%arg0: i32) -> (i32, i32) {
    %c0_i32 = arith.constant 0 : i32
    %c0_i32_0 = arith.constant 0 : i32
    %c0_i32_1 = arith.constant 0 : i32
    return %c0_i32, %c0_i32_0 : i32, i32
  }
  func.func @transform_11(%arg0: i32) -> (i32, i32) {
    %c0_i32 = arith.constant 0 : i32
    %c0_i32_0 = arith.constant 0 : i32
    %c0_i32_1 = arith.constant 0 : i32
    return %c0_i32, %c0_i32_0 : i32, i32
  }
  func.func @transform_12(%arg0: i32) -> (i32, i32) {
    %c0_i32 = arith.constant 0 : i32
    %c0_i32_0 = arith.constant 0 : i32
    %c0_i32_1 = arith.constant 0 : i32
    return %c0_i32, %c0_i32_0 : i32, i32
  }
  func.func @transform_13(%arg0: i32) -> (i32, i32) {
    %c0_i32 = arith.constant 0 : i32
    %c0_i32_0 = arith.constant 0 : i32
    %c0_i32_1 = arith.constant 0 : i32
    return %c0_i32, %c0_i32_0 : i32, i32
  }
  func.func @transform_14(%arg0: i32) -> (i32, i32) {
    %c0_i32 = arith.constant 0 : i32
    %c0_i32_0 = arith.constant 0 : i32
    %c0_i32_1 = arith.constant 0 : i32
    return %c0_i32, %c0_i32_0 : i32, i32
  }
  func.func @transform_15(%arg0: i32) -> (i32, i32) {
    %c0_i32 = arith.constant 0 : i32
    %c0_i32_0 = arith.constant 0 : i32
    %c0_i32_1 = arith.constant 0 : i32
    return %c0_i32, %c0_i32_0 : i32, i32
  }
  func.func @transform_16(%arg0: i32) -> (i32, i32) {
    %c0_i32 = arith.constant 0 : i32
    %c0_i32_0 = arith.constant 0 : i32
    %c0_i32_1 = arith.constant 0 : i32
    return %c0_i32, %c0_i32_0 : i32, i32
  }
  func.func @transform_17(%arg0: i32) -> (i32, i32) {
    %c0_i32 = arith.constant 0 : i32
    %c0_i32_0 = arith.constant 0 : i32
    %c0_i32_1 = arith.constant 0 : i32
    return %c0_i32, %c0_i32_0 : i32, i32
  }
  func.func @transform_18(%arg0: i32) -> (i32, i32) {
    %c0_i32 = arith.constant 0 : i32
    %c0_i32_0 = arith.constant 0 : i32
    return %arg0, %c0_i32 : i32, i32
  }
}

</mosaic_0001>

<llo_original>
// kernel: tpu_custom_call.1
$region0: #{tpu_custom_call.1}
  #allocation0 [shape = 'u32[]', space=smem, size = 0x4, offset = 0x4, fixed_abs, tag = 'smem constant byte address 0x4 - core index']
  #allocation1 [shape = 'u32[144,128]{1,0:T(1,128)}', space=vmem, size = 0x12000, scoped, tag = 'internal scratch']
  %s0 = inlined_call_operand.hbm [shape: f32[16,32], index: 0, kind: input, shape index: {}]
  %s1 = inlined_call_operand.hbm [shape: f32[8,32], index: 1, kind: input, shape index: {}]
  %s2 = inlined_call_operand.hbm [shape: bf16[32,32], index: 2, kind: input, shape index: {}]
  %s3 = inlined_call_operand.hbm [shape: f32[1,32], index: 3, kind: input, shape index: {}]
  %s4 = inlined_call_operand.hbm [shape: bf16[32,32], index: 4, kind: input, shape index: {}]
  %s5 = inlined_call_operand.hbm [shape: f32[1,32], index: 5, kind: input, shape index: {}]
  %s6 = inlined_call_operand.hbm [shape: bf16[32,32], index: 6, kind: input, shape index: {}]
  %s7 = inlined_call_operand.hbm [shape: f32[1,32], index: 7, kind: input, shape index: {}]
  %s8 = inlined_call_operand.hbm [shape: bf16[32,32], index: 8, kind: input, shape index: {}]
  %s9 = inlined_call_operand.hbm [shape: f32[1,32], index: 9, kind: input, shape index: {}]
  %s10 = inlined_call_operand.hbm [shape: f32[1,32], index: 10, kind: input, shape index: {}]
  %s11 = inlined_call_operand.hbm [shape: f32[1,32], index: 11, kind: input, shape index: {}]
  %s12 = inlined_call_operand.hbm [shape: bf16[32,64], index: 12, kind: input, shape index: {}]
  %s13 = inlined_call_operand.hbm [shape: f32[1,64], index: 13, kind: input, shape index: {}]
  %s14 = inlined_call_operand.hbm [shape: bf16[64,32], index: 14, kind: input, shape index: {}]
  %s15 = inlined_call_operand.hbm [shape: f32[1,32], index: 15, kind: input, shape index: {}]
  %s16 = inlined_call_operand.hbm [shape: f32[1,32], index: 16, kind: input, shape index: {}]
  %s17 = inlined_call_operand.hbm [shape: f32[1,32], index: 17, kind: input, shape index: {}]
  %s18 = inlined_call_operand.hbm [shape: f32[16,32], index: 18, kind: output, shape index: {}]
  %s19 = sld [smem:[#allocation0]]
  $region177: #{tpu_custom_call.1} parent=0
    _
  %s21 = ssub.s32 1, %s19
  %s22 = scalar_select 0, %s21, %s19
  $region1: #{tpu_custom_call.1} parent=0
    #allocation2 [shape = 'u8[8192]{0}', space=vmem, size = 0x2000, scoped, tag = 'input window, operand 0']
    #allocation3 [shape = 's32[2]{0}', space=sflag, size = 0x8, scoped, tag = 'scoped memory for tpu_custom_call.1']
    #allocation4 [shape = 's32[2]{0}', space=sflag, size = 0x8, scoped, tag = 'scoped memory for tpu_custom_call.1']
    #allocation5 [shape = 'u8[4096]{0}', space=vmem, size = 0x1000, scoped, tag = 'input window, operand 1, single buffered']
    #allocation6 [shape = 's32[1]{0}', space=sflag, size = 0x4, scoped, tag = 'scoped memory for tpu_custom_call.1']
    #allocation7 [shape = 'u8[8192]{0}', space=vmem, size = 0x2000, scoped, tag = 'input window, operand 2, single buffered']
    #allocation8 [shape = 'u8[512]{0}', space=vmem, size = 0x400, scoped, tag = 'input window, operand 3, single buffered']
    #allocation9 [shape = 's32[1]{0}', space=sflag, size = 0x4, scoped, tag = 'scoped memory for tpu_custom_call.1']
    #allocation10 [shape = 'u8[8192]{0}', space=vmem, size = 0x2000, scoped, tag = 'input window, operand 4, single buffered']
    #allocation11 [shape = 'u8[512]{0}', space=vmem, size = 0x400, scoped, tag = 'input window, operand 5, single buffered']
    #allocation12 [shape = 's32[1]{0}', space=sflag, size = 0x4, scoped, tag = 'scoped memory for tpu_custom_call.1']
    #allocation13 [shape = 'u8[8192]{0}', space=vmem, size = 0x2000, scoped, tag = 'input window, operand 6, single buffered']
    #allocation14 [shape = 'u8[512]{0}', space=vmem, size = 0x400, scoped, tag = 'input window, operand 7, single buffered']
    #allocation15 [shape = 's32[1]{0}', space=sflag, size = 0x4, scoped, tag = 'scoped memory for tpu_custom_call.1']
    #allocation16 [shape = 'u8[8192]{0}', space=vmem, size = 0x2000, scoped, tag = 'input window, operand 8, single buffered']
    #allocation17 [shape = 'u8[512]{0}', space=vmem, size = 0x400, scoped, tag = 'input window, operand 9, single buffered']
    #allocation18 [shape = 's32[1]{0}', space=sflag, size = 0x4, scoped, tag = 'scoped memory for tpu_custom_call.1']
    #allocation19 [shape = 'u8[512]{0}', space=vmem, size = 0x400, scoped, tag = 'input window, operand 10, single buffered']
    #allocation20 [shape = 'u8[512]{0}', space=vmem, size = 0x400, scoped, tag = 'input window, operand 11, single buffered']
    #allocation21 [shape = 's32[1]{0}', space=sflag, size = 0x4, scoped, tag = 'scoped memory for tpu_custom_call.1']
    #allocation22 [shape = 'u8[8192]{0}', space=vmem, size = 0x2000, scoped, tag = 'input window, operand 12, single buffered']
    #allocation23 [shape = 'u8[512]{0}', space=vmem, size = 0x400, scoped, tag = 'input window, operand 13, single buffered']
    #allocation24 [shape = 's32[1]{0}', space=sflag, size = 0x4, scoped, tag = 'scoped memory for tpu_custom_call.1']
    #allocation25 [shape = 'u8[16384]{0}', space=vmem, size = 0x4000, scoped, tag = 'input window, operand 14, single buffered']
    #allocation26 [shape = 'u8[512]{0}', space=vmem, size = 0x400, scoped, tag = 'input window, operand 15, single buffered']
    #allocation27 [shape = 's32[1]{0}', space=sflag, size = 0x4, scoped, tag = 'scoped memory for tpu_custom_call.1']
    #allocation28 [shape = 'u8[512]{0}', space=vmem, size = 0x400, scoped, tag = 'input window, operand 16, single buffered']
    #allocation29 [shape = 'u8[512]{0}', space=vmem, size = 0x400, scoped, tag = 'input window, operand 17, single buffered']
    #allocation30 [shape = 's32[1]{0}', space=sflag, size = 0x4, scoped, tag = 'scoped memory for tpu_custom_call.1']
    #allocation31 [shape = 'u8[8192]{0}', space=vmem, size = 0x2000, scoped, tag = 'output window, operand 0']
    %23 = vsyncpa [#allocation3], 0
    %s24 = scalar_lea.sflag [#allocation3], 1
    %25 = vsyncpa %s24, 0
    %26 = vsyncpa [#allocation6], 0
    %27 = vsyncpa [#allocation9], 0
    %28 = vsyncpa [#allocation12], 0
    %29 = vsyncpa [#allocation15], 0
    %30 = vsyncpa [#allocation18], 0
    %31 = vsyncpa [#allocation21], 0
    %32 = vsyncpa [#allocation24], 0
    %33 = vsyncpa [#allocation27], 0
    %34 = vsyncpa [#allocation30], 0
    %35 = vsyncpa [#allocation4], 0
    %s36 = scalar_lea.sflag [#allocation4], 1
    %37 = vsyncpa %s36, 0
    loop: start=0, step=1, limit=4
    $region2: #{tpu_custom_call.1} parent=1 // loop_pre_header
      _
    $region3: #{tpu_custom_call.1} parent=1 // loop_header
      %s39 = sphi 0, %s43
      %p40 = scmp.ge.s32.totalorder %s39, 4
      %s49 = sphi 0, %s51
      %s52 = sphi 0, %s49
      %s53 = sphi 0, %s52
      %s69 = sphi 0, %s53
      %s73 = sphi 0, %s73
      %s75 = sphi 0, %s73
      %s76 = sphi 0, %s75
      %s90 = sphi 0, %s76
      %s94 = sphi 0, %s94
      %s96 = sphi 0, %s94
      %s97 = sphi 0, %s96
      %s111 = sphi 0, %s97
      %s115 = sphi 0, %s115
      %s117 = sphi 0, %s115
      %s118 = sphi 0, %s117
      %s132 = sphi 0, %s118
      %s136 = sphi 0, %s136
      %s138 = sphi 0, %s136
      %s139 = sphi 0, %s138
      %s153 = sphi 0, %s139
      %s157 = sphi 0, %s157
      %s159 = sphi 0, %s157
      %s160 = sphi 0, %s159
      %s174 = sphi 0, %s160
      %s178 = sphi 0, %s178
      %s180 = sphi 0, %s178
      %s181 = sphi 0, %s180
      %s195 = sphi 0, %s181
      %s199 = sphi 0, %s199
      %s201 = sphi 0, %s199
      %s202 = sphi 0, %s201
      %s216 = sphi 0, %s202
      %s220 = sphi 0, %s220
      %s222 = sphi 0, %s220
      %s223 = sphi 0, %s222
      %s237 = sphi 0, %s223
      %s241 = sphi 0, %s241
      %s243 = sphi 0, %s241
      %s244 = sphi 0, %s243
      %s258 = sphi 0, %s244
      %s262 = sphi 0, %s262
      %s264 = sphi 0, %s262
      %s265 = sphi 0, %s264
      %s279 = sphi 0, %s265
      %s283 = sphi 0, %s283
      %s285 = sphi 0, %s283
      %s286 = sphi 0, %s285
      %s300 = sphi 0, %s286
      %s304 = sphi 0, %s304
      %s306 = sphi 0, %s304
      %s307 = sphi 0, %s306
      %s321 = sphi 0, %s307
      %s325 = sphi 0, %s325
      %s327 = sphi 0, %s325
      %s328 = sphi 0, %s327
      %s342 = sphi 0, %s328
      %s346 = sphi 0, %s346
      %s348 = sphi 0, %s346
      %s349 = sphi 0, %s348
      %s363 = sphi 0, %s349
      %s367 = sphi 0, %s367
      %s369 = sphi 0, %s367
      %s370 = sphi 0, %s369
      %s384 = sphi 0, %s370
      %s388 = sphi 0, %s388
      %s390 = sphi 0, %s388
      %s391 = sphi 0, %s390
      %s405 = sphi 0, %s391
      %s409 = sphi 0, %s409
      %s411 = sphi 0, %s409
      %s412 = sphi 0, %s411
      %s426 = sphi 0, %s412
      %s432 = sphi 0, %s434
      %s435 = sphi 0, %s432
      %s436 = sphi 0, %s435
      %s452 = sphi 0, %s436
    $region4: #{tpu_custom_call.1} parent=1 // loop_header_branch
      %42 = sbr.rel (%p40) target = $region8
    $region5: #{tpu_custom_call.1} parent=1 // loop_body
      %s44 = ssub.s32 %s39, 1
      %s45 = ssub.s32 %s39, 2
      %s46 = sadd.s32 %s39, 1
      %s47 = ssub.s32 %s39, %s46
      %p48 = scmp.eq.s32.totalorder %s47, 0
      %s50 = sadd.s32 %s49, 1
      %s51 = scalar_select %p48, %s49, %s50
      %p54 = pneg %p48
      %p55 = scmp.eq.s32.totalorder %s39, 1
      %p56 = por %p54, %p55
      %p57 = scmp.ne.s32.totalorder %s49, %s52
      %p58 = scmp.eq.s32.totalorder %s39, 0
      %p59 = por %p57, %p58
      %p60 = scmp.ne.s32.totalorder %s49, %s52
      %p61 = scmp.eq.s32.totalorder %s44, 1
      %p62 = por %p60, %p61
      %p63 = scmp.ne.s32.totalorder %s52, %s53
      %p64 = scmp.eq.s32.totalorder %s44, 0
      %p65 = por %p63, %p64
      %p66 = scmp.ne.s32.totalorder %s52, %s53
      %p67 = scmp.eq.s32.totalorder %s45, 1
      %p68 = por %p66, %p67
      %p70 = scmp.ne.s32.totalorder %s53, %s69
      %p71 = scmp.eq.s32.totalorder %s45, 0
      %p72 = por %p70, %p71
      %s74 = sadd.s32 %s73, 1
      %p77 = scmp.eq.s32.totalorder %s39, 1
      %p78 = scmp.ne.s32.totalorder %s73, %s75
      %p79 = scmp.eq.s32.totalorder %s39, 0
      %p80 = por %p78, %p79
      %p81 = scmp.ne.s32.totalorder %s73, %s75
      %p82 = scmp.eq.s32.totalorder %s44, 1
      %p83 = por %p81, %p82
      %p84 = scmp.ne.s32.totalorder %s75, %s76
      %p85 = scmp.eq.s32.totalorder %s44, 0
      %p86 = por %p84, %p85
      %p87 = scmp.ne.s32.totalorder %s75, %s76
      %p88 = scmp.eq.s32.totalorder %s45, 1
      %p89 = por %p87, %p88
      %p91 = scmp.ne.s32.totalorder %s76, %s90
      %p92 = scmp.eq.s32.totalorder %s45, 0
      %p93 = por %p91, %p92
      %s95 = sadd.s32 %s94, 1
      %p98 = scmp.eq.s32.totalorder %s39, 1
      %p99 = scmp.ne.s32.totalorder %s94, %s96
      %p100 = scmp.eq.s32.totalorder %s39, 0
      %p101 = por %p99, %p100
      %p102 = scmp.ne.s32.totalorder %s94, %s96
      %p103 = scmp.eq.s32.totalorder %s44, 1
      %p104 = por %p102, %p103
      %p105 = scmp.ne.s32.totalorder %s96, %s97
      %p106 = scmp.eq.s32.totalorder %s44, 0
      %p107 = por %p105, %p106
      %p108 = scmp.ne.s32.totalorder %s96, %s97
      %p109 = scmp.eq.s32.totalorder %s45, 1
      %p110 = por %p108, %p109
      %p112 = scmp.ne.s32.totalorder %s97, %s111
      %p113 = scmp.eq.s32.totalorder %s45, 0
      %p114 = por %p112, %p113
      %s116 = sadd.s32 %s115, 1
      %p119 = scmp.eq.s32.totalorder %s39, 1
      %p120 = scmp.ne.s32.totalorder %s115, %s117
      %p121 = scmp.eq.s32.totalorder %s39, 0
      %p122 = por %p120, %p121
      %p123 = scmp.ne.s32.totalorder %s115, %s117
      %p124 = scmp.eq.s32.totalorder %s44, 1
      %p125 = por %p123, %p124
      %p126 = scmp.ne.s32.totalorder %s117, %s118
      %p127 = scmp.eq.s32.totalorder %s44, 0
      %p128 = por %p126, %p127
      %p129 = scmp.ne.s32.totalorder %s117, %s118
      %p130 = scmp.eq.s32.totalorder %s45, 1
      %p131 = por %p129, %p130
      %p133 = scmp.ne.s32.totalorder %s118, %s132
      %p134 = scmp.eq.s32.totalorder %s45, 0
      %p135 = por %p133, %p134
      %s137 = sadd.s32 %s136, 1
      %p140 = scmp.eq.s32.totalorder %s39, 1
      %p141 = scmp.ne.s32.totalorder %s136, %s138
      %p142 = scmp.eq.s32.totalorder %s39, 0
      %p143 = por %p141, %p142
      %p144 = scmp.ne.s32.totalorder %s136, %s138
      %p145 = scmp.eq.s32.totalorder %s44, 1
      %p146 = por %p144, %p145
      %p147 = scmp.ne.s32.totalorder %s138, %s139
      %p148 = scmp.eq.s32.totalorder %s44, 0
      %p149 = por %p147, %p148
      %p150 = scmp.ne.s32.totalorder %s138, %s139
      %p151 = scmp.eq.s32.totalorder %s45, 1
      %p152 = por %p150, %p151
      %p154 = scmp.ne.s32.totalorder %s139, %s153
      %p155 = scmp.eq.s32.totalorder %s45, 0
      %p156 = por %p154, %p155
      %s158 = sadd.s32 %s157, 1
      %p161 = scmp.eq.s32.totalorder %s39, 1
      %p162 = scmp.ne.s32.totalorder %s157, %s159
      %p163 = scmp.eq.s32.totalorder %s39, 0
      %p164 = por %p162, %p163
      %p165 = scmp.ne.s32.totalorder %s157, %s159
      %p166 = scmp.eq.s32.totalorder %s44, 1
      %p167 = por %p165, %p166
      %p168 = scmp.ne.s32.totalorder %s159, %s160
      %p169 = scmp.eq.s32.totalorder %s44, 0
      %p170 = por %p168, %p169
      %p171 = scmp.ne.s32.totalorder %s159, %s160
      %p172 = scmp.eq.s32.totalorder %s45, 1
      %p173 = por %p171, %p172
      %p175 = scmp.ne.s32.totalorder %s160, %s174
      %p176 = scmp.eq.s32.totalorder %s45, 0
      %p177 = por %p175, %p176
      %s179 = sadd.s32 %s178, 1
      %p182 = scmp.eq.s32.totalorder %s39, 1
      %p183 = scmp.ne.s32.totalorder %s178, %s180
      %p184 = scmp.eq.s32.totalorder %s39, 0
      %p185 = por %p183, %p184
      %p186 = scmp.ne.s32.totalorder %s178, %s180
      %p187 = scmp.eq.s32.totalorder %s44, 1
      %p188 = por %p186, %p187
      %p189 = scmp.ne.s32.totalorder %s180, %s181
      %p190 = scmp.eq.s32.totalorder %s44, 0
      %p191 = por %p189, %p190
      %p192 = scmp.ne.s32.totalorder %s180, %s181
      %p193 = scmp.eq.s32.totalorder %s45, 1
      %p194 = por %p192, %p193
      %p196 = scmp.ne.s32.totalorder %s181, %s195
      %p197 = scmp.eq.s32.totalorder %s45, 0
      %p198 = por %p196, %p197
      %s200 = sadd.s32 %s199, 1
      %p203 = scmp.eq.s32.totalorder %s39, 1
      %p204 = scmp.ne.s32.totalorder %s199, %s201
      %p205 = scmp.eq.s32.totalorder %s39, 0
      %p206 = por %p204, %p205
      %p207 = scmp.ne.s32.totalorder %s199, %s201
      %p208 = scmp.eq.s32.totalorder %s44, 1
      %p209 = por %p207, %p208
      %p210 = scmp.ne.s32.totalorder %s201, %s202
      %p211 = scmp.eq.s32.totalorder %s44, 0
      %p212 = por %p210, %p211
      %p213 = scmp.ne.s32.totalorder %s201, %s202
      %p214 = scmp.eq.s32.totalorder %s45, 1
      %p215 = por %p213, %p214
      %p217 = scmp.ne.s32.totalorder %s202, %s216
      %p218 = scmp.eq.s32.totalorder %s45, 0
      %p219 = por %p217, %p218
      %s221 = sadd.s32 %s220, 1
      %p224 = scmp.eq.s32.totalorder %s39, 1
      %p225 = scmp.ne.s32.totalorder %s220, %s222
      %p226 = scmp.eq.s32.totalorder %s39, 0
      %p227 = por %p225, %p226
      %p228 = scmp.ne.s32.totalorder %s220, %s222
      %p229 = scmp.eq.s32.totalorder %s44, 1
      %p230 = por %p228, %p229
      %p231 = scmp.ne.s32.totalorder %s222, %s223
      %p232 = scmp.eq.s32.totalorder %s44, 0
      %p233 = por %p231, %p232
      %p234 = scmp.ne.s32.totalorder %s222, %s223
      %p235 = scmp.eq.s32.totalorder %s45, 1
      %p236 = por %p234, %p235
      %p238 = scmp.ne.s32.totalorder %s223, %s237
      %p239 = scmp.eq.s32.totalorder %s45, 0
      %p240 = por %p238, %p239
      %s242 = sadd.s32 %s241, 1
      %p245 = scmp.eq.s32.totalorder %s39, 1
      %p246 = scmp.ne.s32.totalorder %s241, %s243
      %p247 = scmp.eq.s32.totalorder %s39, 0
      %p248 = por %p246, %p247
      %p249 = scmp.ne.s32.totalorder %s241, %s243
      %p250 = scmp.eq.s32.totalorder %s44, 1
      %p251 = por %p249, %p250
      %p252 = scmp.ne.s32.totalorder %s243, %s244
      %p253 = scmp.eq.s32.totalorder %s44, 0
      %p254 = por %p252, %p253
      %p255 = scmp.ne.s32.totalorder %s243, %s244
      %p256 = scmp.eq.s32.totalorder %s45, 1
      %p257 = por %p255, %p256
      %p259 = scmp.ne.s32.totalorder %s244, %s258
      %p260 = scmp.eq.s32.totalorder %s45, 0
      %p261 = por %p259, %p260
      %s263 = sadd.s32 %s262, 1
      %p266 = scmp.eq.s32.totalorder %s39, 1
      %p267 = scmp.ne.s32.totalorder %s262, %s264
      %p268 = scmp.eq.s32.totalorder %s39, 0
      %p269 = por %p267, %p268
      %p270 = scmp.ne.s32.totalorder %s262, %s264
      %p271 = scmp.eq.s32.totalorder %s44, 1
      %p272 = por %p270, %p271
      %p273 = scmp.ne.s32.totalorder %s264, %s265
      %p274 = scmp.eq.s32.totalorder %s44, 0
      %p275 = por %p273, %p274
      %p276 = scmp.ne.s32.totalorder %s264, %s265
      %p277 = scmp.eq.s32.totalorder %s45, 1
      %p278 = por %p276, %p277
      %p280 = scmp.ne.s32.totalorder %s265, %s279
      %p281 = scmp.eq.s32.totalorder %s45, 0
      %p282 = por %p280, %p281
      %s284 = sadd.s32 %s283, 1
      %p287 = scmp.eq.s32.totalorder %s39, 1
      %p288 = scmp.ne.s32.totalorder %s283, %s285
      %p289 = scmp.eq.s32.totalorder %s39, 0
      %p290 = por %p288, %p289
      %p291 = scmp.ne.s32.totalorder %s283, %s285
      %p292 = scmp.eq.s32.totalorder %s44, 1
      %p293 = por %p291, %p292
      %p294 = scmp.ne.s32.totalorder %s285, %s286
      %p295 = scmp.eq.s32.totalorder %s44, 0
      %p296 = por %p294, %p295
      %p297 = scmp.ne.s32.totalorder %s285, %s286
      %p298 = scmp.eq.s32.totalorder %s45, 1
      %p299 = por %p297, %p298
      %p301 = scmp.ne.s32.totalorder %s286, %s300
      %p302 = scmp.eq.s32.totalorder %s45, 0
      %p303 = por %p301, %p302
      %s305 = sadd.s32 %s304, 1
      %p308 = scmp.eq.s32.totalorder %s39, 1
      %p309 = scmp.ne.s32.totalorder %s304, %s306
      %p310 = scmp.eq.s32.totalorder %s39, 0
      %p311 = por %p309, %p310
      %p312 = scmp.ne.s32.totalorder %s304, %s306
      %p313 = scmp.eq.s32.totalorder %s44, 1
      %p314 = por %p312, %p313
      %p315 = scmp.ne.s32.totalorder %s306, %s307
      %p316 = scmp.eq.s32.totalorder %s44, 0
      %p317 = por %p315, %p316
      %p318 = scmp.ne.s32.totalorder %s306, %s307
      %p319 = scmp.eq.s32.totalorder %s45, 1
      %p320 = por %p318, %p319
      %p322 = scmp.ne.s32.totalorder %s307, %s321
      %p323 = scmp.eq.s32.totalorder %s45, 0
      %p324 = por %p322, %p323
      %s326 = sadd.s32 %s325, 1
      %p329 = scmp.eq.s32.totalorder %s39, 1
      %p330 = scmp.ne.s32.totalorder %s325, %s327
      %p331 = scmp.eq.s32.totalorder %s39, 0
      %p332 = por %p330, %p331
      %p333 = scmp.ne.s32.totalorder %s325, %s327
      %p334 = scmp.eq.s32.totalorder %s44, 1
      %p335 = por %p333, %p334
      %p336 = scmp.ne.s32.totalorder %s327, %s328
      %p337 = scmp.eq.s32.totalorder %s44, 0
      %p338 = por %p336, %p337
      %p339 = scmp.ne.s32.totalorder %s327, %s328
      %p340 = scmp.eq.s32.totalorder %s45, 1
      %p341 = por %p339, %p340
      %p343 = scmp.ne.s32.totalorder %s328, %s342
      %p344 = scmp.eq.s32.totalorder %s45, 0
      %p345 = por %p343, %p344
      %s347 = sadd.s32 %s346, 1
      %p350 = scmp.eq.s32.totalorder %s39, 1
      %p351 = scmp.ne.s32.totalorder %s346, %s348
      %p352 = scmp.eq.s32.totalorder %s39, 0
      %p353 = por %p351, %p352
      %p354 = scmp.ne.s32.totalorder %s346, %s348
      %p355 = scmp.eq.s32.totalorder %s44, 1
      %p356 = por %p354, %p355
      %p357 = scmp.ne.s32.totalorder %s348, %s349
      %p358 = scmp.eq.s32.totalorder %s44, 0
      %p359 = por %p357, %p358
      %p360 = scmp.ne.s32.totalorder %s348, %s349
      %p361 = scmp.eq.s32.totalorder %s45, 1
      %p362 = por %p360, %p361
      %p364 = scmp.ne.s32.totalorder %s349, %s363
      %p365 = scmp.eq.s32.totalorder %s45, 0
      %p366 = por %p364, %p365
      %s368 = sadd.s32 %s367, 1
      %p371 = scmp.eq.s32.totalorder %s39, 1
      %p372 = scmp.ne.s32.totalorder %s367, %s369
      %p373 = scmp.eq.s32.totalorder %s39, 0
      %p374 = por %p372, %p373
      %p375 = scmp.ne.s32.totalorder %s367, %s369
      %p376 = scmp.eq.s32.totalorder %s44, 1
      %p377 = por %p375, %p376
      %p378 = scmp.ne.s32.totalorder %s369, %s370
      %p379 = scmp.eq.s32.totalorder %s44, 0
      %p380 = por %p378, %p379
      %p381 = scmp.ne.s32.totalorder %s369, %s370
      %p382 = scmp.eq.s32.totalorder %s45, 1
      %p383 = por %p381, %p382
      %p385 = scmp.ne.s32.totalorder %s370, %s384
      %p386 = scmp.eq.s32.totalorder %s45, 0
      %p387 = por %p385, %p386
      %s389 = sadd.s32 %s388, 1
      %p392 = scmp.eq.s32.totalorder %s39, 1
      %p393 = scmp.ne.s32.totalorder %s388, %s390
      %p394 = scmp.eq.s32.totalorder %s39, 0
      %p395 = por %p393, %p394
      %p396 = scmp.ne.s32.totalorder %s388, %s390
      %p397 = scmp.eq.s32.totalorder %s44, 1
      %p398 = por %p396, %p397
      %p399 = scmp.ne.s32.totalorder %s390, %s391
      %p400 = scmp.eq.s32.totalorder %s44, 0
      %p401 = por %p399, %p400
      %p402 = scmp.ne.s32.totalorder %s390, %s391
      %p403 = scmp.eq.s32.totalorder %s45, 1
      %p404 = por %p402, %p403
      %p406 = scmp.ne.s32.totalorder %s391, %s405
      %p407 = scmp.eq.s32.totalorder %s45, 0
      %p408 = por %p406, %p407
      %s410 = sadd.s32 %s409, 1
      %p413 = scmp.eq.s32.totalorder %s39, 1
      %p414 = scmp.ne.s32.totalorder %s409, %s411
      %p415 = scmp.eq.s32.totalorder %s39, 0
      %p416 = por %p414, %p415
      %p417 = scmp.ne.s32.totalorder %s409, %s411
      %p418 = scmp.eq.s32.totalorder %s44, 1
      %p419 = por %p417, %p418
      %p420 = scmp.ne.s32.totalorder %s411, %s412
      %p421 = scmp.eq.s32.totalorder %s44, 0
      %p422 = por %p420, %p421
      %p423 = scmp.ne.s32.totalorder %s411, %s412
      %p424 = scmp.eq.s32.totalorder %s45, 1
      %p425 = por %p423, %p424
      %p427 = scmp.ne.s32.totalorder %s412, %s426
      %p428 = scmp.eq.s32.totalorder %s45, 0
      %p429 = por %p427, %p428
      %s430 = ssub.s32 %s39, %s46
      %p431 = scmp.eq.s32.totalorder %s430, 0
      %s433 = sadd.s32 %s432, 1
      %s434 = scalar_select %p431, %s432, %s433
      %p437 = pneg %p431
      %p438 = scmp.eq.s32.totalorder %s39, 1
      %p439 = por %p437, %p438
      %p440 = scmp.ne.s32.totalorder %s432, %s435
      %p441 = scmp.eq.s32.totalorder %s39, 0
      %p442 = por %p440, %p441
      %p443 = scmp.ne.s32.totalorder %s432, %s435
      %p444 = scmp.eq.s32.totalorder %s44, 1
      %p445 = por %p443, %p444
      %p446 = scmp.ne.s32.totalorder %s435, %s436
      %p447 = scmp.eq.s32.totalorder %s44, 0
      %p448 = por %p446, %p447
      %p449 = scmp.ne.s32.totalorder %s435, %s436
      %p450 = scmp.eq.s32.totalorder %s45, 1
      %p451 = por %p449, %p450
      %p453 = scmp.ne.s32.totalorder %s436, %s452
      %p454 = scmp.eq.s32.totalorder %s45, 0
      %p455 = por %p453, %p454
      %p456 = scmp.le.s32.totalorder 1, %s39
      %p457 = scmp.lt.s32.totalorder %s39, 3
      %p458 = pnand %p456, %p457
      %p459 = pneg %p458
      // Predicated region
      $region9: #{tpu_custom_call.1} parent=5 // pred_check
        _
      $region10: #{tpu_custom_call.1} parent=5 // pred_check_branch
        %461 = sbr.rel (%p458) target = $region12
      $region11: #{tpu_custom_call.1} parent=5 // pred_region
        %s462 = ssub.s32 %s39, 1
        // Predicated region
        $region13: #{tpu_custom_call.1} parent=11 // pred_check
          %p463 = pneg %p86
        $region14: #{tpu_custom_call.1} parent=11 // pred_check_branch
          %465 = sbr.rel (%p463) target = $region16
        $region15: #{tpu_custom_call.1} parent=11 // pred_region
          %s467 = ssub.s32 128, 128
          %468 = vsyncadd [#allocation6], %s467
          %s470 = sshll.u32 [#allocation5], 4
          %s471 = int_to_ptr.vmem [resolvable:$true] %s470
          %473 = dma.hbm_to_vmem [thread:$0]  %s1, 128, %s471, [#allocation6]
        $region16: #{tpu_custom_call.1} parent=11 // pred_fallthru
          _
        // Predicated region
        $region17: #{tpu_custom_call.1} parent=11 // pred_check
          %p474 = pneg %p107
        $region18: #{tpu_custom_call.1} parent=11 // pred_check_branch
          %476 = sbr.rel (%p474) target = $region20
        $region19: #{tpu_custom_call.1} parent=11 // pred_region
          %s478 = ssub.s32 256, 256
          %479 = vsyncadd [#allocation6], %s478
          %s480 = sshll.u32 [#allocation7], 4
          %s481 = int_to_ptr.vmem [resolvable:$true] %s480
          %486 = dma.hbm_to_vmem [thread:$0]  %s2, 256, %s481, [#allocation6], 64, 64, 4
        $region20: #{tpu_custom_call.1} parent=11 // pred_fallthru
          _
        // Predicated region
        $region21: #{tpu_custom_call.1} parent=11 // pred_check
          %p487 = pneg %p128
        $region22: #{tpu_custom_call.1} parent=11 // pred_check_branch
          %489 = sbr.rel (%p487) target = $region24
        $region23: #{tpu_custom_call.1} parent=11 // pred_region
          %s491 = ssub.s32 16, 16
          %492 = vsyncadd [#allocation9], %s491
          %s494 = sshll.u32 [#allocation8], 4
          %s495 = int_to_ptr.vmem [resolvable:$true] %s494
          %497 = dma.hbm_to_vmem [thread:$0]  %s3, 16, %s495, [#allocation9]
        $region24: #{tpu_custom_call.1} parent=11 // pred_fallthru
          _
        // Predicated region
        $region25: #{tpu_custom_call.1} parent=11 // pred_check
          %p498 = pneg %p149
        $region26: #{tpu_custom_call.1} parent=11 // pred_check_branch
          %500 = sbr.rel (%p498) target = $region28
        $region27: #{tpu_custom_call.1} parent=11 // pred_region
          %s502 = ssub.s32 256, 256
          %503 = vsyncadd [#allocation9], %s502
          %s504 = sshll.u32 [#allocation10], 4
          %s505 = int_to_ptr.vmem [resolvable:$true] %s504
          %510 = dma.hbm_to_vmem [thread:$0]  %s4, 256, %s505, [#allocation9], 64, 64, 4
        $region28: #{tpu_custom_call.1} parent=11 // pred_fallthru
          _
        // Predicated region
        $region29: #{tpu_custom_call.1} parent=11 // pred_check
          %p511 = pneg %p170
        $region30: #{tpu_custom_call.1} parent=11 // pred_check_branch
          %513 = sbr.rel (%p511) target = $region32
        $region31: #{tpu_custom_call.1} parent=11 // pred_region
          %s515 = ssub.s32 16, 16
          %516 = vsyncadd [#allocation12], %s515
          %s518 = sshll.u32 [#allocation11], 4
          %s519 = int_to_ptr.vmem [resolvable:$true] %s518
          %521 = dma.hbm_to_vmem [thread:$0]  %s5, 16, %s519, [#allocation12]
        $region32: #{tpu_custom_call.1} parent=11 // pred_fallthru
          _
        // Predicated region
        $region33: #{tpu_custom_call.1} parent=11 // pred_check
          %p522 = pneg %p191
        $region34: #{tpu_custom_call.1} parent=11 // pred_check_branch
          %524 = sbr.rel (%p522) target = $region36
        $region35: #{tpu_custom_call.1} parent=11 // pred_region
          %s526 = ssub.s32 256, 256
          %527 = vsyncadd [#allocation12], %s526
          %s528 = sshll.u32 [#allocation13], 4
          %s529 = int_to_ptr.vmem [resolvable:$true] %s528
          %534 = dma.hbm_to_vmem [thread:$0]  %s6, 256, %s529, [#allocation12], 64, 64, 4
        $region36: #{tpu_custom_call.1} parent=11 // pred_fallthru
          _
        // Predicated region
        $region37: #{tpu_custom_call.1} parent=11 // pred_check
          %p535 = pneg %p212
        $region38: #{tpu_custom_call.1} parent=11 // pred_check_branch
          %537 = sbr.rel (%p535) target = $region40
        $region39: #{tpu_custom_call.1} parent=11 // pred_region
          %s539 = ssub.s32 16, 16
          %540 = vsyncadd [#allocation15], %s539
          %s542 = sshll.u32 [#allocation14], 4
          %s543 = int_to_ptr.vmem [resolvable:$true] %s542
          %545 = dma.hbm_to_vmem [thread:$0]  %s7, 16, %s543, [#allocation15]
        $region40: #{tpu_custom_call.1} parent=11 // pred_fallthru
          _
        // Predicated region
        $region41: #{tpu_custom_call.1} parent=11 // pred_check
          %p546 = pneg %p233
        $region42: #{tpu_custom_call.1} parent=11 // pred_check_branch
          %548 = sbr.rel (%p546) target = $region44
        $region43: #{tpu_custom_call.1} parent=11 // pred_region
          %s550 = ssub.s32 256, 256
          %551 = vsyncadd [#allocation15], %s550
          %s552 = sshll.u32 [#allocation16], 4
          %s553 = int_to_ptr.vmem [resolvable:$true] %s552
          %558 = dma.hbm_to_vmem [thread:$0]  %s8, 256, %s553, [#allocation15], 64, 64, 4
        $region44: #{tpu_custom_call.1} parent=11 // pred_fallthru
          _
        // Predicated region
        $region45: #{tpu_custom_call.1} parent=11 // pred_check
          %p559 = pneg %p254
        $region46: #{tpu_custom_call.1} parent=11 // pred_check_branch
          %561 = sbr.rel (%p559) target = $region48
        $region47: #{tpu_custom_call.1} parent=11 // pred_region
          %s563 = ssub.s32 16, 16
          %564 = vsyncadd [#allocation18], %s563
          %s566 = sshll.u32 [#allocation17], 4
          %s567 = int_to_ptr.vmem [resolvable:$true] %s566
          %569 = dma.hbm_to_vmem [thread:$0]  %s9, 16, %s567, [#allocation18]
        $region48: #{tpu_custom_call.1} parent=11 // pred_fallthru
          _
        // Predicated region
        $region49: #{tpu_custom_call.1} parent=11 // pred_check
          %p570 = pneg %p275
        $region50: #{tpu_custom_call.1} parent=11 // pred_check_branch
          %572 = sbr.rel (%p570) target = $region52
        $region51: #{tpu_custom_call.1} parent=11 // pred_region
          %s574 = ssub.s32 16, 16
          %575 = vsyncadd [#allocation18], %s574
          %s577 = sshll.u32 [#allocation19], 4
          %s578 = int_to_ptr.vmem [resolvable:$true] %s577
          %580 = dma.hbm_to_vmem [thread:$0]  %s10, 16, %s578, [#allocation18]
        $region52: #{tpu_custom_call.1} parent=11 // pred_fallthru
          _
        // Predicated region
        $region53: #{tpu_custom_call.1} parent=11 // pred_check
          %p581 = pneg %p296
        $region54: #{tpu_custom_call.1} parent=11 // pred_check_branch
          %583 = sbr.rel (%p581) target = $region56
        $region55: #{tpu_custom_call.1} parent=11 // pred_region
          %s585 = ssub.s32 16, 16
          %586 = vsyncadd [#allocation21], %s585
          %s588 = sshll.u32 [#allocation20], 4
          %s589 = int_to_ptr.vmem [resolvable:$true] %s588
          %591 = dma.hbm_to_vmem [thread:$0]  %s11, 16, %s589, [#allocation21]
        $region56: #{tpu_custom_call.1} parent=11 // pred_fallthru
          _
        // Predicated region
        $region57: #{tpu_custom_call.1} parent=11 // pred_check
          %p592 = pneg %p317
        $region58: #{tpu_custom_call.1} parent=11 // pred_check_branch
          %594 = sbr.rel (%p592) target = $region60
        $region59: #{tpu_custom_call.1} parent=11 // pred_region
          %s596 = ssub.s32 256, 256
          %597 = vsyncadd [#allocation21], %s596
          %s598 = sshll.u32 [#allocation22], 4
          %s599 = int_to_ptr.vmem [resolvable:$true] %s598
          %604 = dma.hbm_to_vmem [thread:$0]  %s12, 256, %s599, [#allocation21], 64, 64, 4
        $region60: #{tpu_custom_call.1} parent=11 // pred_fallthru
          _
        // Predicated region
        $region61: #{tpu_custom_call.1} parent=11 // pred_check
          %p605 = pneg %p338
        $region62: #{tpu_custom_call.1} parent=11 // pred_check_branch
          %607 = sbr.rel (%p605) target = $region64
        $region63: #{tpu_custom_call.1} parent=11 // pred_region
          %s609 = ssub.s32 16, 16
          %610 = vsyncadd [#allocation24], %s609
          %s612 = sshll.u32 [#allocation23], 4
          %s613 = int_to_ptr.vmem [resolvable:$true] %s612
          %615 = dma.hbm_to_vmem [thread:$0]  %s13, 16, %s613, [#allocation24]
        $region64: #{tpu_custom_call.1} parent=11 // pred_fallthru
          _
        // Predicated region
        $region65: #{tpu_custom_call.1} parent=11 // pred_check
          %p616 = pneg %p359
        $region66: #{tpu_custom_call.1} parent=11 // pred_check_branch
          %618 = sbr.rel (%p616) target = $region68
        $region67: #{tpu_custom_call.1} parent=11 // pred_region
          %s620 = ssub.s32 512, 512
          %621 = vsyncadd [#allocation24], %s620
          %s622 = sshll.u32 [#allocation25], 4
          %s623 = int_to_ptr.vmem [resolvable:$true] %s622
          %628 = dma.hbm_to_vmem [thread:$0]  %s14, 512, %s623, [#allocation24], 64, 64, 4
        $region68: #{tpu_custom_call.1} parent=11 // pred_fallthru
          _
        // Predicated region
        $region69: #{tpu_custom_call.1} parent=11 // pred_check
          %p629 = pneg %p380
        $region70: #{tpu_custom_call.1} parent=11 // pred_check_branch
          %631 = sbr.rel (%p629) target = $region72
        $region71: #{tpu_custom_call.1} parent=11 // pred_region
          %s633 = ssub.s32 16, 16
          %634 = vsyncadd [#allocation27], %s633
          %s636 = sshll.u32 [#allocation26], 4
          %s637 = int_to_ptr.vmem [resolvable:$true] %s636
          %639 = dma.hbm_to_vmem [thread:$0]  %s15, 16, %s637, [#allocation27]
        $region72: #{tpu_custom_call.1} parent=11 // pred_fallthru
          _
        // Predicated region
        $region73: #{tpu_custom_call.1} parent=11 // pred_check
          %p640 = pneg %p401
        $region74: #{tpu_custom_call.1} parent=11 // pred_check_branch
          %642 = sbr.rel (%p640) target = $region76
        $region75: #{tpu_custom_call.1} parent=11 // pred_region
          %s644 = ssub.s32 16, 16
          %645 = vsyncadd [#allocation27], %s644
          %s647 = sshll.u32 [#allocation28], 4
          %s648 = int_to_ptr.vmem [resolvable:$true] %s647
          %650 = dma.hbm_to_vmem [thread:$0]  %s16, 16, %s648, [#allocation27]
        $region76: #{tpu_custom_call.1} parent=11 // pred_fallthru
          _
        // Predicated region
        $region77: #{tpu_custom_call.1} parent=11 // pred_check
          %p651 = pneg %p422
        $region78: #{tpu_custom_call.1} parent=11 // pred_check_branch
          %653 = sbr.rel (%p651) target = $region80
        $region79: #{tpu_custom_call.1} parent=11 // pred_region
          %s655 = ssub.s32 16, 16
          %656 = vsyncadd [#allocation30], %s655
          %s658 = sshll.u32 [#allocation29], 4
          %s659 = int_to_ptr.vmem [resolvable:$true] %s658
          %661 = dma.hbm_to_vmem [thread:$0]  %s17, 16, %s659, [#allocation30]
        $region80: #{tpu_custom_call.1} parent=11 // pred_fallthru
          _
      $region12: #{tpu_custom_call.1} parent=5 // pred_fallthru
        _
      %p662 = scmp.lt.s32.totalorder %s39, 2
      // Predicated region
      $region81: #{tpu_custom_call.1} parent=5 // pred_check
        %p663 = pneg %p662
      $region82: #{tpu_custom_call.1} parent=5 // pred_check_branch
        %665 = sbr.rel (%p663) target = $region84
      $region83: #{tpu_custom_call.1} parent=5 // pred_region
        // Predicated region
        $region85: #{tpu_custom_call.1} parent=83 // pred_check
          %p666 = pneg %p59
        $region86: #{tpu_custom_call.1} parent=83 // pred_check_branch
          %668 = sbr.rel (%p666) target = $region88
        $region87: #{tpu_custom_call.1} parent=83 // pred_region
          %s669 = sand.u32 %s49, 1
          %s670 = scalar_lea.sflag [#allocation3], %s669
          %s671 = sand.u32 %s49, 1
          %s672 = smul.addr %s671, 8
          %s673 = scalar_lea.vmem [#allocation2], %s672
          %s675 = ssub.s32 128, 128
          %676 = vsyncadd %s670, %s675
          %s677 = smul.addr %s39, 128
          %s678 = scalar_lea.hbm %s0, %s677
          %s680 = sshll.u32 %s673, 4
          %s681 = int_to_ptr.vmem [resolvable:$true] %s680
          %683 = dma.hbm_to_vmem [thread:$0]  %s678, 128, %s681, %s670
        $region88: #{tpu_custom_call.1} parent=83 // pred_fallthru
          _
      $region84: #{tpu_custom_call.1} parent=5 // pred_fallthru
        _
      %p684 = scmp.le.s32.totalorder 1, %s39
      %p685 = scmp.lt.s32.totalorder %s39, 3
      %p686 = pnand %p684, %p685
      %p687 = pneg %p686
      // Predicated region
      $region89: #{tpu_custom_call.1} parent=5 // pred_check
        _
      $region90: #{tpu_custom_call.1} parent=5 // pred_check_branch
        %689 = sbr.rel (%p686) target = $region92
      $region91: #{tpu_custom_call.1} parent=5 // pred_region
        %s690 = ssub.s32 %s39, 1
        %s691 = sand.u32 %s52, 1
        %s692 = scalar_lea.sflag [#allocation3], %s691
        %s693 = sand.u32 %s52, 1
        %s694 = smul.addr %s693, 8
        %s695 = scalar_lea.vmem [#allocation2], %s694
        // Predicated region
        $region93: #{tpu_custom_call.1} parent=91 // pred_check
          %p696 = pneg %p65
        $region94: #{tpu_custom_call.1} parent=91 // pred_check_branch
          %698 = sbr.rel (%p696) target = $region96
        $region95: #{tpu_custom_call.1} parent=91 // pred_region
          %699 = dma.done %s692, 128
        $region96: #{tpu_custom_call.1} parent=91 // pred_fallthru
          _
        // Predicated region
        $region97: #{tpu_custom_call.1} parent=91 // pred_check
          %p700 = pneg %p86
        $region98: #{tpu_custom_call.1} parent=91 // pred_check_branch
          %702 = sbr.rel (%p700) target = $region100
        $region99: #{tpu_custom_call.1} parent=91 // pred_region
          %703 = dma.done [#allocation6], 128
        $region100: #{tpu_custom_call.1} parent=91 // pred_fallthru
          _
        // Predicated region
        $region101: #{tpu_custom_call.1} parent=91 // pred_check
          %p704 = pneg %p107
        $region102: #{tpu_custom_call.1} parent=91 // pred_check_branch
          %706 = sbr.rel (%p704) target = $region104
        $region103: #{tpu_custom_call.1} parent=91 // pred_region
          %707 = dma.done [#allocation6], 256
        $region104: #{tpu_custom_call.1} parent=91 // pred_fallthru
          _
        // Predicated region
        $region105: #{tpu_custom_call.1} parent=91 // pred_check
          %p708 = pneg %p128
        $region106: #{tpu_custom_call.1} parent=91 // pred_check_branch
          %710 = sbr.rel (%p708) target = $region108
        $region107: #{tpu_custom_call.1} parent=91 // pred_region
          %711 = dma.done [#allocation9], 16
        $region108: #{tpu_custom_call.1} parent=91 // pred_fallthru
          _
        // Predicated region
        $region109: #{tpu_custom_call.1} parent=91 // pred_check
          %p712 = pneg %p149
        $region110: #{tpu_custom_call.1} parent=91 // pred_check_branch
          %714 = sbr.rel (%p712) target = $region112
        $region111: #{tpu_custom_call.1} parent=91 // pred_region
          %715 = dma.done [#allocation9], 256
        $region112: #{tpu_custom_call.1} parent=91 // pred_fallthru
          _
        // Predicated region
        $region113: #{tpu_custom_call.1} parent=91 // pred_check
          %p716 = pneg %p170
        $region114: #{tpu_custom_call.1} parent=91 // pred_check_branch
          %718 = sbr.rel (%p716) target = $region116
        $region115: #{tpu_custom_call.1} parent=91 // pred_region
          %719 = dma.done [#allocation12], 16
        $region116: #{tpu_custom_call.1} parent=91 // pred_fallthru
          _
        // Predicated region
        $region117: #{tpu_custom_call.1} parent=91 // pred_check
          %p720 = pneg %p191
        $region118: #{tpu_custom_call.1} parent=91 // pred_check_branch
          %722 = sbr.rel (%p720) target = $region120
        $region119: #{tpu_custom_call.1} parent=91 // pred_region
          %723 = dma.done [#allocation12], 256
        $region120: #{tpu_custom_call.1} parent=91 // pred_fallthru
          _
        // Predicated region
        $region121: #{tpu_custom_call.1} parent=91 // pred_check
          %p724 = pneg %p212
        $region122: #{tpu_custom_call.1} parent=91 // pred_check_branch
          %726 = sbr.rel (%p724) target = $region124
        $region123: #{tpu_custom_call.1} parent=91 // pred_region
          %727 = dma.done [#allocation15], 16
        $region124: #{tpu_custom_call.1} parent=91 // pred_fallthru
          _
        // Predicated region
        $region125: #{tpu_custom_call.1} parent=91 // pred_check
          %p728 = pneg %p233
        $region126: #{tpu_custom_call.1} parent=91 // pred_check_branch
          %730 = sbr.rel (%p728) target = $region128
        $region127: #{tpu_custom_call.1} parent=91 // pred_region
          %731 = dma.done [#allocation15], 256
        $region128: #{tpu_custom_call.1} parent=91 // pred_fallthru
          _
        // Predicated region
        $region129: #{tpu_custom_call.1} parent=91 // pred_check
          %p732 = pneg %p254
        $region130: #{tpu_custom_call.1} parent=91 // pred_check_branch
          %734 = sbr.rel (%p732) target = $region132
        $region131: #{tpu_custom_call.1} parent=91 // pred_region
          %735 = dma.done [#allocation18], 16
        $region132: #{tpu_custom_call.1} parent=91 // pred_fallthru
          _
        // Predicated region
        $region133: #{tpu_custom_call.1} parent=91 // pred_check
          %p736 = pneg %p275
        $region134: #{tpu_custom_call.1} parent=91 // pred_check_branch
          %738 = sbr.rel (%p736) target = $region136
        $region135: #{tpu_custom_call.1} parent=91 // pred_region
          %739 = dma.done [#allocation18], 16
        $region136: #{tpu_custom_call.1} parent=91 // pred_fallthru
          _
        // Predicated region
        $region137: #{tpu_custom_call.1} parent=91 // pred_check
          %p740 = pneg %p296
        $region138: #{tpu_custom_call.1} parent=91 // pred_check_branch
          %742 = sbr.rel (%p740) target = $region140
        $region139: #{tpu_custom_call.1} parent=91 // pred_region
          %743 = dma.done [#allocation21], 16
        $region140: #{tpu_custom_call.1} parent=91 // pred_fallthru
          _
        // Predicated region
        $region141: #{tpu_custom_call.1} parent=91 // pred_check
          %p744 = pneg %p317
        $region142: #{tpu_custom_call.1} parent=91 // pred_check_branch
          %746 = sbr.rel (%p744) target = $region144
        $region143: #{tpu_custom_call.1} parent=91 // pred_region
          %747 = dma.done [#allocation21], 256
        $region144: #{tpu_custom_call.1} parent=91 // pred_fallthru
          _
        // Predicated region
        $region145: #{tpu_custom_call.1} parent=91 // pred_check
          %p748 = pneg %p338
        $region146: #{tpu_custom_call.1} parent=91 // pred_check_branch
          %750 = sbr.rel (%p748) target = $region148
        $region147: #{tpu_custom_call.1} parent=91 // pred_region
          %751 = dma.done [#allocation24], 16
        $region148: #{tpu_custom_call.1} parent=91 // pred_fallthru
          _
        // Predicated region
        $region149: #{tpu_custom_call.1} parent=91 // pred_check
          %p752 = pneg %p359
        $region150: #{tpu_custom_call.1} parent=91 // pred_check_branch
          %754 = sbr.rel (%p752) target = $region152
        $region151: #{tpu_custom_call.1} parent=91 // pred_region
          %755 = dma.done [#allocation24], 512
        $region152: #{tpu_custom_call.1} parent=91 // pred_fallthru
          _
        // Predicated region
        $region153: #{tpu_custom_call.1} parent=91 // pred_check
          %p756 = pneg %p380
        $region154: #{tpu_custom_call.1} parent=91 // pred_check_branch
          %758 = sbr.rel (%p756) target = $region156
        $region155: #{tpu_custom_call.1} parent=91 // pred_region
          %759 = dma.done [#allocation27], 16
        $region156: #{tpu_custom_call.1} parent=91 // pred_fallthru
          _
        // Predicated region
        $region157: #{tpu_custom_call.1} parent=91 // pred_check
          %p760 = pneg %p401
        $region158: #{tpu_custom_call.1} parent=91 // pred_check_branch
          %762 = sbr.rel (%p760) target = $region160
        $region159: #{tpu_custom_call.1} parent=91 // pred_region
          %763 = dma.done [#allocation27], 16
        $region160: #{tpu_custom_call.1} parent=91 // pred_fallthru
          _
        // Predicated region
        $region161: #{tpu_custom_call.1} parent=91 // pred_check
          %p764 = pneg %p422
        $region162: #{tpu_custom_call.1} parent=91 // pred_check_branch
          %766 = sbr.rel (%p764) target = $region164
        $region163: #{tpu_custom_call.1} parent=91 // pred_region
          %767 = dma.done [#allocation30], 16
        $region164: #{tpu_custom_call.1} parent=91 // pred_fallthru
          _
        %s768 = sand.u32 %s52, 1
        %s769 = scalar_lea.sflag [#allocation3], %s768
        %s770 = sand.u32 %s52, 1
        %s771 = smul.addr %s770, 8
        %s772 = scalar_lea.vmem [#allocation2], %s771
        %p773 = pneg %p65
        %p774 = pneg %p62
        %p775 = pneg %p86
        %p776 = pneg %p83
        %p777 = pneg %p107
        %p778 = pneg %p104
        %p779 = pneg %p128
        %p780 = pneg %p125
        %p781 = pneg %p149
        %p782 = pneg %p146
        %p783 = pneg %p170
        %p784 = pneg %p167
        %p785 = pneg %p191
        %p786 = pneg %p188
        %p787 = pneg %p212
        %p788 = pneg %p209
        %p789 = pneg %p233
        %p790 = pneg %p230
        %p791 = pneg %p254
        %p792 = pneg %p251
        %p793 = pneg %p275
        %p794 = pneg %p272
        %p795 = pneg %p296
        %p796 = pneg %p293
        %p797 = pneg %p317
        %p798 = pneg %p314
        %p799 = pneg %p338
        %p800 = pneg %p335
        %p801 = pneg %p359
        %p802 = pneg %p356
        %p803 = pneg %p380
        %p804 = pneg %p377
        %p805 = pneg %p401
        %p806 = pneg %p398
        %p807 = pneg %p422
        %p808 = pneg %p419
        %p809 = pneg %p448
        %p810 = pneg %p445
        %s811 = sand.u32 %s435, 1
        %s812 = scalar_lea.sflag [#allocation4], %s811
        %s813 = sand.u32 %s435, 1
        %s814 = smul.addr %s813, 8
        %s815 = scalar_lea.vmem [#allocation31], %s814
        %v817 = vld [vmem:[%s695] sm:$0xff]
        %v818 = vld [vmem:[#allocation5] sm:$0xff]
        %v819 = vadd.f32 %v817, %v818
        %v820 = vpack.c.bf16 %v819, %v819
        %v821 = vld [vmem:[#allocation7] sm:$0xf]
        %v822 = vld [vmem:[#allocation7 + $0x4] sm:$0xf]
        %v823 = vld [vmem:[#allocation7 + $0x8] sm:$0xf]
        %v824 = vld [vmem:[#allocation7 + $0xc] sm:$0xf]
        %v825 = vld [vmem:[#allocation8] sm:$0x1]
        %v827 = vlaneseq
        %v828 = vshrl.u32 %v827, 7
        %v829 = vsub.s32 0, %v828
        %v830 = vrot.slane %v825, %v829
        %v836 = vunpack.c.l.b16 %v821
        %v837 = vunpack.c.l.b16 %v822
        %v838 = vunpack.c.l.b16 %v823
        %v839 = vunpack.c.l.b16 %v824
        %v840 = vpack.c.b16 %v837, %v836
        %v841 = vpack.c.b16 %v839, %v838
        %vm844 = vcmask 261120
        %v846 = vsel %vm844, %v820, 0
        %848 = vmatprep.subr.bf16.mxu0 0
        %849 = vmatpush1.bf16.msra.mxu0 %v840
        %850 = vmatprep.subr.bf16.mxu0 0
        %851 = vmatpush1.bf16.msra.mxu0 %v841
        %852 = vmatprep.subr.bf16.mxu0 0
        %853 = vmatpush1.bf16.msra.mxu0 0
        %854 = vmatprep.subr.bf16.mxu0 0
        %855 = vmatpush1.bf16.msra.mxu0 0
        %856 = vmatprep.subr.bf16.mxu0 0
        %857 = vmatpush1.bf16.msra.mxu0 0
        %858 = vmatprep.subr.bf16.mxu0 0
        %859 = vmatpush1.bf16.msra.mxu0 0
        %860 = vmatprep.subr.bf16.mxu0 0
        %861 = vmatpush1.bf16.msra.mxu0 0
        %862 = vmatprep.subr.bf16.mxu0 0
        %863 = vmatpush1.bf16.msra.mxu0 0
        %864 = vmatprep.subr.bf16.mxu0 0
        %865 = vmatpush1.bf16.msra.mxu0 0
        %866 = vmatprep.subr.bf16.mxu0 0
        %867 = vmatpush1.bf16.msra.mxu0 0
        %868 = vmatprep.subr.bf16.mxu0 0
        %869 = vmatpush1.bf16.msra.mxu0 0
        %870 = vmatprep.subr.bf16.mxu0 0
        %871 = vmatpush1.bf16.msra.mxu0 0
        %872 = vmatprep.subr.bf16.mxu0 0
        %873 = vmatpush1.bf16.msra.mxu0 0
        %874 = vmatprep.subr.bf16.mxu0 0
        %875 = vmatpush1.bf16.msra.mxu0 0
        %876 = vmatprep.subr.bf16.mxu0 0
        %877 = vmatpush1.bf16.msra.mxu0 0
        %878 = vmatprep.subr.bf16.mxu0 0
        %879 = vmatpush1.bf16.msra.mxu0 0
        %880 = vmatprep.mubr.bf16.mxu0 0
        %881 = vmatmul.mubr.bf16.gmra.mrb[0].mxu0 %v846
        %v882 = vpop.f32.mrb[0].mxu0
        %v883 = vadd.f32 %v830, %v882
        %v884 = vpop.f32.mrb[0].mxu0
        %v885 = vpop.f32.mrb[0].mxu0
        %v886 = vpop.f32.mrb[0].mxu0
        %887 = vdwg.mxu0
        %v888 = vld [vmem:[#allocation10] sm:$0xf]
        %v889 = vld [vmem:[#allocation10 + $0x4] sm:$0xf]
        %v890 = vld [vmem:[#allocation10 + $0x8] sm:$0xf]
        %v891 = vld [vmem:[#allocation10 + $0xc] sm:$0xf]
        %v892 = vld [vmem:[#allocation11] sm:$0x1]
        %v894 = vlaneseq
        %v895 = vshrl.u32 %v894, 7
        %v896 = vsub.s32 0, %v895
        %v897 = vrot.slane %v892, %v896
        %v903 = vunpack.c.l.b16 %v888
        %v904 = vunpack.c.l.b16 %v889
        %v905 = vunpack.c.l.b16 %v890
        %v906 = vunpack.c.l.b16 %v891
        %v907 = vpack.c.b16 %v904, %v903
        %v908 = vpack.c.b16 %v906, %v905
        %911 = vmatprep.subr.bf16.mxu0 0
        %912 = vmatpush1.bf16.msra.mxu0 %v907
        %913 = vmatprep.subr.bf16.mxu0 0
        %914 = vmatpush1.bf16.msra.mxu0 %v908
        %915 = vmatprep.subr.bf16.mxu0 0
        %916 = vmatpush1.bf16.msra.mxu0 0
        %917 = vmatprep.subr.bf16.mxu0 0
        %918 = vmatpush1.bf16.msra.mxu0 0
        %919 = vmatprep.subr.bf16.mxu0 0
        %920 = vmatpush1.bf16.msra.mxu0 0
        %921 = vmatprep.subr.bf16.mxu0 0
        %922 = vmatpush1.bf16.msra.mxu0 0
        %923 = vmatprep.subr.bf16.mxu0 0
        %924 = vmatpush1.bf16.msra.mxu0 0
        %925 = vmatprep.subr.bf16.mxu0 0
        %926 = vmatpush1.bf16.msra.mxu0 0
        %927 = vmatprep.subr.bf16.mxu0 0
        %928 = vmatpush1.bf16.msra.mxu0 0
        %929 = vmatprep.subr.bf16.mxu0 0
        %930 = vmatpush1.bf16.msra.mxu0 0
        %931 = vmatprep.subr.bf16.mxu0 0
        %932 = vmatpush1.bf16.msra.mxu0 0
        %933 = vmatprep.subr.bf16.mxu0 0
        %934 = vmatpush1.bf16.msra.mxu0 0
        %935 = vmatprep.subr.bf16.mxu0 0
        %936 = vmatpush1.bf16.msra.mxu0 0
        %937 = vmatprep.subr.bf16.mxu0 0
        %938 = vmatpush1.bf16.msra.mxu0 0
        %939 = vmatprep.subr.bf16.mxu0 0
        %940 = vmatpush1.bf16.msra.mxu0 0
        %941 = vmatprep.subr.bf16.mxu0 0
        %942 = vmatpush1.bf16.msra.mxu0 0
        %943 = vmatprep.mubr.bf16.mxu0 0
        %944 = vmatmul.mubr.bf16.gmra.mrb[0].mxu0 %v846
        %v945 = vpop.f32.mrb[0].mxu0
        %v946 = vadd.f32 %v897, %v945
        %v947 = vpop.f32.mrb[0].mxu0
        %v948 = vpop.f32.mrb[0].mxu0
        %v949 = vpop.f32.mrb[0].mxu0
        %950 = vdwg.mxu0
        %v951 = vld [vmem:[#allocation13] sm:$0xf]
        %v952 = vld [vmem:[#allocation13 + $0x4] sm:$0xf]
        %v953 = vld [vmem:[#allocation13 + $0x8] sm:$0xf]
        %v954 = vld [vmem:[#allocation13 + $0xc] sm:$0xf]
        %v955 = vld [vmem:[#allocation14] sm:$0x1]
        %v957 = vlaneseq
        %v958 = vshrl.u32 %v957, 7
        %v959 = vsub.s32 0, %v958
        %v960 = vrot.slane %v955, %v959
        %v966 = vunpack.c.l.b16 %v951
        %v967 = vunpack.c.l.b16 %v952
        %v968 = vunpack.c.l.b16 %v953
        %v969 = vunpack.c.l.b16 %v954
        %v970 = vpack.c.b16 %v967, %v966
        %v971 = vpack.c.b16 %v969, %v968
        %974 = vmatprep.subr.bf16.mxu0 0
        %975 = vmatpush1.bf16.msra.mxu0 %v970
        %976 = vmatprep.subr.bf16.mxu0 0
        %977 = vmatpush1.bf16.msra.mxu0 %v971
        %978 = vmatprep.subr.bf16.mxu0 0
        %979 = vmatpush1.bf16.msra.mxu0 0
        %980 = vmatprep.subr.bf16.mxu0 0
        %981 = vmatpush1.bf16.msra.mxu0 0
        %982 = vmatprep.subr.bf16.mxu0 0
        %983 = vmatpush1.bf16.msra.mxu0 0
        %984 = vmatprep.subr.bf16.mxu0 0
        %985 = vmatpush1.bf16.msra.mxu0 0
        %986 = vmatprep.subr.bf16.mxu0 0
        %987 = vmatpush1.bf16.msra.mxu0 0
        %988 = vmatprep.subr.bf16.mxu0 0
        %989 = vmatpush1.bf16.msra.mxu0 0
        %990 = vmatprep.subr.bf16.mxu0 0
        %991 = vmatpush1.bf16.msra.mxu0 0
        %992 = vmatprep.subr.bf16.mxu0 0
        %993 = vmatpush1.bf16.msra.mxu0 0
        %994 = vmatprep.subr.bf16.mxu0 0
        %995 = vmatpush1.bf16.msra.mxu0 0
        %996 = vmatprep.subr.bf16.mxu0 0
        %997 = vmatpush1.bf16.msra.mxu0 0
        %998 = vmatprep.subr.bf16.mxu0 0
        %999 = vmatpush1.bf16.msra.mxu0 0
        %1000 = vmatprep.subr.bf16.mxu0 0
        %1001 = vmatpush1.bf16.msra.mxu0 0
        %1002 = vmatprep.subr.bf16.mxu0 0
        %1003 = vmatpush1.bf16.msra.mxu0 0
        %1004 = vmatprep.subr.bf16.mxu0 0
        %1005 = vmatpush1.bf16.msra.mxu0 0
        %1006 = vmatprep.mubr.bf16.mxu0 0
        %1007 = vmatmul.mubr.bf16.gmra.mrb[0].mxu0 %v846
        %v1008 = vpop.f32.mrb[0].mxu0
        %v1009 = vadd.f32 %v960, %v1008
        %v1010 = vpop.f32.mrb[0].mxu0
        %v1011 = vpop.f32.mrb[0].mxu0
        %v1012 = vpop.f32.mrb[0].mxu0
        %1013 = vdwg.mxu0
        %v1014 = vpack.c.bf16 %v883, %v883
        %v1015 = vpack.c.bf16 %v946, %v946
        %v1016 = vpack.c.bf16 %v1009, %v1009
        %vm1017 = vcmask 64512
        %v1019 = vsel %vm1017, %v1014, 0
        %v1022 = vsel %vm1017, %v1015, 0
        %1024 = vmatprep.subr.bf16.mxu0 0
        %1025 = vmatpush1.bf16.xpose.msra.mxu0 %v1022
        %1026 = vmatprep.subr.bf16.mxu0 0
        %1027 = vmatpush1.bf16.xpose.msra.mxu0 0
        %1028 = vmatprep.subr.bf16.mxu0 0
        %1029 = vmatpush1.bf16.xpose.msra.mxu0 0
        %1030 = vmatprep.subr.bf16.mxu0 0
        %1031 = vmatpush1.bf16.xpose.msra.mxu0 0
        %1032 = vmatprep.subr.bf16.mxu0 0
        %1033 = vmatpush1.bf16.xpose.msra.mxu0 0
        %1034 = vmatprep.subr.bf16.mxu0 0
        %1035 = vmatpush1.bf16.xpose.msra.mxu0 0
        %1036 = vmatprep.subr.bf16.mxu0 0
        %1037 = vmatpush1.bf16.xpose.msra.mxu0 0
        %1038 = vmatprep.subr.bf16.mxu0 0
        %1039 = vmatpush1.bf16.xpose.msra.mxu0 0
        %1040 = vmatprep.subr.bf16.mxu0 0
        %1041 = vmatpush1.bf16.xpose.msra.mxu0 0
        %1042 = vmatprep.subr.bf16.mxu0 0
        %1043 = vmatpush1.bf16.xpose.msra.mxu0 0
        %1044 = vmatprep.subr.bf16.mxu0 0
        %1045 = vmatpush1.bf16.xpose.msra.mxu0 0
        %1046 = vmatprep.subr.bf16.mxu0 0
        %1047 = vmatpush1.bf16.xpose.msra.mxu0 0
        %1048 = vmatprep.subr.bf16.mxu0 0
        %1049 = vmatpush1.bf16.xpose.msra.mxu0 0
        %1050 = vmatprep.subr.bf16.mxu0 0
        %1051 = vmatpush1.bf16.xpose.msra.mxu0 0
        %1052 = vmatprep.subr.bf16.mxu0 0
        %1053 = vmatpush1.bf16.xpose.msra.mxu0 0
        %1054 = vmatprep.subr.bf16.mxu0 0
        %1055 = vmatpush1.bf16.xpose.msra.mxu0 0
        %1056 = vmatprep.mubr.bf16.mxu0 0
        %1057 = vmatmul.mubr.bf16.gmra.mrb[0].mxu0 %v1019
        %v1058 = vpop.f32.mrb[0].mxu0
        %v1059 = vadd.f32 0.0, %v1058
        %v1060 = vpop.f32.mrb[0].mxu0
        %v1061 = vpop.f32.mrb[0].mxu0
        %v1062 = vpop.f32.mrb[0].mxu0
        %1063 = vdwg.mxu0
        %v1064 = vsel %vm1017, %v1059, -inf
        %1065 = vmax.xlane.f32.xlu0 %v1064
        %v1066 = vpop.xlane.xlu0 %1065
        %v1067 = vsub.f32 %v1059, %v1066
        %v1068 = vmul.f32 %v1067, 1.442695
        %v1069 = vpow.pop %v1068
        %v1070 = vsel %vm1017, %v1069, 0.0
        %1071 = vadd.xlane.f32.xlu0 %v1070
        %v1072 = vpop.xlane.xlu0 %1071
        %v1073 = vrcp.pop %v1072
        %v1074 = vmul.f32 %v1069, %v1073
        %v1075 = vpack.c.bf16 %v1074, %v1074
        %v1077 = vsel %vm1017, %v1075, 0
        %vm1079 = vcmask 1043456
        %v1081 = vsel %vm1079, %v1016, 0
        %1083 = vmatprep.subr.bf16.mxu0 0
        %1084 = vmatpush1.bf16.msra.mxu0 %v1081
        %1085 = vmatprep.subr.bf16.mxu0 0
        %1086 = vmatpush1.bf16.msra.mxu0 0
        %1087 = vmatprep.subr.bf16.mxu0 0
        %1088 = vmatpush1.bf16.msra.mxu0 0
        %1089 = vmatprep.subr.bf16.mxu0 0
        %1090 = vmatpush1.bf16.msra.mxu0 0
        %1091 = vmatprep.subr.bf16.mxu0 0
        %1092 = vmatpush1.bf16.msra.mxu0 0
        %1093 = vmatprep.subr.bf16.mxu0 0
        %1094 = vmatpush1.bf16.msra.mxu0 0
        %1095 = vmatprep.subr.bf16.mxu0 0
        %1096 = vmatpush1.bf16.msra.mxu0 0
        %1097 = vmatprep.subr.bf16.mxu0 0
        %1098 = vmatpush1.bf16.msra.mxu0 0
        %1099 = vmatprep.subr.bf16.mxu0 0
        %1100 = vmatpush1.bf16.msra.mxu0 0
        %1101 = vmatprep.subr.bf16.mxu0 0
        %1102 = vmatpush1.bf16.msra.mxu0 0
        %1103 = vmatprep.subr.bf16.mxu0 0
        %1104 = vmatpush1.bf16.msra.mxu0 0
        %1105 = vmatprep.subr.bf16.mxu0 0
        %1106 = vmatpush1.bf16.msra.mxu0 0
        %1107 = vmatprep.subr.bf16.mxu0 0
        %1108 = vmatpush1.bf16.msra.mxu0 0
        %1109 = vmatprep.subr.bf16.mxu0 0
        %1110 = vmatpush1.bf16.msra.mxu0 0
        %1111 = vmatprep.subr.bf16.mxu0 0
        %1112 = vmatpush1.bf16.msra.mxu0 0
        %1113 = vmatprep.subr.bf16.mxu0 0
        %1114 = vmatpush1.bf16.msra.mxu0 0
        %1115 = vmatprep.mubr.bf16.mxu0 0
        %1116 = vmatmul.mubr.bf16.gmra.mrb[0].mxu0 %v1077
        %v1117 = vpop.f32.mrb[0].mxu0
        %v1118 = vadd.f32 0.0, %v1117
        %v1119 = vpop.f32.mrb[0].mxu0
        %v1120 = vpop.f32.mrb[0].mxu0
        %v1121 = vpop.f32.mrb[0].mxu0
        %1122 = vdwg.mxu0
        %v1123 = vpack.c.bf16 %v1118, %v1118
        %1125 = vrot.lane.b32.xlu0 %v1014, 120
        %v1126 = vpop.permute.xlu0 %1125
        %1128 = vrot.lane.b32.xlu0 %v1015, 120
        %v1129 = vpop.permute.xlu0 %1128
        %v1131 = vsel %vm1017, %v1126, 0
        %v1134 = vsel %vm1017, %v1129, 0
        %1136 = vmatprep.subr.bf16.mxu0 0
        %1137 = vmatpush1.bf16.xpose.msra.mxu0 %v1134
        %1138 = vmatprep.subr.bf16.mxu0 0
        %1139 = vmatpush1.bf16.xpose.msra.mxu0 0
        %1140 = vmatprep.subr.bf16.mxu0 0
        %1141 = vmatpush1.bf16.xpose.msra.mxu0 0
        %1142 = vmatprep.subr.bf16.mxu0 0
        %1143 = vmatpush1.bf16.xpose.msra.mxu0 0
        %1144 = vmatprep.subr.bf16.mxu0 0
        %1145 = vmatpush1.bf16.xpose.msra.mxu0 0
        %1146 = vmatprep.subr.bf16.mxu0 0
        %1147 = vmatpush1.bf16.xpose.msra.mxu0 0
        %1148 = vmatprep.subr.bf16.mxu0 0
        %1149 = vmatpush1.bf16.xpose.msra.mxu0 0
        %1150 = vmatprep.subr.bf16.mxu0 0
        %1151 = vmatpush1.bf16.xpose.msra.mxu0 0
        %1152 = vmatprep.subr.bf16.mxu0 0
        %1153 = vmatpush1.bf16.xpose.msra.mxu0 0
        %1154 = vmatprep.subr.bf16.mxu0 0
        %1155 = vmatpush1.bf16.xpose.msra.mxu0 0
        %1156 = vmatprep.subr.bf16.mxu0 0
        %1157 = vmatpush1.bf16.xpose.msra.mxu0 0
        %1158 = vmatprep.subr.bf16.mxu0 0
        %1159 = vmatpush1.bf16.xpose.msra.mxu0 0
        %1160 = vmatprep.subr.bf16.mxu0 0
        %1161 = vmatpush1.bf16.xpose.msra.mxu0 0
        %1162 = vmatprep.subr.bf16.mxu0 0
        %1163 = vmatpush1.bf16.xpose.msra.mxu0 0
        %1164 = vmatprep.subr.bf16.mxu0 0
        %1165 = vmatpush1.bf16.xpose.msra.mxu0 0
        %1166 = vmatprep.subr.bf16.mxu0 0
        %1167 = vmatpush1.bf16.xpose.msra.mxu0 0
        %1168 = vmatprep.mubr.bf16.mxu0 0
        %1169 = vmatmul.mubr.bf16.gmra.mrb[0].mxu0 %v1131
        %v1170 = vpop.f32.mrb[0].mxu0
        %v1171 = vadd.f32 0.0, %v1170
        %v1172 = vpop.f32.mrb[0].mxu0
        %v1173 = vpop.f32.mrb[0].mxu0
        %v1174 = vpop.f32.mrb[0].mxu0
        %1175 = vdwg.mxu0
        %v1176 = vsel %vm1017, %v1171, -inf
        %1177 = vmax.xlane.f32.xlu0 %v1176
        %v1178 = vpop.xlane.xlu0 %1177
        %v1179 = vsub.f32 %v1171, %v1178
        %v1180 = vmul.f32 %v1179, 1.442695
        %v1181 = vpow.pop %v1180
        %v1182 = vsel %vm1017, %v1181, 0.0
        %1183 = vadd.xlane.f32.xlu0 %v1182
        %v1184 = vpop.xlane.xlu0 %1183
        %v1185 = vrcp.pop %v1184
        %v1186 = vmul.f32 %v1181, %v1185
        %v1187 = vpack.c.bf16 %v1186, %v1186
        %1189 = vrot.lane.b32.xlu0 %v1016, 120
        %v1190 = vpop.permute.xlu0 %1189
        %v1192 = vsel %vm1017, %v1187, 0
        %v1195 = vsel %vm1079, %v1190, 0
        %1197 = vmatprep.subr.bf16.mxu0 0
        %1198 = vmatpush1.bf16.msra.mxu0 %v1195
        %1199 = vmatprep.subr.bf16.mxu0 0
        %1200 = vmatpush1.bf16.msra.mxu0 0
        %1201 = vmatprep.subr.bf16.mxu0 0
        %1202 = vmatpush1.bf16.msra.mxu0 0
        %1203 = vmatprep.subr.bf16.mxu0 0
        %1204 = vmatpush1.bf16.msra.mxu0 0
        %1205 = vmatprep.subr.bf16.mxu0 0
        %1206 = vmatpush1.bf16.msra.mxu0 0
        %1207 = vmatprep.subr.bf16.mxu0 0
        %1208 = vmatpush1.bf16.msra.mxu0 0
        %1209 = vmatprep.subr.bf16.mxu0 0
        %1210 = vmatpush1.bf16.msra.mxu0 0
        %1211 = vmatprep.subr.bf16.mxu0 0
        %1212 = vmatpush1.bf16.msra.mxu0 0
        %1213 = vmatprep.subr.bf16.mxu0 0
        %1214 = vmatpush1.bf16.msra.mxu0 0
        %1215 = vmatprep.subr.bf16.mxu0 0
        %1216 = vmatpush1.bf16.msra.mxu0 0
        %1217 = vmatprep.subr.bf16.mxu0 0
        %1218 = vmatpush1.bf16.msra.mxu0 0
        %1219 = vmatprep.subr.bf16.mxu0 0
        %1220 = vmatpush1.bf16.msra.mxu0 0
        %1221 = vmatprep.subr.bf16.mxu0 0
        %1222 = vmatpush1.bf16.msra.mxu0 0
        %1223 = vmatprep.subr.bf16.mxu0 0
        %1224 = vmatpush1.bf16.msra.mxu0 0
        %1225 = vmatprep.subr.bf16.mxu0 0
        %1226 = vmatpush1.bf16.msra.mxu0 0
        %1227 = vmatprep.subr.bf16.mxu0 0
        %1228 = vmatpush1.bf16.msra.mxu0 0
        %1229 = vmatprep.mubr.bf16.mxu0 0
        %1230 = vmatmul.mubr.bf16.gmra.mrb[0].mxu0 %v1192
        %v1231 = vpop.f32.mrb[0].mxu0
        %v1232 = vadd.f32 0.0, %v1231
        %v1233 = vpop.f32.mrb[0].mxu0
        %v1234 = vpop.f32.mrb[0].mxu0
        %v1235 = vpop.f32.mrb[0].mxu0
        %1236 = vdwg.mxu0
        %v1237 = vpack.c.bf16 %v1232, %v1232
        %1238 = vrot.lane.b32.xlu0 %v1014, 112
        %v1239 = vpop.permute.xlu0 %1238
        %1240 = vrot.lane.b32.xlu0 %v1015, 112
        %v1241 = vpop.permute.xlu0 %1240
        %v1243 = vsel %vm1017, %v1239, 0
        %v1246 = vsel %vm1017, %v1241, 0
        %1248 = vmatprep.subr.bf16.mxu0 0
        %1249 = vmatpush1.bf16.xpose.msra.mxu0 %v1246
        %1250 = vmatprep.subr.bf16.mxu0 0
        %1251 = vmatpush1.bf16.xpose.msra.mxu0 0
        %1252 = vmatprep.subr.bf16.mxu0 0
        %1253 = vmatpush1.bf16.xpose.msra.mxu0 0
        %1254 = vmatprep.subr.bf16.mxu0 0
        %1255 = vmatpush1.bf16.xpose.msra.mxu0 0
        %1256 = vmatprep.subr.bf16.mxu0 0
        %1257 = vmatpush1.bf16.xpose.msra.mxu0 0
        %1258 = vmatprep.subr.bf16.mxu0 0
        %1259 = vmatpush1.bf16.xpose.msra.mxu0 0
        %1260 = vmatprep.subr.bf16.mxu0 0
        %1261 = vmatpush1.bf16.xpose.msra.mxu0 0
        %1262 = vmatprep.subr.bf16.mxu0 0
        %1263 = vmatpush1.bf16.xpose.msra.mxu0 0
        %1264 = vmatprep.subr.bf16.mxu0 0
        %1265 = vmatpush1.bf16.xpose.msra.mxu0 0
        %1266 = vmatprep.subr.bf16.mxu0 0
        %1267 = vmatpush1.bf16.xpose.msra.mxu0 0
        %1268 = vmatprep.subr.bf16.mxu0 0
        %1269 = vmatpush1.bf16.xpose.msra.mxu0 0
        %1270 = vmatprep.subr.bf16.mxu0 0
        %1271 = vmatpush1.bf16.xpose.msra.mxu0 0
        %1272 = vmatprep.subr.bf16.mxu0 0
        %1273 = vmatpush1.bf16.xpose.msra.mxu0 0
        %1274 = vmatprep.subr.bf16.mxu0 0
        %1275 = vmatpush1.bf16.xpose.msra.mxu0 0
        %1276 = vmatprep.subr.bf16.mxu0 0
        %1277 = vmatpush1.bf16.xpose.msra.mxu0 0
        %1278 = vmatprep.subr.bf16.mxu0 0
        %1279 = vmatpush1.bf16.xpose.msra.mxu0 0
        %1280 = vmatprep.mubr.bf16.mxu0 0
        %1281 = vmatmul.mubr.bf16.gmra.mrb[0].mxu0 %v1243
        %v1282 = vpop.f32.mrb[0].mxu0
        %v1283 = vadd.f32 0.0, %v1282
        %v1284 = vpop.f32.mrb[0].mxu0
        %v1285 = vpop.f32.mrb[0].mxu0
        %v1286 = vpop.f32.mrb[0].mxu0
        %1287 = vdwg.mxu0
        %v1288 = vsel %vm1017, %v1283, -inf
        %1289 = vmax.xlane.f32.xlu0 %v1288
        %v1290 = vpop.xlane.xlu0 %1289
        %v1291 = vsub.f32 %v1283, %v1290
        %v1292 = vmul.f32 %v1291, 1.442695
        %v1293 = vpow.pop %v1292
        %v1294 = vsel %vm1017, %v1293, 0.0
        %1295 = vadd.xlane.f32.xlu0 %v1294
        %v1296 = vpop.xlane.xlu0 %1295
        %v1297 = vrcp.pop %v1296
        %v1298 = vmul.f32 %v1293, %v1297
        %v1299 = vpack.c.bf16 %v1298, %v1298
        %1300 = vrot.lane.b32.xlu0 %v1016, 112
        %v1301 = vpop.permute.xlu0 %1300
        %v1303 = vsel %vm1017, %v1299, 0
        %v1306 = vsel %vm1079, %v1301, 0
        %1308 = vmatprep.subr.bf16.mxu0 0
        %1309 = vmatpush1.bf16.msra.mxu0 %v1306
        %1310 = vmatprep.subr.bf16.mxu0 0
        %1311 = vmatpush1.bf16.msra.mxu0 0
        %1312 = vmatprep.subr.bf16.mxu0 0
        %1313 = vmatpush1.bf16.msra.mxu0 0
        %1314 = vmatprep.subr.bf16.mxu0 0
        %1315 = vmatpush1.bf16.msra.mxu0 0
        %1316 = vmatprep.subr.bf16.mxu0 0
        %1317 = vmatpush1.bf16.msra.mxu0 0
        %1318 = vmatprep.subr.bf16.mxu0 0
        %1319 = vmatpush1.bf16.msra.mxu0 0
        %1320 = vmatprep.subr.bf16.mxu0 0
        %1321 = vmatpush1.bf16.msra.mxu0 0
        %1322 = vmatprep.subr.bf16.mxu0 0
        %1323 = vmatpush1.bf16.msra.mxu0 0
        %1324 = vmatprep.subr.bf16.mxu0 0
        %1325 = vmatpush1.bf16.msra.mxu0 0
        %1326 = vmatprep.subr.bf16.mxu0 0
        %1327 = vmatpush1.bf16.msra.mxu0 0
        %1328 = vmatprep.subr.bf16.mxu0 0
        %1329 = vmatpush1.bf16.msra.mxu0 0
        %1330 = vmatprep.subr.bf16.mxu0 0
        %1331 = vmatpush1.bf16.msra.mxu0 0
        %1332 = vmatprep.subr.bf16.mxu0 0
        %1333 = vmatpush1.bf16.msra.mxu0 0
        %1334 = vmatprep.subr.bf16.mxu0 0
        %1335 = vmatpush1.bf16.msra.mxu0 0
        %1336 = vmatprep.subr.bf16.mxu0 0
        %1337 = vmatpush1.bf16.msra.mxu0 0
        %1338 = vmatprep.subr.bf16.mxu0 0
        %1339 = vmatpush1.bf16.msra.mxu0 0
        %1340 = vmatprep.mubr.bf16.mxu0 0
        %1341 = vmatmul.mubr.bf16.gmra.mrb[0].mxu0 %v1303
        %v1342 = vpop.f32.mrb[0].mxu0
        %v1343 = vadd.f32 0.0, %v1342
        %v1344 = vpop.f32.mrb[0].mxu0
        %v1345 = vpop.f32.mrb[0].mxu0
        %v1346 = vpop.f32.mrb[0].mxu0
        %1347 = vdwg.mxu0
        %v1348 = vpack.c.bf16 %v1343, %v1343
        %1349 = vrot.lane.b32.xlu0 %v1014, 104
        %v1350 = vpop.permute.xlu0 %1349
        %1351 = vrot.lane.b32.xlu0 %v1015, 104
        %v1352 = vpop.permute.xlu0 %1351
        %v1354 = vsel %vm1017, %v1350, 0
        %v1357 = vsel %vm1017, %v1352, 0
        %1359 = vmatprep.subr.bf16.mxu0 0
        %1360 = vmatpush1.bf16.xpose.msra.mxu0 %v1357
        %1361 = vmatprep.subr.bf16.mxu0 0
        %1362 = vmatpush1.bf16.xpose.msra.mxu0 0
        %1363 = vmatprep.subr.bf16.mxu0 0
        %1364 = vmatpush1.bf16.xpose.msra.mxu0 0
        %1365 = vmatprep.subr.bf16.mxu0 0
        %1366 = vmatpush1.bf16.xpose.msra.mxu0 0
        %1367 = vmatprep.subr.bf16.mxu0 0
        %1368 = vmatpush1.bf16.xpose.msra.mxu0 0
        %1369 = vmatprep.subr.bf16.mxu0 0
        %1370 = vmatpush1.bf16.xpose.msra.mxu0 0
        %1371 = vmatprep.subr.bf16.mxu0 0
        %1372 = vmatpush1.bf16.xpose.msra.mxu0 0
        %1373 = vmatprep.subr.bf16.mxu0 0
        %1374 = vmatpush1.bf16.xpose.msra.mxu0 0
        %1375 = vmatprep.subr.bf16.mxu0 0
        %1376 = vmatpush1.bf16.xpose.msra.mxu0 0
        %1377 = vmatprep.subr.bf16.mxu0 0
        %1378 = vmatpush1.bf16.xpose.msra.mxu0 0
        %1379 = vmatprep.subr.bf16.mxu0 0
        %1380 = vmatpush1.bf16.xpose.msra.mxu0 0
        %1381 = vmatprep.subr.bf16.mxu0 0
        %1382 = vmatpush1.bf16.xpose.msra.mxu0 0
        %1383 = vmatprep.subr.bf16.mxu0 0
        %1384 = vmatpush1.bf16.xpose.msra.mxu0 0
        %1385 = vmatprep.subr.bf16.mxu0 0
        %1386 = vmatpush1.bf16.xpose.msra.mxu0 0
        %1387 = vmatprep.subr.bf16.mxu0 0
        %1388 = vmatpush1.bf16.xpose.msra.mxu0 0
        %1389 = vmatprep.subr.bf16.mxu0 0
        %1390 = vmatpush1.bf16.xpose.msra.mxu0 0
        %1391 = vmatprep.mubr.bf16.mxu0 0
        %1392 = vmatmul.mubr.bf16.gmra.mrb[0].mxu0 %v1354
        %v1393 = vpop.f32.mrb[0].mxu0
        %v1394 = vadd.f32 0.0, %v1393
        %v1395 = vpop.f32.mrb[0].mxu0
        %v1396 = vpop.f32.mrb[0].mxu0
        %v1397 = vpop.f32.mrb[0].mxu0
        %1398 = vdwg.mxu0
        %v1399 = vsel %vm1017, %v1394, -inf
        %1400 = vmax.xlane.f32.xlu0 %v1399
        %v1401 = vpop.xlane.xlu0 %1400
        %v1402 = vsub.f32 %v1394, %v1401
        %v1403 = vmul.f32 %v1402, 1.442695
        %v1404 = vpow.pop %v1403
        %v1405 = vsel %vm1017, %v1404, 0.0
        %1406 = vadd.xlane.f32.xlu0 %v1405
        %v1407 = vpop.xlane.xlu0 %1406
        %v1408 = vrcp.pop %v1407
        %v1409 = vmul.f32 %v1404, %v1408
        %v1410 = vpack.c.bf16 %v1409, %v1409
        %1411 = vrot.lane.b32.xlu0 %v1016, 104
        %v1412 = vpop.permute.xlu0 %1411
        %v1414 = vsel %vm1017, %v1410, 0
        %v1417 = vsel %vm1079, %v1412, 0
        %1419 = vmatprep.subr.bf16.mxu0 0
        %1420 = vmatpush1.bf16.msra.mxu0 %v1417
        %1421 = vmatprep.subr.bf16.mxu0 0
        %1422 = vmatpush1.bf16.msra.mxu0 0
        %1423 = vmatprep.subr.bf16.mxu0 0
        %1424 = vmatpush1.bf16.msra.mxu0 0
        %1425 = vmatprep.subr.bf16.mxu0 0
        %1426 = vmatpush1.bf16.msra.mxu0 0
        %1427 = vmatprep.subr.bf16.mxu0 0
        %1428 = vmatpush1.bf16.msra.mxu0 0
        %1429 = vmatprep.subr.bf16.mxu0 0
        %1430 = vmatpush1.bf16.msra.mxu0 0
        %1431 = vmatprep.subr.bf16.mxu0 0
        %1432 = vmatpush1.bf16.msra.mxu0 0
        %1433 = vmatprep.subr.bf16.mxu0 0
        %1434 = vmatpush1.bf16.msra.mxu0 0
        %1435 = vmatprep.subr.bf16.mxu0 0
        %1436 = vmatpush1.bf16.msra.mxu0 0
        %1437 = vmatprep.subr.bf16.mxu0 0
        %1438 = vmatpush1.bf16.msra.mxu0 0
        %1439 = vmatprep.subr.bf16.mxu0 0
        %1440 = vmatpush1.bf16.msra.mxu0 0
        %1441 = vmatprep.subr.bf16.mxu0 0
        %1442 = vmatpush1.bf16.msra.mxu0 0
        %1443 = vmatprep.subr.bf16.mxu0 0
        %1444 = vmatpush1.bf16.msra.mxu0 0
        %1445 = vmatprep.subr.bf16.mxu0 0
        %1446 = vmatpush1.bf16.msra.mxu0 0
        %1447 = vmatprep.subr.bf16.mxu0 0
        %1448 = vmatpush1.bf16.msra.mxu0 0
        %1449 = vmatprep.subr.bf16.mxu0 0
        %1450 = vmatpush1.bf16.msra.mxu0 0
        %1451 = vmatprep.mubr.bf16.mxu0 0
        %1452 = vmatmul.mubr.bf16.gmra.mrb[0].mxu0 %v1414
        %v1453 = vpop.f32.mrb[0].mxu0
        %v1454 = vadd.f32 0.0, %v1453
        %v1455 = vpop.f32.mrb[0].mxu0
        %v1456 = vpop.f32.mrb[0].mxu0
        %v1457 = vpop.f32.mrb[0].mxu0
        %1458 = vdwg.mxu0
        %v1459 = vpack.c.bf16 %v1454, %v1454
        %1461 = vrot.lane.b32.xlu0 %v1237, 8
        %v1462 = vpop.permute.xlu0 %1461
        %1464 = vrot.lane.b32.xlu0 %v1348, 16
        %v1465 = vpop.permute.xlu0 %1464
        %1467 = vrot.lane.b32.xlu0 %v1459, 24
        %v1468 = vpop.permute.xlu0 %1467
        %v1471 = vsel %vm1017, %v1123, %v1462
        %vm1472 = vcmask 130048
        %v1474 = vsel %vm1472, %v1471, %v1465
        %vm1475 = vcmask 195584
        %v1477 = vsel %vm1475, %v1474, %v1468
        %v1478 = vld [vmem:[#allocation16] sm:$0xf]
        %v1479 = vld [vmem:[#allocation16 + $0x4] sm:$0xf]
        %v1480 = vld [vmem:[#allocation16 + $0x8] sm:$0xf]
        %v1481 = vld [vmem:[#allocation16 + $0xc] sm:$0xf]
        %v1482 = vld [vmem:[#allocation17] sm:$0x1]
        %v1484 = vlaneseq
        %v1485 = vshrl.u32 %v1484, 7
        %v1486 = vsub.s32 0, %v1485
        %v1487 = vrot.slane %v1482, %v1486
        %v1493 = vunpack.c.l.b16 %v1478
        %v1494 = vunpack.c.l.b16 %v1479
        %v1495 = vunpack.c.l.b16 %v1480
        %v1496 = vunpack.c.l.b16 %v1481
        %v1497 = vpack.c.b16 %v1494, %v1493
        %v1498 = vpack.c.b16 %v1496, %v1495
        %v1501 = vsel %vm844, %v1477, 0
        %1503 = vmatprep.subr.bf16.mxu0 0
        %1504 = vmatpush1.bf16.msra.mxu0 %v1497
        %1505 = vmatprep.subr.bf16.mxu0 0
        %1506 = vmatpush1.bf16.msra.mxu0 %v1498
        %1507 = vmatprep.subr.bf16.mxu0 0
        %1508 = vmatpush1.bf16.msra.mxu0 0
        %1509 = vmatprep.subr.bf16.mxu0 0
        %1510 = vmatpush1.bf16.msra.mxu0 0
        %1511 = vmatprep.subr.bf16.mxu0 0
        %1512 = vmatpush1.bf16.msra.mxu0 0
        %1513 = vmatprep.subr.bf16.mxu0 0
        %1514 = vmatpush1.bf16.msra.mxu0 0
        %1515 = vmatprep.subr.bf16.mxu0 0
        %1516 = vmatpush1.bf16.msra.mxu0 0
        %1517 = vmatprep.subr.bf16.mxu0 0
        %1518 = vmatpush1.bf16.msra.mxu0 0
        %1519 = vmatprep.subr.bf16.mxu0 0
        %1520 = vmatpush1.bf16.msra.mxu0 0
        %1521 = vmatprep.subr.bf16.mxu0 0
        %1522 = vmatpush1.bf16.msra.mxu0 0
        %1523 = vmatprep.subr.bf16.mxu0 0
        %1524 = vmatpush1.bf16.msra.mxu0 0
        %1525 = vmatprep.subr.bf16.mxu0 0
        %1526 = vmatpush1.bf16.msra.mxu0 0
        %1527 = vmatprep.subr.bf16.mxu0 0
        %1528 = vmatpush1.bf16.msra.mxu0 0
        %1529 = vmatprep.subr.bf16.mxu0 0
        %1530 = vmatpush1.bf16.msra.mxu0 0
        %1531 = vmatprep.subr.bf16.mxu0 0
        %1532 = vmatpush1.bf16.msra.mxu0 0
        %1533 = vmatprep.subr.bf16.mxu0 0
        %1534 = vmatpush1.bf16.msra.mxu0 0
        %1535 = vmatprep.mubr.bf16.mxu0 0
        %1536 = vmatmul.mubr.bf16.gmra.mrb[0].mxu0 %v1501
        %v1537 = vpop.f32.mrb[0].mxu0
        %v1538 = vadd.f32 %v1487, %v1537
        %v1539 = vpop.f32.mrb[0].mxu0
        %v1540 = vpop.f32.mrb[0].mxu0
        %v1541 = vpop.f32.mrb[0].mxu0
        %1542 = vdwg.mxu0
        %v1543 = vadd.f32 %v819, %v1538
        %v1544 = vld [vmem:[#allocation19] sm:$0x1]
        %v1545 = vld [vmem:[#allocation20] sm:$0x1]
        %v1546 = vsel %vm844, %v1543, 0.0
        %1547 = vadd.xlane.f32.xlu0 %v1546
        %v1548 = vpop.xlane.xlu0 %1547
        %v1549 = vrcp.pop 32.0
        %v1550 = vmul.f32 %v1548, %v1549
        %v1551 = vsub.f32 %v1543, %v1550
        %v1552 = vmul.f32 %v1551, %v1551
        %v1553 = vsel %vm844, %v1552, 0.0
        %1554 = vadd.xlane.f32.xlu0 %v1553
        %v1555 = vpop.xlane.xlu0 %1554
        %v1556 = vmul.f32 %v1555, %v1549
        %v1557 = vadd.f32 %v1556, 1e-05
        %v1558 = vrsqrt.pop %v1557
        %v1559 = vmul.f32 %v1551, %v1558
        %v1561 = vlaneseq
        %v1562 = vshrl.u32 %v1561, 7
        %v1563 = vsub.s32 0, %v1562
        %v1564 = vrot.slane %v1544, %v1563
        %v1566 = vmul.f32 %v1559, %v1564
        %v1568 = vlaneseq
        %v1569 = vshrl.u32 %v1568, 7
        %v1570 = vsub.s32 0, %v1569
        %v1571 = vrot.slane %v1545, %v1570
        %v1573 = vadd.f32 %v1566, %v1571
        %v1574 = vpack.c.bf16 %v1573, %v1573
        %v1575 = vld [vmem:[#allocation22] sm:$0xf]
        %v1576 = vld [vmem:[#allocation22 + $0x4] sm:$0xf]
        %v1577 = vld [vmem:[#allocation22 + $0x8] sm:$0xf]
        %v1578 = vld [vmem:[#allocation22 + $0xc] sm:$0xf]
        %v1579 = vld [vmem:[#allocation23] sm:$0x1]
        %v1581 = vlaneseq
        %v1582 = vshrl.u32 %v1581, 7
        %v1583 = vsub.s32 0, %v1582
        %v1584 = vrot.slane %v1579, %v1583
        %v1590 = vunpack.c.l.b16 %v1575
        %v1591 = vunpack.c.l.b16 %v1576
        %v1592 = vunpack.c.l.b16 %v1577
        %v1593 = vunpack.c.l.b16 %v1578
        %v1594 = vpack.c.b16 %v1591, %v1590
        %v1595 = vpack.c.b16 %v1593, %v1592
        %v1599 = vsel %vm844, %v1574, 0
        %1601 = vmatprep.subr.bf16.mxu0 0
        %1602 = vmatpush1.bf16.msra.mxu0 %v1594
        %1603 = vmatprep.subr.bf16.mxu0 0
        %1604 = vmatpush1.bf16.msra.mxu0 %v1595
        %1605 = vmatprep.subr.bf16.mxu0 0
        %1606 = vmatpush1.bf16.msra.mxu0 0
        %1607 = vmatprep.subr.bf16.mxu0 0
        %1608 = vmatpush1.bf16.msra.mxu0 0
        %1609 = vmatprep.subr.bf16.mxu0 0
        %1610 = vmatpush1.bf16.msra.mxu0 0
        %1611 = vmatprep.subr.bf16.mxu0 0
        %1612 = vmatpush1.bf16.msra.mxu0 0
        %1613 = vmatprep.subr.bf16.mxu0 0
        %1614 = vmatpush1.bf16.msra.mxu0 0
        %1615 = vmatprep.subr.bf16.mxu0 0
        %1616 = vmatpush1.bf16.msra.mxu0 0
        %1617 = vmatprep.subr.bf16.mxu0 0
        %1618 = vmatpush1.bf16.msra.mxu0 0
        %1619 = vmatprep.subr.bf16.mxu0 0
        %1620 = vmatpush1.bf16.msra.mxu0 0
        %1621 = vmatprep.subr.bf16.mxu0 0
        %1622 = vmatpush1.bf16.msra.mxu0 0
        %1623 = vmatprep.subr.bf16.mxu0 0
        %1624 = vmatpush1.bf16.msra.mxu0 0
        %1625 = vmatprep.subr.bf16.mxu0 0
        %1626 = vmatpush1.bf16.msra.mxu0 0
        %1627 = vmatprep.subr.bf16.mxu0 0
        %1628 = vmatpush1.bf16.msra.mxu0 0
        %1629 = vmatprep.subr.bf16.mxu0 0
        %1630 = vmatpush1.bf16.msra.mxu0 0
        %1631 = vmatprep.subr.bf16.mxu0 0
        %1632 = vmatpush1.bf16.msra.mxu0 0
        %1633 = vmatprep.mubr.bf16.mxu0 0
        %1634 = vmatmul.mubr.bf16.gmra.mrb[0].mxu0 %v1599
        %v1635 = vpop.f32.mrb[0].mxu0
        %v1636 = vadd.f32 %v1584, %v1635
        %v1637 = vpop.f32.mrb[0].mxu0
        %v1638 = vpop.f32.mrb[0].mxu0
        %v1639 = vpop.f32.mrb[0].mxu0
        %1640 = vdwg.mxu0
        %v1641 = vmax.f32 %v1636, 0.0
        %v1642 = vpack.c.bf16 %v1641, %v1641
        %v1643 = vld [vmem:[#allocation25] sm:$0xf]
        %v1644 = vld [vmem:[#allocation25 + $0x4] sm:$0xf]
        %v1645 = vld [vmem:[#allocation25 + $0x8] sm:$0xf]
        %v1646 = vld [vmem:[#allocation25 + $0xc] sm:$0xf]
        %v1647 = vld [vmem:[#allocation25 + $0x10] sm:$0xf]
        %v1648 = vld [vmem:[#allocation25 + $0x14] sm:$0xf]
        %v1649 = vld [vmem:[#allocation25 + $0x18] sm:$0xf]
        %v1650 = vld [vmem:[#allocation25 + $0x1c] sm:$0xf]
        %v1651 = vld [vmem:[#allocation26] sm:$0x1]
        %v1653 = vlaneseq
        %v1654 = vshrl.u32 %v1653, 7
        %v1655 = vsub.s32 0, %v1654
        %v1656 = vrot.slane %v1651, %v1655
        %v1666 = vunpack.c.l.b16 %v1643
        %v1667 = vunpack.c.l.b16 %v1644
        %v1668 = vunpack.c.l.b16 %v1645
        %v1669 = vunpack.c.l.b16 %v1646
        %v1670 = vunpack.c.l.b16 %v1647
        %v1671 = vunpack.c.l.b16 %v1648
        %v1672 = vunpack.c.l.b16 %v1649
        %v1673 = vunpack.c.l.b16 %v1650
        %v1674 = vpack.c.b16 %v1667, %v1666
        %v1675 = vpack.c.b16 %v1669, %v1668
        %v1676 = vpack.c.b16 %v1671, %v1670
        %v1677 = vpack.c.b16 %v1673, %v1672
        %vm1682 = vcmask 523264
        %v1684 = vsel %vm1682, %v1642, 0
        %1686 = vmatprep.subr.bf16.mxu0 0
        %1687 = vmatpush1.bf16.msra.mxu0 %v1674
        %1688 = vmatprep.subr.bf16.mxu0 0
        %1689 = vmatpush1.bf16.msra.mxu0 %v1675
        %1690 = vmatprep.subr.bf16.mxu0 0
        %1691 = vmatpush1.bf16.msra.mxu0 %v1676
        %1692 = vmatprep.subr.bf16.mxu0 0
        %1693 = vmatpush1.bf16.msra.mxu0 %v1677
        %1694 = vmatprep.subr.bf16.mxu0 0
        %1695 = vmatpush1.bf16.msra.mxu0 0
        %1696 = vmatprep.subr.bf16.mxu0 0
        %1697 = vmatpush1.bf16.msra.mxu0 0
        %1698 = vmatprep.subr.bf16.mxu0 0
        %1699 = vmatpush1.bf16.msra.mxu0 0
        %1700 = vmatprep.subr.bf16.mxu0 0
        %1701 = vmatpush1.bf16.msra.mxu0 0
        %1702 = vmatprep.subr.bf16.mxu0 0
        %1703 = vmatpush1.bf16.msra.mxu0 0
        %1704 = vmatprep.subr.bf16.mxu0 0
        %1705 = vmatpush1.bf16.msra.mxu0 0
        %1706 = vmatprep.subr.bf16.mxu0 0
        %1707 = vmatpush1.bf16.msra.mxu0 0
        %1708 = vmatprep.subr.bf16.mxu0 0
        %1709 = vmatpush1.bf16.msra.mxu0 0
        %1710 = vmatprep.subr.bf16.mxu0 0
        %1711 = vmatpush1.bf16.msra.mxu0 0
        %1712 = vmatprep.subr.bf16.mxu0 0
        %1713 = vmatpush1.bf16.msra.mxu0 0
        %1714 = vmatprep.subr.bf16.mxu0 0
        %1715 = vmatpush1.bf16.msra.mxu0 0
        %1716 = vmatprep.subr.bf16.mxu0 0
        %1717 = vmatpush1.bf16.msra.mxu0 0
        %1718 = vmatprep.mubr.bf16.mxu0 0
        %1719 = vmatmul.mubr.bf16.gmra.mrb[0].mxu0 %v1684
        %v1720 = vpop.f32.mrb[0].mxu0
        %v1721 = vadd.f32 %v1656, %v1720
        %v1722 = vpop.f32.mrb[0].mxu0
        %v1723 = vpop.f32.mrb[0].mxu0
        %v1724 = vpop.f32.mrb[0].mxu0
        %1725 = vdwg.mxu0
        %v1726 = vadd.f32 %v1573, %v1721
        %v1727 = vld [vmem:[#allocation28] sm:$0x1]
        %v1728 = vld [vmem:[#allocation29] sm:$0x1]
        %v1729 = vsel %vm844, %v1726, 0.0
        %1730 = vadd.xlane.f32.xlu0 %v1729
        %v1731 = vpop.xlane.xlu0 %1730
        %v1732 = vmul.f32 %v1731, %v1549
        %v1733 = vsub.f32 %v1726, %v1732
        %v1734 = vmul.f32 %v1733, %v1733
        %v1735 = vsel %vm844, %v1734, 0.0
        %1736 = vadd.xlane.f32.xlu0 %v1735
        %v1737 = vpop.xlane.xlu0 %1736
        %v1738 = vmul.f32 %v1737, %v1549
        %v1739 = vadd.f32 %v1738, 1e-05
        %v1740 = vrsqrt.pop %v1739
        %v1741 = vmul.f32 %v1733, %v1740
        %v1743 = vlaneseq
        %v1744 = vshrl.u32 %v1743, 7
        %v1745 = vsub.s32 0, %v1744
        %v1746 = vrot.slane %v1727, %v1745
        %v1748 = vmul.f32 %v1741, %v1746
        %v1750 = vlaneseq
        %v1751 = vshrl.u32 %v1750, 7
        %v1752 = vsub.s32 0, %v1751
        %v1753 = vrot.slane %v1728, %v1752
        %v1755 = vadd.f32 %v1748, %v1753
        %1756 = vst.msk [vmem:[%s815] sm:$0xff] %vm844, %v1755
        %s1757 = sand.u32 %s435, 1
        %s1758 = scalar_lea.sflag [#allocation4], %s1757
        %s1759 = sand.u32 %s435, 1
        %s1760 = smul.addr %s1759, 8
        %s1761 = scalar_lea.vmem [#allocation31], %s1760
        // Predicated region
        $region165: #{tpu_custom_call.1} parent=91 // pred_check
          %p1762 = pneg %p445
        $region166: #{tpu_custom_call.1} parent=91 // pred_check_branch
          %1764 = sbr.rel (%p1762) target = $region168
        $region167: #{tpu_custom_call.1} parent=91 // pred_region
          %s1766 = ssub.s32 128, 128
          %1767 = vsyncadd %s1758, %s1766
          %s1768 = smul.addr %s44, 128
          %s1769 = scalar_lea.hbm %s18, %s1768
          %s1771 = sshll.u32 %s1761, 4
          %s1772 = int_to_ptr.vmem [resolvable:$true] %s1771
          %1774 = dma.vmem_to_hbm [thread:$0]  %s1772, 128, %s1769, %s1758
        $region168: #{tpu_custom_call.1} parent=91 // pred_fallthru
          _
      $region92: #{tpu_custom_call.1} parent=5 // pred_fallthru
        _
      %p1775 = scmp.le.s32.totalorder 2, %s39
      // Predicated region
      $region169: #{tpu_custom_call.1} parent=5 // pred_check
        %p1776 = pneg %p1775
      $region170: #{tpu_custom_call.1} parent=5 // pred_check_branch
        %1778 = sbr.rel (%p1776) target = $region172
      $region171: #{tpu_custom_call.1} parent=5 // pred_region
        %s1779 = ssub.s32 %s39, 2
        // Predicated region
        $region173: #{tpu_custom_call.1} parent=171 // pred_check
          %p1780 = pneg %p451
        $region174: #{tpu_custom_call.1} parent=171 // pred_check_branch
          %1782 = sbr.rel (%p1780) target = $region176
        $region175: #{tpu_custom_call.1} parent=171 // pred_region
          %s1783 = sand.u32 %s436, 1
          %s1784 = scalar_lea.sflag [#allocation4], %s1783
          %s1785 = sand.u32 %s436, 1
          %s1786 = smul.addr %s1785, 8
          %s1787 = scalar_lea.vmem [#allocation31], %s1786
          %1788 = dma.done %s1784, 128
        $region176: #{tpu_custom_call.1} parent=171 // pred_fallthru
          _
      $region172: #{tpu_custom_call.1} parent=5 // pred_fallthru
        _
    $region6: #{tpu_custom_call.1} parent=1 // loop_footer
      %s43 = sadd.s32 1, %s39
    $region7: #{tpu_custom_call.1} parent=1 // loop_footer_branch
      %38 = sbr.rel target = $region3
    $region8: #{tpu_custom_call.1} parent=1 // loop_exit
      _
    %1789 = vsyncpa [#allocation3], 1
    %s1790 = scalar_lea.sflag [#allocation3], 1
    %1791 = vsyncpa %s1790, 1
    %1792 = vsyncpa [#allocation6], 1
    %1793 = vsyncpa [#allocation9], 1
    %1794 = vsyncpa [#allocation12], 1
    %1795 = vsyncpa [#allocation15], 1
    %1796 = vsyncpa [#allocation18], 1
    %1797 = vsyncpa [#allocation21], 1
    %1798 = vsyncpa [#allocation24], 1
    %1799 = vsyncpa [#allocation27], 1
    %1800 = vsyncpa [#allocation30], 1
    %1801 = vsyncpa [#allocation4], 1
    %s1802 = scalar_lea.sflag [#allocation4], 1
    %1803 = vsyncpa %s1802, 1

// kernel: tpu_custom_call.1
$region0: #{tpu_custom_call.1}
  #allocation0 [shape = 'u32[]', space=smem, size = 0x4, offset = 0x4, fixed_abs, tag = 'smem constant byte address 0x4 - core index']
  #allocation1 [shape = 'u32[144,128]{1,0:T(1,128)}', space=vmem, size = 0x12000, scoped, tag = 'internal scratch']
  %s0 = inlined_call_operand.hbm [shape: f32[16,32], index: 0, kind: input, shape index: {}]
  %s1 = inlined_call_operand.hbm [shape: f32[8,32], index: 1, kind: input, shape index: {}]
  %s2 = inlined_call_operand.hbm [shape: bf16[32,32], index: 2, kind: input, shape index: {}]
  %s3 = inlined_call_operand.hbm [shape: f32[1,32], index: 3, kind: input, shape index: {}]
  %s4 = inlined_call_operand.hbm [shape: bf16[32,32], index: 4, kind: input, shape index: {}]
  %s5 = inlined_call_operand.hbm [shape: f32[1,32], index: 5, kind: input, shape index: {}]
  %s6 = inlined_call_operand.hbm [shape: bf16[32,32], index: 6, kind: input, shape index: {}]
  %s7 = inlined_call_operand.hbm [shape: f32[1,32], index: 7, kind: input, shape index: {}]
  %s8 = inlined_call_operand.hbm [shape: bf16[32,32], index: 8, kind: input, shape index: {}]
  %s9 = inlined_call_operand.hbm [shape: f32[1,32], index: 9, kind: input, shape index: {}]
  %s10 = inlined_call_operand.hbm [shape: f32[1,32], index: 10, kind: input, shape index: {}]
  %s11 = inlined_call_operand.hbm [shape: f32[1,32], index: 11, kind: input, shape index: {}]
  %s12 = inlined_call_operand.hbm [shape: bf16[32,64], index: 12, kind: input, shape index: {}]
  %s13 = inlined_call_operand.hbm [shape: f32[1,64], index: 13, kind: input, shape index: {}]
  %s14 = inlined_call_operand.hbm [shape: bf16[64,32], index: 14, kind: input, shape index: {}]
  %s15 = inlined_call_operand.hbm [shape: f32[1,32], index: 15, kind: input, shape index: {}]
  %s16 = inlined_call_operand.hbm [shape: f32[1,32], index: 16, kind: input, shape index: {}]
  %s17 = inlined_call_operand.hbm [shape: f32[1,32], index: 17, kind: input, shape index: {}]
  %s18 = inlined_call_operand.hbm [shape: f32[16,32], index: 18, kind: output, shape index: {}]
  %s19 = sld [smem:[#allocation0]]
  $region177: #{tpu_custom_call.1} parent=0
    _
  %s21 = ssub.s32 1, %s19
  %s22 = scalar_select 0, %s21, %s19
  $region1: #{tpu_custom_call.1} parent=0
    #allocation2 [shape = 'u8[8192]{0}', space=vmem, size = 0x2000, scoped, tag = 'input window, operand 0']
    #allocation3 [shape = 's32[2]{0}', space=sflag, size = 0x8, scoped, tag = 'scoped memory for tpu_custom_call.1']
    #allocation4 [shape = 's32[2]{0}', space=sflag, size = 0x8, scoped, tag = 'scoped memory for tpu_custom_call.1']
    #allocation5 [shape = 'u8[4096]{0}', space=vmem, size = 0x1000, scoped, tag = 'input window, operand 1, single buffered']
    #allocation6 [shape = 's32[1]{0}', space=sflag, size = 0x4, scoped, tag = 'scoped memory for tpu_custom_call.1']
    #allocation7 [shape = 'u8[8192]{0}', space=vmem, size = 0x2000, scoped, tag = 'input window, operand 2, single buffered']
    #allocation8 [shape = 'u8[512]{0}', space=vmem, size = 0x400, scoped, tag = 'input window, operand 3, single buffered']
    #allocation9 [shape = 's32[1]{0}', space=sflag, size = 0x4, scoped, tag = 'scoped memory for tpu_custom_call.1']
    #allocation10 [shape = 'u8[8192]{0}', space=vmem, size = 0x2000, scoped, tag = 'input window, operand 4, single buffered']
    #allocation11 [shape = 'u8[512]{0}', space=vmem, size = 0x400, scoped, tag = 'input window, operand 5, single buffered']
    #allocation12 [shape = 's32[1]{0}', space=sflag, size = 0x4, scoped, tag = 'scoped memory for tpu_custom_call.1']
    #allocation13 [shape = 'u8[8192]{0}', space=vmem, size = 0x2000, scoped, tag = 'input window, operand 6, single buffered']
    #allocation14 [shape = 'u8[512]{0}', space=vmem, size = 0x400, scoped, tag = 'input window, operand 7, single buffered']
    #allocation15 [shape = 's32[1]{0}', space=sflag, size = 0x4, scoped, tag = 'scoped memory for tpu_custom_call.1']
    #allocation16 [shape = 'u8[8192]{0}', space=vmem, size = 0x2000, scoped, tag = 'input window, operand 8, single buffered']
    #allocation17 [shape = 'u8[512]{0}', space=vmem, size = 0x400, scoped, tag = 'input window, operand 9, single buffered']
    #allocation18 [shape = 's32[1]{0}', space=sflag, size = 0x4, scoped, tag = 'scoped memory for tpu_custom_call.1']
    #allocation19 [shape = 'u8[512]{0}', space=vmem, size = 0x400, scoped, tag = 'input window, operand 10, single buffered']
    #allocation20 [shape = 'u8[512]{0}', space=vmem, size = 0x400, scoped, tag = 'input window, operand 11, single buffered']
    #allocation21 [shape = 's32[1]{0}', space=sflag, size = 0x4, scoped, tag = 'scoped memory for tpu_custom_call.1']
    #allocation22 [shape = 'u8[8192]{0}', space=vmem, size = 0x2000, scoped, tag = 'input window, operand 12, single buffered']
    #allocation23 [shape = 'u8[512]{0}', space=vmem, size = 0x400, scoped, tag = 'input window, operand 13, single buffered']
    #allocation24 [shape = 's32[1]{0}', space=sflag, size = 0x4, scoped, tag = 'scoped memory for tpu_custom_call.1']
    #allocation25 [shape = 'u8[16384]{0}', space=vmem, size = 0x4000, scoped, tag = 'input window, operand 14, single buffered']
    #allocation26 [shape = 'u8[512]{0}', space=vmem, size = 0x400, scoped, tag = 'input window, operand 15, single buffered']
    #allocation27 [shape = 's32[1]{0}', space=sflag, size = 0x4, scoped, tag = 'scoped memory for tpu_custom_call.1']
    #allocation28 [shape = 'u8[512]{0}', space=vmem, size = 0x400, scoped, tag = 'input window, operand 16, single buffered']
    #allocation29 [shape = 'u8[512]{0}', space=vmem, size = 0x400, scoped, tag = 'input window, operand 17, single buffered']
    #allocation30 [shape = 's32[1]{0}', space=sflag, size = 0x4, scoped, tag = 'scoped memory for tpu_custom_call.1']
    #allocation31 [shape = 'u8[8192]{0}', space=vmem, size = 0x2000, scoped, tag = 'output window, operand 0']
    %23 = vsyncpa [#allocation3], 0
    %s24 = scalar_lea.sflag [#allocation3], 1
    %25 = vsyncpa %s24, 0
    %26 = vsyncpa [#allocation6], 0
    %27 = vsyncpa [#allocation9], 0
    %28 = vsyncpa [#allocation12], 0
    %29 = vsyncpa [#allocation15], 0
    %30 = vsyncpa [#allocation18], 0
    %31 = vsyncpa [#allocation21], 0
    %32 = vsyncpa [#allocation24], 0
    %33 = vsyncpa [#allocation27], 0
    %34 = vsyncpa [#allocation30], 0
    %35 = vsyncpa [#allocation4], 0
    %s36 = scalar_lea.sflag [#allocation4], 1
    %37 = vsyncpa %s36, 0
    loop: start=0, step=1, limit=4
    $region2: #{tpu_custom_call.1} parent=1 // loop_pre_header
      _
    $region3: #{tpu_custom_call.1} parent=1 // loop_header
      %s39 = sphi 0, %s43
      %p40 = scmp.ge.s32.totalorder %s39, 4
      %s49 = sphi 0, %s51
      %s52 = sphi 0, %s49
      %s53 = sphi 0, %s52
      %s69 = sphi 0, %s53
      %s73 = sphi 0, %s73
      %s75 = sphi 0, %s73
      %s76 = sphi 0, %s75
      %s90 = sphi 0, %s76
      %s94 = sphi 0, %s94
      %s96 = sphi 0, %s94
      %s97 = sphi 0, %s96
      %s111 = sphi 0, %s97
      %s115 = sphi 0, %s115
      %s117 = sphi 0, %s115
      %s118 = sphi 0, %s117
      %s132 = sphi 0, %s118
      %s136 = sphi 0, %s136
      %s138 = sphi 0, %s136
      %s139 = sphi 0, %s138
      %s153 = sphi 0, %s139
      %s157 = sphi 0, %s157
      %s159 = sphi 0, %s157
      %s160 = sphi 0, %s159
      %s174 = sphi 0, %s160
      %s178 = sphi 0, %s178
      %s180 = sphi 0, %s178
      %s181 = sphi 0, %s180
      %s195 = sphi 0, %s181
      %s199 = sphi 0, %s199
      %s201 = sphi 0, %s199
      %s202 = sphi 0, %s201
      %s216 = sphi 0, %s202
      %s220 = sphi 0, %s220
      %s222 = sphi 0, %s220
      %s223 = sphi 0, %s222
      %s237 = sphi 0, %s223
      %s241 = sphi 0, %s241
      %s243 = sphi 0, %s241
      %s244 = sphi 0, %s243
      %s258 = sphi 0, %s244
      %s262 = sphi 0, %s262
      %s264 = sphi 0, %s262
      %s265 = sphi 0, %s264
      %s279 = sphi 0, %s265
      %s283 = sphi 0, %s283
      %s285 = sphi 0, %s283
      %s286 = sphi 0, %s285
      %s300 = sphi 0, %s286
      %s304 = sphi 0, %s304
      %s306 = sphi 0, %s304
      %s307 = sphi 0, %s306
      %s321 = sphi 0, %s307
      %s325 = sphi 0, %s325
      %s327 = sphi 0, %s325
      %s328 = sphi 0, %s327
      %s342 = sphi 0, %s328
      %s346 = sphi 0, %s346
      %s348 = sphi 0, %s346
      %s349 = sphi 0, %s348
      %s363 = sphi 0, %s349
      %s367 = sphi 0, %s367
      %s369 = sphi 0, %s367
      %s370 = sphi 0, %s369
      %s384 = sphi 0, %s370
      %s388 = sphi 0, %s388
      %s390 = sphi 0, %s388
      %s391 = sphi 0, %s390
      %s405 = sphi 0, %s391
      %s409 = sphi 0, %s409
      %s411 = sphi 0, %s409
      %s412 = sphi 0, %s411
      %s426 = sphi 0, %s412
      %s432 = sphi 0, %s434
      %s435 = sphi 0, %s432
      %s436 = sphi 0, %s435
      %s452 = sphi 0, %s436
    $region4: #{tpu_custom_call.1} parent=1 // loop_header_branch
      %42 = sbr.rel (%p40) target = $region8
    $region5: #{tpu_custom_call.1} parent=1 // loop_body
      %s44 = ssub.s32 %s39, 1
      %s45 = ssub.s32 %s39, 2
      %s46 = sadd.s32 %s39, 1
      %s47 = ssub.s32 %s39, %s46
      %p48 = scmp.eq.s32.totalorder %s47, 0
      %s50 = sadd.s32 %s49, 1
      %s51 = scalar_select %p48, %s49, %s50
      %p54 = pneg %p48
      %p55 = scmp.eq.s32.totalorder %s39, 1
      %p56 = por %p54, %p55
      %p57 = scmp.ne.s32.totalorder %s49, %s52
      %p58 = scmp.eq.s32.totalorder %s39, 0
      %p59 = por %p57, %p58
      %p60 = scmp.ne.s32.totalorder %s49, %s52
      %p61 = scmp.eq.s32.totalorder %s44, 1
      %p62 = por %p60, %p61
      %p63 = scmp.ne.s32.totalorder %s52, %s53
      %p64 = scmp.eq.s32.totalorder %s44, 0
      %p65 = por %p63, %p64
      %p66 = scmp.ne.s32.totalorder %s52, %s53
      %p67 = scmp.eq.s32.totalorder %s45, 1
      %p68 = por %p66, %p67
      %p70 = scmp.ne.s32.totalorder %s53, %s69
      %p71 = scmp.eq.s32.totalorder %s45, 0
      %p72 = por %p70, %p71
      %s74 = sadd.s32 %s73, 1
      %p77 = scmp.eq.s32.totalorder %s39, 1
      %p78 = scmp.ne.s32.totalorder %s73, %s75
      %p79 = scmp.eq.s32.totalorder %s39, 0
      %p80 = por %p78, %p79
      %p81 = scmp.ne.s32.totalorder %s73, %s75
      %p82 = scmp.eq.s32.totalorder %s44, 1
      %p83 = por %p81, %p82
      %p84 = scmp.ne.s32.totalorder %s75, %s76
      %p85 = scmp.eq.s32.totalorder %s44, 0
      %p86 = por %p84, %p85
      %p87 = scmp.ne.s32.totalorder %s75, %s76
      %p88 = scmp.eq.s32.totalorder %s45, 1
      %p89 = por %p87, %p88
      %p91 = scmp.ne.s32.totalorder %s76, %s90
      %p92 = scmp.eq.s32.totalorder %s45, 0
      %p93 = por %p91, %p92
      %s95 = sadd.s32 %s94, 1
      %p98 = scmp.eq.s32.totalorder %s39, 1
      %p99 = scmp.ne.s32.totalorder %s94, %s96
      %p100 = scmp.eq.s32.totalorder %s39, 0
      %p101 = por %p99, %p100
      %p102 = scmp.ne.s32.totalorder %s94, %s96
      %p103 = scmp.eq.s32.totalorder %s44, 1
      %p104 = por %p102, %p103
      %p105 = scmp.ne.s32.totalorder %s96, %s97
      %p106 = scmp.eq.s32.totalorder %s44, 0
      %p107 = por %p105, %p106
      %p108 = scmp.ne.s32.totalorder %s96, %s97
      %p109 = scmp.eq.s32.totalorder %s45, 1
      %p110 = por %p108, %p109
      %p112 = scmp.ne.s32.totalorder %s97, %s111
      %p113 = scmp.eq.s32.totalorder %s45, 0
      %p114 = por %p112, %p113
      %s116 = sadd.s32 %s115, 1
      %p119 = scmp.eq.s32.totalorder %s39, 1
      %p120 = scmp.ne.s32.totalorder %s115, %s117
      %p121 = scmp.eq.s32.totalorder %s39, 0
      %p122 = por %p120, %p121
      %p123 = scmp.ne.s32.totalorder %s115, %s117
      %p124 = scmp.eq.s32.totalorder %s44, 1
      %p125 = por %p123, %p124
      %p126 = scmp.ne.s32.totalorder %s117, %s118
      %p127 = scmp.eq.s32.totalorder %s44, 0
      %p128 = por %p126, %p127
      %p129 = scmp.ne.s32.totalorder %s117, %s118
      %p130 = scmp.eq.s32.totalorder %s45, 1
      %p131 = por %p129, %p130
      %p133 = scmp.ne.s32.totalorder %s118, %s132
      %p134 = scmp.eq.s32.totalorder %s45, 0
      %p135 = por %p133, %p134
      %s137 = sadd.s32 %s136, 1
      %p140 = scmp.eq.s32.totalorder %s39, 1
      %p141 = scmp.ne.s32.totalorder %s136, %s138
      %p142 = scmp.eq.s32.totalorder %s39, 0
      %p143 = por %p141, %p142
      %p144 = scmp.ne.s32.totalorder %s136, %s138
      %p145 = scmp.eq.s32.totalorder %s44, 1
      %p146 = por %p144, %p145
      %p147 = scmp.ne.s32.totalorder %s138, %s139
      %p148 = scmp.eq.s32.totalorder %s44, 0
      %p149 = por %p147, %p148
      %p150 = scmp.ne.s32.totalorder %s138, %s139
      %p151 = scmp.eq.s32.totalorder %s45, 1
      %p152 = por %p150, %p151
      %p154 = scmp.ne.s32.totalorder %s139, %s153
      %p155 = scmp.eq.s32.totalorder %s45, 0
      %p156 = por %p154, %p155
      %s158 = sadd.s32 %s157, 1
      %p161 = scmp.eq.s32.totalorder %s39, 1
      %p162 = scmp.ne.s32.totalorder %s157, %s159
      %p163 = scmp.eq.s32.totalorder %s39, 0
      %p164 = por %p162, %p163
      %p165 = scmp.ne.s32.totalorder %s157, %s159
      %p166 = scmp.eq.s32.totalorder %s44, 1
      %p167 = por %p165, %p166
      %p168 = scmp.ne.s32.totalorder %s159, %s160
      %p169 = scmp.eq.s32.totalorder %s44, 0
      %p170 = por %p168, %p169
      %p171 = scmp.ne.s32.totalorder %s159, %s160
      %p172 = scmp.eq.s32.totalorder %s45, 1
      %p173 = por %p171, %p172
      %p175 = scmp.ne.s32.totalorder %s160, %s174
      %p176 = scmp.eq.s32.totalorder %s45, 0
      %p177 = por %p175, %p176
      %s179 = sadd.s32 %s178, 1
      %p182 = scmp.eq.s32.totalorder %s39, 1
      %p183 = scmp.ne.s32.totalorder %s178, %s180
      %p184 = scmp.eq.s32.totalorder %s39, 0
      %p185 = por %p183, %p184
      %p186 = scmp.ne.s32.totalorder %s178, %s180
      %p187 = scmp.eq.s32.totalorder %s44, 1
      %p188 = por %p186, %p187
      %p189 = scmp.ne.s32.totalorder %s180, %s181
      %p190 = scmp.eq.s32.totalorder %s44, 0
      %p191 = por %p189, %p190
      %p192 = scmp.ne.s32.totalorder %s180, %s181
      %p193 = scmp.eq.s32.totalorder %s45, 1
      %p194 = por %p192, %p193
      %p196 = scmp.ne.s32.totalorder %s181, %s195
      %p197 = scmp.eq.s32.totalorder %s45, 0
      %p198 = por %p196, %p197
      %s200 = sadd.s32 %s199, 1
      %p203 = scmp.eq.s32.totalorder %s39, 1
      %p204 = scmp.ne.s32.totalorder %s199, %s201
      %p205 = scmp.eq.s32.totalorder %s39, 0
      %p206 = por %p204, %p205
      %p207 = scmp.ne.s32.totalorder %s199, %s201
      %p208 = scmp.eq.s32.totalorder %s44, 1
      %p209 = por %p207, %p208
      %p210 = scmp.ne.s32.totalorder %s201, %s202
      %p211 = scmp.eq.s32.totalorder %s44, 0
      %p212 = por %p210, %p211
      %p213 = scmp.ne.s32.totalorder %s201, %s202
      %p214 = scmp.eq.s32.totalorder %s45, 1
      %p215 = por %p213, %p214
      %p217 = scmp.ne.s32.totalorder %s202, %s216
      %p218 = scmp.eq.s32.totalorder %s45, 0
      %p219 = por %p217, %p218
      %s221 = sadd.s32 %s220, 1
      %p224 = scmp.eq.s32.totalorder %s39, 1
      %p225 = scmp.ne.s32.totalorder %s220, %s222
      %p226 = scmp.eq.s32.totalorder %s39, 0
      %p227 = por %p225, %p226
      %p228 = scmp.ne.s32.totalorder %s220, %s222
      %p229 = scmp.eq.s32.totalorder %s44, 1
      %p230 = por %p228, %p229
      %p231 = scmp.ne.s32.totalorder %s222, %s223
      %p232 = scmp.eq.s32.totalorder %s44, 0
      %p233 = por %p231, %p232
      %p234 = scmp.ne.s32.totalorder %s222, %s223
      %p235 = scmp.eq.s32.totalorder %s45, 1
      %p236 = por %p234, %p235
      %p238 = scmp.ne.s32.totalorder %s223, %s237
      %p239 = scmp.eq.s32.totalorder %s45, 0
      %p240 = por %p238, %p239
      %s242 = sadd.s32 %s241, 1
      %p245 = scmp.eq.s32.totalorder %s39, 1
      %p246 = scmp.ne.s32.totalorder %s241, %s243
      %p247 = scmp.eq.s32.totalorder %s39, 0
      %p248 = por %p246, %p247
      %p249 = scmp.ne.s32.totalorder %s241, %s243
      %p250 = scmp.eq.s32.totalorder %s44, 1
      %p251 = por %p249, %p250
      %p252 = scmp.ne.s32.totalorder %s243, %s244
      %p253 = scmp.eq.s32.totalorder %s44, 0
      %p254 = por %p252, %p253
      %p255 = scmp.ne.s32.totalorder %s243, %s244
      %p256 = scmp.eq.s32.totalorder %s45, 1
      %p257 = por %p255, %p256
      %p259 = scmp.ne.s32.totalorder %s244, %s258
      %p260 = scmp.eq.s32.totalorder %s45, 0
      %p261 = por %p259, %p260
      %s263 = sadd.s32 %s262, 1
      %p266 = scmp.eq.s32.totalorder %s39, 1
      %p267 = scmp.ne.s32.totalorder %s262, %s264
      %p268 = scmp.eq.s32.totalorder %s39, 0
      %p269 = por %p267, %p268
      %p270 = scmp.ne.s32.totalorder %s262, %s264
      %p271 = scmp.eq.s32.totalorder %s44, 1
      %p272 = por %p270, %p271
      %p273 = scmp.ne.s32.totalorder %s264, %s265
      %p274 = scmp.eq.s32.totalorder %s44, 0
      %p275 = por %p273, %p274
      %p276 = scmp.ne.s32.totalorder %s264, %s265
      %p277 = scmp.eq.s32.totalorder %s45, 1
      %p278 = por %p276, %p277
      %p280 = scmp.ne.s32.totalorder %s265, %s279
      %p281 = scmp.eq.s32.totalorder %s45, 0
      %p282 = por %p280, %p281
      %s284 = sadd.s32 %s283, 1
      %p287 = scmp.eq.s32.totalorder %s39, 1
      %p288 = scmp.ne.s32.totalorder %s283, %s285
      %p289 = scmp.eq.s32.totalorder %s39, 0
      %p290 = por %p288, %p289
      %p291 = scmp.ne.s32.totalorder %s283, %s285
      %p292 = scmp.eq.s32.totalorder %s44, 1
      %p293 = por %p291, %p292
      %p294 = scmp.ne.s32.totalorder %s285, %s286
      %p295 = scmp.eq.s32.totalorder %s44, 0
      %p296 = por %p294, %p295
      %p297 = scmp.ne.s32.totalorder %s285, %s286
      %p298 = scmp.eq.s32.totalorder %s45, 1
      %p299 = por %p297, %p298
      %p301 = scmp.ne.s32.totalorder %s286, %s300
      %p302 = scmp.eq.s32.totalorder %s45, 0
      %p303 = por %p301, %p302
      %s305 = sadd.s32 %s304, 1
      %p308 = scmp.eq.s32.totalorder %s39, 1
      %p309 = scmp.ne.s32.totalorder %s304, %s306
      %p310 = scmp.eq.s32.totalorder %s39, 0
      %p311 = por %p309, %p310
      %p312 = scmp.ne.s32.totalorder %s304, %s306
      %p313 = scmp.eq.s32.totalorder %s44, 1
      %p314 = por %p312, %p313
      %p315 = scmp.ne.s32.totalorder %s306, %s307
      %p316 = scmp.eq.s32.totalorder %s44, 0
      %p317 = por %p315, %p316
      %p318 = scmp.ne.s32.totalorder %s306, %s307
      %p319 = scmp.eq.s32.totalorder %s45, 1
      %p320 = por %p318, %p319
      %p322 = scmp.ne.s32.totalorder %s307, %s321
      %p323 = scmp.eq.s32.totalorder %s45, 0
      %p324 = por %p322, %p323
      %s326 = sadd.s32 %s325, 1
      %p329 = scmp.eq.s32.totalorder %s39, 1
      %p330 = scmp.ne.s32.totalorder %s325, %s327
      %p331 = scmp.eq.s32.totalorder %s39, 0
      %p332 = por %p330, %p331
      %p333 = scmp.ne.s32.totalorder %s325, %s327
      %p334 = scmp.eq.s32.totalorder %s44, 1
      %p335 = por %p333, %p334
      %p336 = scmp.ne.s32.totalorder %s327, %s328
      %p337 = scmp.eq.s32.totalorder %s44, 0
      %p338 = por %p336, %p337
      %p339 = scmp.ne.s32.totalorder %s327, %s328
      %p340 = scmp.eq.s32.totalorder %s45, 1
      %p341 = por %p339, %p340
      %p343 = scmp.ne.s32.totalorder %s328, %s342
      %p344 = scmp.eq.s32.totalorder %s45, 0
      %p345 = por %p343, %p344
      %s347 = sadd.s32 %s346, 1
      %p350 = scmp.eq.s32.totalorder %s39, 1
      %p351 = scmp.ne.s32.totalorder %s346, %s348
      %p352 = scmp.eq.s32.totalorder %s39, 0
      %p353 = por %p351, %p352
      %p354 = scmp.ne.s32.totalorder %s346, %s348
      %p355 = scmp.eq.s32.totalorder %s44, 1
      %p356 = por %p354, %p355
      %p357 = scmp.ne.s32.totalorder %s348, %s349
      %p358 = scmp.eq.s32.totalorder %s44, 0
      %p359 = por %p357, %p358
      %p360 = scmp.ne.s32.totalorder %s348, %s349
      %p361 = scmp.eq.s32.totalorder %s45, 1
      %p362 = por %p360, %p361
      %p364 = scmp.ne.s32.totalorder %s349, %s363
      %p365 = scmp.eq.s32.totalorder %s45, 0
      %p366 = por %p364, %p365
      %s368 = sadd.s32 %s367, 1
      %p371 = scmp.eq.s32.totalorder %s39, 1
      %p372 = scmp.ne.s32.totalorder %s367, %s369
      %p373 = scmp.eq.s32.totalorder %s39, 0
      %p374 = por %p372, %p373
      %p375 = scmp.ne.s32.totalorder %s367, %s369
      %p376 = scmp.eq.s32.totalorder %s44, 1
      %p377 = por %p375, %p376
      %p378 = scmp.ne.s32.totalorder %s369, %s370
      %p379 = scmp.eq.s32.totalorder %s44, 0
      %p380 = por %p378, %p379
      %p381 = scmp.ne.s32.totalorder %s369, %s370
      %p382 = scmp.eq.s32.totalorder %s45, 1
      %p383 = por %p381, %p382
      %p385 = scmp.ne.s32.totalorder %s370, %s384
      %p386 = scmp.eq.s32.totalorder %s45, 0
      %p387 = por %p385, %p386
      %s389 = sadd.s32 %s388, 1
      %p392 = scmp.eq.s32.totalorder %s39, 1
      %p393 = scmp.ne.s32.totalorder %s388, %s390
      %p394 = scmp.eq.s32.totalorder %s39, 0
      %p395 = por %p393, %p394
      %p396 = scmp.ne.s32.totalorder %s388, %s390
      %p397 = scmp.eq.s32.totalorder %s44, 1
      %p398 = por %p396, %p397
      %p399 = scmp.ne.s32.totalorder %s390, %s391
      %p400 = scmp.eq.s32.totalorder %s44, 0
      %p401 = por %p399, %p400
      %p402 = scmp.ne.s32.totalorder %s390, %s391
      %p403 = scmp.eq.s32.totalorder %s45, 1
      %p404 = por %p402, %p403
      %p406 = scmp.ne.s32.totalorder %s391, %s405
      %p407 = scmp.eq.s32.totalorder %s45, 0
      %p408 = por %p406, %p407
      %s410 = sadd.s32 %s409, 1
      %p413 = scmp.eq.s32.totalorder %s39, 1
      %p414 = scmp.ne.s32.totalorder %s409, %s411
      %p415 = scmp.eq.s32.totalorder %s39, 0
      %p416 = por %p414, %p415
      %p417 = scmp.ne.s32.totalorder %s409, %s411
      %p418 = scmp.eq.s32.totalorder %s44, 1
      %p419 = por %p417, %p418
      %p420 = scmp.ne.s32.totalorder %s411, %s412
      %p421 = scmp.eq.s32.totalorder %s44, 0
      %p422 = por %p420, %p421
      %p423 = scmp.ne.s32.totalorder %s411, %s412
      %p424 = scmp.eq.s32.totalorder %s45, 1
      %p425 = por %p423, %p424
      %p427 = scmp.ne.s32.totalorder %s412, %s426
      %p428 = scmp.eq.s32.totalorder %s45, 0
      %p429 = por %p427, %p428
      %s430 = ssub.s32 %s39, %s46
      %p431 = scmp.eq.s32.totalorder %s430, 0
      %s433 = sadd.s32 %s432, 1
      %s434 = scalar_select %p431, %s432, %s433
      %p437 = pneg %p431
      %p438 = scmp.eq.s32.totalorder %s39, 1
      %p439 = por %p437, %p438
      %p440 = scmp.ne.s32.totalorder %s432, %s435
      %p441 = scmp.eq.s32.totalorder %s39, 0
      %p442 = por %p440, %p441
      %p443 = scmp.ne.s32.totalorder %s432, %s435
      %p444 = scmp.eq.s32.totalorder %s44, 1
      %p445 = por %p443, %p444
      %p446 = scmp.ne.s32.totalorder %s435, %s436
      %p447 = scmp.eq.s32.totalorder %s44, 0
      %p448 = por %p446, %p447
      %p449 = scmp.ne.s32.totalorder %s435, %s436
      %p450 = scmp.eq.s32.totalorder %s45, 1
      %p451 = por %p449, %p450
      %p453 = scmp.ne.s32.totalorder %s436, %s452
      %p454 = scmp.eq.s32.totalorder %s45, 0
      %p455 = por %p453, %p454
      %p456 = scmp.le.s32.totalorder 1, %s39
      %p457 = scmp.lt.s32.totalorder %s39, 3
      %p458 = pnand %p456, %p457
      %p459 = pneg %p458
      // Predicated region
      $region9: #{tpu_custom_call.1} parent=5 // pred_check
        _
      $region10: #{tpu_custom_call.1} parent=5 // pred_check_branch
        %461 = sbr.rel (%p458) target = $region12
      $region11: #{tpu_custom_call.1} parent=5 // pred_region
        %s462 = ssub.s32 %s39, 1
        // Predicated region
        $region13: #{tpu_custom_call.1} parent=11 // pred_check
          %p463 = pneg %p86
        $region14: #{tpu_custom_call.1} parent=11 // pred_check_branch
          %465 = sbr.rel (%p463) target = $region16
        $region15: #{tpu_custom_call.1} parent=11 // pred_region
          %s467 = ssub.s32 128, 128
          %468 = vsyncadd [#allocation6], %s467
          %s470 = sshll.u32 [#allocation5], 4
          %s471 = int_to_ptr.vmem [resolvable:$true] %s470
          %473 = dma.hbm_to_vmem [thread:$0]  %s1, 128, %s471, [#allocation6]
        $region16: #{tpu_custom_call.1} parent=11 // pred_fallthru
          _
        // Predicated region
        $region17: #{tpu_custom_call.1} parent=11 // pred_check
          %p474 = pneg %p107
        $region18: #{tpu_custom_call.1} parent=11 // pred_check_branch
          %476 = sbr.rel (%p474) target = $region20
        $region19: #{tpu_custom_call.1} parent=11 // pred_region
          %s478 = ssub.s32 256, 256
          %479 = vsyncadd [#allocation6], %s478
          %s480 = sshll.u32 [#allocation7], 4
          %s481 = int_to_ptr.vmem [resolvable:$true] %s480
          %486 = dma.hbm_to_vmem [thread:$0]  %s2, 256, %s481, [#allocation6], 64, 64, 4
        $region20: #{tpu_custom_call.1} parent=11 // pred_fallthru
          _
        // Predicated region
        $region21: #{tpu_custom_call.1} parent=11 // pred_check
          %p487 = pneg %p128
        $region22: #{tpu_custom_call.1} parent=11 // pred_check_branch
          %489 = sbr.rel (%p487) target = $region24
        $region23: #{tpu_custom_call.1} parent=11 // pred_region
          %s491 = ssub.s32 16, 16
          %492 = vsyncadd [#allocation9], %s491
          %s494 = sshll.u32 [#allocation8], 4
          %s495 = int_to_ptr.vmem [resolvable:$true] %s494
          %497 = dma.hbm_to_vmem [thread:$0]  %s3, 16, %s495, [#allocation9]
        $region24: #{tpu_custom_call.1} parent=11 // pred_fallthru
          _
        // Predicated region
        $region25: #{tpu_custom_call.1} parent=11 // pred_check
          %p498 = pneg %p149
        $region26: #{tpu_custom_call.1} parent=11 // pred_check_branch
          %500 = sbr.rel (%p498) target = $region28
        $region27: #{tpu_custom_call.1} parent=11 // pred_region
          %s502 = ssub.s32 256, 256
          %503 = vsyncadd [#allocation9], %s502
          %s504 = sshll.u32 [#allocation10], 4
          %s505 = int_to_ptr.vmem [resolvable:$true] %s504
          %510 = dma.hbm_to_vmem [thread:$0]  %s4, 256, %s505, [#allocation9], 64, 64, 4
        $region28: #{tpu_custom_call.1} parent=11 // pred_fallthru
          _
        // Predicated region
        $region29: #{tpu_custom_call.1} parent=11 // pred_check
          %p511 = pneg %p170
        $region30: #{tpu_custom_call.1} parent=11 // pred_check_branch
          %513 = sbr.rel (%p511) target = $region32
        $region31: #{tpu_custom_call.1} parent=11 // pred_region
          %s515 = ssub.s32 16, 16
          %516 = vsyncadd [#allocation12], %s515
          %s518 = sshll.u32 [#allocation11], 4
          %s519 = int_to_ptr.vmem [resolvable:$true] %s518
          %521 = dma.hbm_to_vmem [thread:$0]  %s5, 16, %s519, [#allocation12]
        $region32: #{tpu_custom_call.1} parent=11 // pred_fallthru
          _
        // Predicated region
        $region33: #{tpu_custom_call.1} parent=11 // pred_check
          %p522 = pneg %p191
        $region34: #{tpu_custom_call.1} parent=11 // pred_check_branch
          %524 = sbr.rel (%p522) target = $region36
        $region35: #{tpu_custom_call.1} parent=11 // pred_region
          %s526 = ssub.s32 256, 256
          %527 = vsyncadd [#allocation12], %s526
          %s528 = sshll.u32 [#allocation13], 4
          %s529 = int_to_ptr.vmem [resolvable:$true] %s528
          %534 = dma.hbm_to_vmem [thread:$0]  %s6, 256, %s529, [#allocation12], 64, 64, 4
        $region36: #{tpu_custom_call.1} parent=11 // pred_fallthru
          _
        // Predicated region
        $region37: #{tpu_custom_call.1} parent=11 // pred_check
          %p535 = pneg %p212
        $region38: #{tpu_custom_call.1} parent=11 // pred_check_branch
          %537 = sbr.rel (%p535) target = $region40
        $region39: #{tpu_custom_call.1} parent=11 // pred_region
          %s539 = ssub.s32 16, 16
          %540 = vsyncadd [#allocation15], %s539
          %s542 = sshll.u32 [#allocation14], 4
          %s543 = int_to_ptr.vmem [resolvable:$true] %s542
          %545 = dma.hbm_to_vmem [thread:$0]  %s7, 16, %s543, [#allocation15]
        $region40: #{tpu_custom_call.1} parent=11 // pred_fallthru
          _
        // Predicated region
        $region41: #{tpu_custom_call.1} parent=11 // pred_check
          %p546 = pneg %p233
        $region42: #{tpu_custom_call.1} parent=11 // pred_check_branch
          %548 = sbr.rel (%p546) target = $region44
        $region43: #{tpu_custom_call.1} parent=11 // pred_region
          %s550 = ssub.s32 256, 256
          %551 = vsyncadd [#allocation15], %s550
          %s552 = sshll.u32 [#allocation16], 4
          %s553 = int_to_ptr.vmem [resolvable:$true] %s552
          %558 = dma.hbm_to_vmem [thread:$0]  %s8, 256, %s553, [#allocation15], 64, 64, 4
        $region44: #{tpu_custom_call.1} parent=11 // pred_fallthru
          _
        // Predicated region
        $region45: #{tpu_custom_call.1} parent=11 // pred_check
          %p559 = pneg %p254
        $region46: #{tpu_custom_call.1} parent=11 // pred_check_branch
          %561 = sbr.rel (%p559) target = $region48
        $region47: #{tpu_custom_call.1} parent=11 // pred_region
          %s563 = ssub.s32 16, 16
          %564 = vsyncadd [#allocation18], %s563
          %s566 = sshll.u32 [#allocation17], 4
          %s567 = int_to_ptr.vmem [resolvable:$true] %s566
          %569 = dma.hbm_to_vmem [thread:$0]  %s9, 16, %s567, [#allocation18]
        $region48: #{tpu_custom_call.1} parent=11 // pred_fallthru
          _
        // Predicated region
        $region49: #{tpu_custom_call.1} parent=11 // pred_check
          %p570 = pneg %p275
        $region50: #{tpu_custom_call.1} parent=11 // pred_check_branch
          %572 = sbr.rel (%p570) target = $region52
        $region51: #{tpu_custom_call.1} parent=11 // pred_region
          %s574 = ssub.s32 16, 16
          %575 = vsyncadd [#allocation18], %s574
          %s577 = sshll.u32 [#allocation19], 4
          %s578 = int_to_ptr.vmem [resolvable:$true] %s577
          %580 = dma.hbm_to_vmem [thread:$0]  %s10, 16, %s578, [#allocation18]
        $region52: #{tpu_custom_call.1} parent=11 // pred_fallthru
          _
        // Predicated region
        $region53: #{tpu_custom_call.1} parent=11 // pred_check
          %p581 = pneg %p296
        $region54: #{tpu_custom_call.1} parent=11 // pred_check_branch
          %583 = sbr.rel (%p581) target = $region56
        $region55: #{tpu_custom_call.1} parent=11 // pred_region
          %s585 = ssub.s32 16, 16
          %586 = vsyncadd [#allocation21], %s585
          %s588 = sshll.u32 [#allocation20], 4
          %s589 = int_to_ptr.vmem [resolvable:$true] %s588
          %591 = dma.hbm_to_vmem [thread:$0]  %s11, 16, %s589, [#allocation21]
        $region56: #{tpu_custom_call.1} parent=11 // pred_fallthru
          _
        // Predicated region
        $region57: #{tpu_custom_call.1} parent=11 // pred_check
          %p592 = pneg %p317
        $region58: #{tpu_custom_call.1} parent=11 // pred_check_branch
          %594 = sbr.rel (%p592) target = $region60
        $region59: #{tpu_custom_call.1} parent=11 // pred_region
          %s596 = ssub.s32 256, 256
          %597 = vsyncadd [#allocation21], %s596
          %s598 = sshll.u32 [#allocation22], 4
          %s599 = int_to_ptr.vmem [resolvable:$true] %s598
          %604 = dma.hbm_to_vmem [thread:$0]  %s12, 256, %s599, [#allocation21], 64, 64, 4
        $region60: #{tpu_custom_call.1} parent=11 // pred_fallthru
          _
        // Predicated region
        $region61: #{tpu_custom_call.1} parent=11 // pred_check
          %p605 = pneg %p338
        $region62: #{tpu_custom_call.1} parent=11 // pred_check_branch
          %607 = sbr.rel (%p605) target = $region64
        $region63: #{tpu_custom_call.1} parent=11 // pred_region
          %s609 = ssub.s32 16, 16
          %610 = vsyncadd [#allocation24], %s609
          %s612 = sshll.u32 [#allocation23], 4
          %s613 = int_to_ptr.vmem [resolvable:$true] %s612
          %615 = dma.hbm_to_vmem [thread:$0]  %s13, 16, %s613, [#allocation24]
        $region64: #{tpu_custom_call.1} parent=11 // pred_fallthru
          _
        // Predicated region
        $region65: #{tpu_custom_call.1} parent=11 // pred_check
          %p616 = pneg %p359
        $region66: #{tpu_custom_call.1} parent=11 // pred_check_branch
          %618 = sbr.rel (%p616) target = $region68
        $region67: #{tpu_custom_call.1} parent=11 // pred_region
          %s620 = ssub.s32 512, 512
          %621 = vsyncadd [#allocation24], %s620
          %s622 = sshll.u32 [#allocation25], 4
          %s623 = int_to_ptr.vmem [resolvable:$true] %s622
          %628 = dma.hbm_to_vmem [thread:$0]  %s14, 512, %s623, [#allocation24], 64, 64, 4
        $region68: #{tpu_custom_call.1} parent=11 // pred_fallthru
          _
        // Predicated region
        $region69: #{tpu_custom_call.1} parent=11 // pred_check
          %p629 = pneg %p380
        $region70: #{tpu_custom_call.1} parent=11 // pred_check_branch
          %631 = sbr.rel (%p629) target = $region72
        $region71: #{tpu_custom_call.1} parent=11 // pred_region
          %s633 = ssub.s32 16, 16
          %634 = vsyncadd [#allocation27], %s633
          %s636 = sshll.u32 [#allocation26], 4
          %s637 = int_to_ptr.vmem [resolvable:$true] %s636
          %639 = dma.hbm_to_vmem [thread:$0]  %s15, 16, %s637, [#allocation27]
        $region72: #{tpu_custom_call.1} parent=11 // pred_fallthru
          _
        // Predicated region
        $region73: #{tpu_custom_call.1} parent=11 // pred_check
          %p640 = pneg %p401
        $region74: #{tpu_custom_call.1} parent=11 // pred_check_branch
          %642 = sbr.rel (%p640) target = $region76
        $region75: #{tpu_custom_call.1} parent=11 // pred_region
          %s644 = ssub.s32 16, 16
          %645 = vsyncadd [#allocation27], %s644
          %s647 = sshll.u32 [#allocation28], 4
          %s648 = int_to_ptr.vmem [resolvable:$true] %s647
          %650 = dma.hbm_to_vmem [thread:$0]  %s16, 16, %s648, [#allocation27]
        $region76: #{tpu_custom_call.1} parent=11 // pred_fallthru
          _
        // Predicated region
        $region77: #{tpu_custom_call.1} parent=11 // pred_check
          %p651 = pneg %p422
        $region78: #{tpu_custom_call.1} parent=11 // pred_check_branch
          %653 = sbr.rel (%p651) target = $region80
        $region79: #{tpu_custom_call.1} parent=11 // pred_region
          %s655 = ssub.s32 16, 16
          %656 = vsyncadd [#allocation30], %s655
          %s658 = sshll.u32 [#allocation29], 4
          %s659 = int_to_ptr.vmem [resolvable:$true] %s658
          %661 = dma.hbm_to_vmem [thread:$0]  %s17, 16, %s659, [#allocation30]
        $region80: #{tpu_custom_call.1} parent=11 // pred_fallthru
          _
      $region12: #{tpu_custom_call.1} parent=5 // pred_fallthru
        _
      %p662 = scmp.lt.s32.totalorder %s39, 2
      // Predicated region
      $region81: #{tpu_custom_call.1} parent=5 // pred_check
        %p663 = pneg %p662
      $region82: #{tpu_custom_call.1} parent=5 // pred_check_branch
        %665 = sbr.rel (%p663) target = $region84
      $region83: #{tpu_custom_call.1} parent=5 // pred_region
        // Predicated region
        $region85: #{tpu_custom_call.1} parent=83 // pred_check
          %p666 = pneg %p59
        $region86: #{tpu_custom_call.1} parent=83 // pred_check_branch
          %668 = sbr.rel (%p666) target = $region88
        $region87: #{tpu_custom_call.1} parent=83 // pred_region
          %s669 = sand.u32 %s49, 1
          %s670 = scalar_lea.sflag [#allocation3], %s669
          %s671 = sand.u32 %s49, 1
          %s672 = smul.addr %s671, 8
          %s673 = scalar_lea.vmem [#allocation2], %s672
          %s675 = ssub.s32 128, 128
          %676 = vsyncadd %s670, %s675
          %s677 = smul.addr %s39, 128
          %s678 = scalar_lea.hbm %s0, %s677
          %s680 = sshll.u32 %s673, 4
          %s681 = int_to_ptr.vmem [resolvable:$true] %s680
          %683 = dma.hbm_to_vmem [thread:$0]  %s678, 128, %s681, %s670
        $region88: #{tpu_custom_call.1} parent=83 // pred_fallthru
          _
      $region84: #{tpu_custom_call.1} parent=5 // pred_fallthru
        _
      %p684 = scmp.le.s32.totalorder 1, %s39
      %p685 = scmp.lt.s32.totalorder %s39, 3
      %p686 = pnand %p684, %p685
      %p687 = pneg %p686
      // Predicated region
      $region89: #{tpu_custom_call.1} parent=5 // pred_check
        _
      $region90: #{tpu_custom_call.1} parent=5 // pred_check_branch
        %689 = sbr.rel (%p686) target = $region92
      $region91: #{tpu_custom_call.1} parent=5 // pred_region
        %s690 = ssub.s32 %s39, 1
        %s691 = sand.u32 %s52, 1
        %s692 = scalar_lea.sflag [#allocation3], %s691
        %s693 = sand.u32 %s52, 1
        %s694 = smul.addr %s693, 8
        %s695 = scalar_lea.vmem [#allocation2], %s694
        // Predicated region
        $region93: #{tpu_custom_call.1} parent=91 // pred_check
          %p696 = pneg %p65
        $region94: #{tpu_custom_call.1} parent=91 // pred_check_branch
          %698 = sbr.rel (%p696) target = $region96
        $region95: #{tpu_custom_call.1} parent=91 // pred_region
          %699 = dma.done %s692, 128
        $region96: #{tpu_custom_call.1} parent=91 // pred_fallthru
          _
        // Predicated region
        $region97: #{tpu_custom_call.1} parent=91 // pred_check
          %p700 = pneg %p86
        $region98: #{tpu_custom_call.1} parent=91 // pred_check_branch
          %702 = sbr.rel (%p700) target = $region100
        $region99: #{tpu_custom_call.1} parent=91 // pred_region
          %703 = dma.done [#allocation6], 128
        $region100: #{tpu_custom_call.1} parent=91 // pred_fallthru
          _
        // Predicated region
        $region101: #{tpu_custom_call.1} parent=91 // pred_check
          %p704 = pneg %p107
        $region102: #{tpu_custom_call.1} parent=91 // pred_check_branch
          %706 = sbr.rel (%p704) target = $region104
        $region103: #{tpu_custom_call.1} parent=91 // pred_region
          %707 = dma.done [#allocation6], 256
        $region104: #{tpu_custom_call.1} parent=91 // pred_fallthru
          _
        // Predicated region
        $region105: #{tpu_custom_call.1} parent=91 // pred_check
          %p708 = pneg %p128
        $region106: #{tpu_custom_call.1} parent=91 // pred_check_branch
          %710 = sbr.rel (%p708) target = $region108
        $region107: #{tpu_custom_call.1} parent=91 // pred_region
          %711 = dma.done [#allocation9], 16
        $region108: #{tpu_custom_call.1} parent=91 // pred_fallthru
          _
        // Predicated region
        $region109: #{tpu_custom_call.1} parent=91 // pred_check
          %p712 = pneg %p149
        $region110: #{tpu_custom_call.1} parent=91 // pred_check_branch
          %714 = sbr.rel (%p712) target = $region112
        $region111: #{tpu_custom_call.1} parent=91 // pred_region
          %715 = dma.done [#allocation9], 256
        $region112: #{tpu_custom_call.1} parent=91 // pred_fallthru
          _
        // Predicated region
        $region113: #{tpu_custom_call.1} parent=91 // pred_check
          %p716 = pneg %p170
        $region114: #{tpu_custom_call.1} parent=91 // pred_check_branch
          %718 = sbr.rel (%p716) target = $region116
        $region115: #{tpu_custom_call.1} parent=91 // pred_region
          %719 = dma.done [#allocation12], 16
        $region116: #{tpu_custom_call.1} parent=91 // pred_fallthru
          _
        // Predicated region
        $region117: #{tpu_custom_call.1} parent=91 // pred_check
          %p720 = pneg %p191
        $region118: #{tpu_custom_call.1} parent=91 // pred_check_branch
          %722 = sbr.rel (%p720) target = $region120
        $region119: #{tpu_custom_call.1} parent=91 // pred_region
          %723 = dma.done [#allocation12], 256
        $region120: #{tpu_custom_call.1} parent=91 // pred_fallthru
          _
        // Predicated region
        $region121: #{tpu_custom_call.1} parent=91 // pred_check
          %p724 = pneg %p212
        $region122: #{tpu_custom_call.1} parent=91 // pred_check_branch
          %726 = sbr.rel (%p724) target = $region124
        $region123: #{tpu_custom_call.1} parent=91 // pred_region
          %727 = dma.done [#allocation15], 16
        $region124: #{tpu_custom_call.1} parent=91 // pred_fallthru
          _
        // Predicated region
        $region125: #{tpu_custom_call.1} parent=91 // pred_check
          %p728 = pneg %p233
        $region126: #{tpu_custom_call.1} parent=91 // pred_check_branch
          %730 = sbr.rel (%p728) target = $region128
        $region127: #{tpu_custom_call.1} parent=91 // pred_region
          %731 = dma.done [#allocation15], 256
        $region128: #{tpu_custom_call.1} parent=91 // pred_fallthru
          _
        // Predicated region
        $region129: #{tpu_custom_call.1} parent=91 // pred_check
          %p732 = pneg %p254
        $region130: #{tpu_custom_call.1} parent=91 // pred_check_branch
          %734 = sbr.rel (%p732) target = $region132
        $region131: #{tpu_custom_call.1} parent=91 // pred_region
          %735 = dma.done [#allocation18], 16
        $region132: #{tpu_custom_call.1} parent=91 // pred_fallthru
          _
        // Predicated region
        $region133: #{tpu_custom_call.1} parent=91 // pred_check
          %p736 = pneg %p275
        $region134: #{tpu_custom_call.1} parent=91 // pred_check_branch
          %738 = sbr.rel (%p736) target = $region136
        $region135: #{tpu_custom_call.1} parent=91 // pred_region
          %739 = dma.done [#allocation18], 16
        $region136: #{tpu_custom_call.1} parent=91 // pred_fallthru
          _
        // Predicated region
        $region137: #{tpu_custom_call.1} parent=91 // pred_check
          %p740 = pneg %p296
        $region138: #{tpu_custom_call.1} parent=91 // pred_check_branch
          %742 = sbr.rel (%p740) target = $region140
        $region139: #{tpu_custom_call.1} parent=91 // pred_region
          %743 = dma.done [#allocation21], 16
        $region140: #{tpu_custom_call.1} parent=91 // pred_fallthru
          _
        // Predicated region
        $region141: #{tpu_custom_call.1} parent=91 // pred_check
          %p744 = pneg %p317
        $region142: #{tpu_custom_call.1} parent=91 // pred_check_branch
          %746 = sbr.rel (%p744) target = $region144
        $region143: #{tpu_custom_call.1} parent=91 // pred_region
          %747 = dma.done [#allocation21], 256
        $region144: #{tpu_custom_call.1} parent=91 // pred_fallthru
          _
        // Predicated region
        $region145: #{tpu_custom_call.1} parent=91 // pred_check
          %p748 = pneg %p338
        $region146: #{tpu_custom_call.1} parent=91 // pred_check_branch
          %750 = sbr.rel (%p748) target = $region148
        $region147: #{tpu_custom_call.1} parent=91 // pred_region
          %751 = dma.done [#allocation24], 16
        $region148: #{tpu_custom_call.1} parent=91 // pred_fallthru
          _
        // Predicated region
        $region149: #{tpu_custom_call.1} parent=91 // pred_check
          %p752 = pneg %p359
        $region150: #{tpu_custom_call.1} parent=91 // pred_check_branch
          %754 = sbr.rel (%p752) target = $region152
        $region151: #{tpu_custom_call.1} parent=91 // pred_region
          %755 = dma.done [#allocation24], 512
        $region152: #{tpu_custom_call.1} parent=91 // pred_fallthru
          _
        // Predicated region
        $region153: #{tpu_custom_call.1} parent=91 // pred_check
          %p756 = pneg %p380
        $region154: #{tpu_custom_call.1} parent=91 // pred_check_branch
          %758 = sbr.rel (%p756) target = $region156
        $region155: #{tpu_custom_call.1} parent=91 // pred_region
          %759 = dma.done [#allocation27], 16
        $region156: #{tpu_custom_call.1} parent=91 // pred_fallthru
          _
        // Predicated region
        $region157: #{tpu_custom_call.1} parent=91 // pred_check
          %p760 = pneg %p401
        $region158: #{tpu_custom_call.1} parent=91 // pred_check_branch
          %762 = sbr.rel (%p760) target = $region160
        $region159: #{tpu_custom_call.1} parent=91 // pred_region
          %763 = dma.done [#allocation27], 16
        $region160: #{tpu_custom_call.1} parent=91 // pred_fallthru
          _
        // Predicated region
        $region161: #{tpu_custom_call.1} parent=91 // pred_check
          %p764 = pneg %p422
        $region162: #{tpu_custom_call.1} parent=91 // pred_check_branch
          %766 = sbr.rel (%p764) target = $region164
        $region163: #{tpu_custom_call.1} parent=91 // pred_region
          %767 = dma.done [#allocation30], 16
        $region164: #{tpu_custom_call.1} parent=91 // pred_fallthru
          _
        %s768 = sand.u32 %s52, 1
        %s769 = scalar_lea.sflag [#allocation3], %s768
        %s770 = sand.u32 %s52, 1
        %s771 = smul.addr %s770, 8
        %s772 = scalar_lea.vmem [#allocation2], %s771
        %p773 = pneg %p65
        %p774 = pneg %p62
        %p775 = pneg %p86
        %p776 = pneg %p83
        %p777 = pneg %p107
        %p778 = pneg %p104
        %p779 = pneg %p128
        %p780 = pneg %p125
        %p781 = pneg %p149
        %p782 = pneg %p146
        %p783 = pneg %p170
        %p784 = pneg %p167
        %p785 = pneg %p191
        %p786 = pneg %p188
        %p787 = pneg %p212
        %p788 = pneg %p209
        %p789 = pneg %p233
        %p790 = pneg %p230
        %p791 = pneg %p254
        %p792 = pneg %p251
        %p793 = pneg %p275
        %p794 = pneg %p272
        %p795 = pneg %p296
        %p796 = pneg %p293
        %p797 = pneg %p317
        %p798 = pneg %p314
        %p799 = pneg %p338
        %p800 = pneg %p335
        %p801 = pneg %p359
        %p802 = pneg %p356
        %p803 = pneg %p380
        %p804 = pneg %p377
        %p805 = pneg %p401
        %p806 = pneg %p398
        %p807 = pneg %p422
        %p808 = pneg %p419
        %p809 = pneg %p448
        %p810 = pneg %p445
        %s811 = sand.u32 %s435, 1
        %s812 = scalar_lea.sflag [#allocation4], %s811
        %s813 = sand.u32 %s435, 1
        %s814 = smul.addr %s813, 8
        %s815 = scalar_lea.vmem [#allocation31], %s814
        %v817 = vld [vmem:[%s695] sm:$0xff]
        %v818 = vld [vmem:[#allocation5] sm:$0xff]
        %v819 = vadd.f32 %v817, %v818
        %v820 = vpack.c.bf16 %v819, %v819
        %v821 = vld [vmem:[#allocation7] sm:$0xf]
        %v822 = vld [vmem:[#allocation7 + $0x4] sm:$0xf]
        %v823 = vld [vmem:[#allocation7 + $0x8] sm:$0xf]
        %v824 = vld [vmem:[#allocation7 + $0xc] sm:$0xf]
        %v825 = vld [vmem:[#allocation8] sm:$0x1]
        %v827 = vlaneseq
        %v828 = vshrl.u32 %v827, 7
        %v829 = vsub.s32 0, %v828
        %v830 = vrot.slane %v825, %v829
        %v836 = vunpack.c.l.b16 %v821
        %v837 = vunpack.c.l.b16 %v822
        %v838 = vunpack.c.l.b16 %v823
        %v839 = vunpack.c.l.b16 %v824
        %v840 = vpack.c.b16 %v837, %v836
        %v841 = vpack.c.b16 %v839, %v838
        %vm844 = vcmask 261120
        %v846 = vsel %vm844, %v820, 0
        %848 = vmatprep.subr.bf16.mxu0 0
        %849 = vmatpush1.bf16.msra.mxu0 %v840
        %850 = vmatprep.subr.bf16.mxu0 0
        %851 = vmatpush1.bf16.msra.mxu0 %v841
        %852 = vmatprep.subr.bf16.mxu0 0
        %853 = vmatpush1.bf16.msra.mxu0 0
        %854 = vmatprep.subr.bf16.mxu0 0
        %855 = vmatpush1.bf16.msra.mxu0 0
        %856 = vmatprep.subr.bf16.mxu0 0
        %857 = vmatpush1.bf16.msra.mxu0 0
        %858 = vmatprep.subr.bf16.mxu0 0
        %859 = vmatpush1.bf16.msra.mxu0 0
        %860 = vmatprep.subr.bf16.mxu0 0
        %861 = vmatpush1.bf16.msra.mxu0 0
        %862 = vmatprep.subr.bf16.mxu0 0
        %863 = vmatpush1.bf16.msra.mxu0 0
        %864 = vmatprep.subr.bf16.mxu0 0
        %865 = vmatpush1.bf16.msra.mxu0 0
        %866 = vmatprep.subr.bf16.mxu0 0
        %867 = vmatpush1.bf16.msra.mxu0 0
        %868 = vmatprep.subr.bf16.mxu0 0
        %869 = vmatpush1.bf16.msra.mxu0 0
        %870 = vmatprep.subr.bf16.mxu0 0
        %871 = vmatpush1.bf16.msra.mxu0 0
        %872 = vmatprep.subr.bf16.mxu0 0
        %873 = vmatpush1.bf16.msra.mxu0 0
        %874 = vmatprep.subr.bf16.mxu0 0
        %875 = vmatpush1.bf16.msra.mxu0 0
        %876 = vmatprep.subr.bf16.mxu0 0
        %877 = vmatpush1.bf16.msra.mxu0 0
        %878 = vmatprep.subr.bf16.mxu0 0
        %879 = vmatpush1.bf16.msra.mxu0 0
        %880 = vmatprep.mubr.bf16.mxu0 0
        %881 = vmatmul.mubr.bf16.gmra.mrb[0].mxu0 %v846
        %v882 = vpop.f32.mrb[0].mxu0
        %v883 = vadd.f32 %v830, %v882
        %v884 = vpop.f32.mrb[0].mxu0
        %v885 = vpop.f32.mrb[0].mxu0
        %v886 = vpop.f32.mrb[0].mxu0
        %887 = vdwg.mxu0
        %v888 = vld [vmem:[#allocation10] sm:$0xf]
        %v889 = vld [vmem:[#allocation10 + $0x4] sm:$0xf]
        %v890 = vld [vmem:[#allocation10 + $0x8] sm:$0xf]
        %v891 = vld [vmem:[#allocation10 + $0xc] sm:$0xf]
        %v892 = vld [vmem:[#allocation11] sm:$0x1]
        %v894 = vlaneseq
        %v895 = vshrl.u32 %v894, 7
        %v896 = vsub.s32 0, %v895
        %v897 = vrot.slane %v892, %v896
        %v903 = vunpack.c.l.b16 %v888
        %v904 = vunpack.c.l.b16 %v889
        %v905 = vunpack.c.l.b16 %v890
        %v906 = vunpack.c.l.b16 %v891
        %v907 = vpack.c.b16 %v904, %v903
        %v908 = vpack.c.b16 %v906, %v905
        %911 = vmatprep.subr.bf16.mxu0 0
        %912 = vmatpush1.bf16.msra.mxu0 %v907
        %913 = vmatprep.subr.bf16.mxu0 0
        %914 = vmatpush1.bf16.msra.mxu0 %v908
        %915 = vmatprep.subr.bf16.mxu0 0
        %916 = vmatpush1.bf16.msra.mxu0 0
        %917 = vmatprep.subr.bf16.mxu0 0
        %918 = vmatpush1.bf16.msra.mxu0 0
        %919 = vmatprep.subr.bf16.mxu0 0
        %920 = vmatpush1.bf16.msra.mxu0 0
        %921 = vmatprep.subr.bf16.mxu0 0
        %922 = vmatpush1.bf16.msra.mxu0 0
        %923 = vmatprep.subr.bf16.mxu0 0
        %924 = vmatpush1.bf16.msra.mxu0 0
        %925 = vmatprep.subr.bf16.mxu0 0
        %926 = vmatpush1.bf16.msra.mxu0 0
        %927 = vmatprep.subr.bf16.mxu0 0
        %928 = vmatpush1.bf16.msra.mxu0 0
        %929 = vmatprep.subr.bf16.mxu0 0
        %930 = vmatpush1.bf16.msra.mxu0 0
        %931 = vmatprep.subr.bf16.mxu0 0
        %932 = vmatpush1.bf16.msra.mxu0 0
        %933 = vmatprep.subr.bf16.mxu0 0
        %934 = vmatpush1.bf16.msra.mxu0 0
        %935 = vmatprep.subr.bf16.mxu0 0
        %936 = vmatpush1.bf16.msra.mxu0 0
        %937 = vmatprep.subr.bf16.mxu0 0
        %938 = vmatpush1.bf16.msra.mxu0 0
        %939 = vmatprep.subr.bf16.mxu0 0
        %940 = vmatpush1.bf16.msra.mxu0 0
        %941 = vmatprep.subr.bf16.mxu0 0
        %942 = vmatpush1.bf16.msra.mxu0 0
        %943 = vmatprep.mubr.bf16.mxu0 0
        %944 = vmatmul.mubr.bf16.gmra.mrb[0].mxu0 %v846
        %v945 = vpop.f32.mrb[0].mxu0
        %v946 = vadd.f32 %v897, %v945
        %v947 = vpop.f32.mrb[0].mxu0
        %v948 = vpop.f32.mrb[0].mxu0
        %v949 = vpop.f32.mrb[0].mxu0
        %950 = vdwg.mxu0
        %v951 = vld [vmem:[#allocation13] sm:$0xf]
        %v952 = vld [vmem:[#allocation13 + $0x4] sm:$0xf]
        %v953 = vld [vmem:[#allocation13 + $0x8] sm:$0xf]
        %v954 = vld [vmem:[#allocation13 + $0xc] sm:$0xf]
        %v955 = vld [vmem:[#allocation14] sm:$0x1]
        %v957 = vlaneseq
        %v958 = vshrl.u32 %v957, 7
        %v959 = vsub.s32 0, %v958
        %v960 = vrot.slane %v955, %v959
        %v966 = vunpack.c.l.b16 %v951
        %v967 = vunpack.c.l.b16 %v952
        %v968 = vunpack.c.l.b16 %v953
        %v969 = vunpack.c.l.b16 %v954
        %v970 = vpack.c.b16 %v967, %v966
        %v971 = vpack.c.b16 %v969, %v968
        %974 = vmatprep.subr.bf16.mxu0 0
        %975 = vmatpush1.bf16.msra.mxu0 %v970
        %976 = vmatprep.subr.bf16.mxu0 0
        %977 = vmatpush1.bf16.msra.mxu0 %v971
        %978 = vmatprep.subr.bf16.mxu0 0
        %979 = vmatpush1.bf16.msra.mxu0 0
        %980 = vmatprep.subr.bf16.mxu0 0
        %981 = vmatpush1.bf16.msra.mxu0 0
        %982 = vmatprep.subr.bf16.mxu0 0
        %983 = vmatpush1.bf16.msra.mxu0 0
        %984 = vmatprep.subr.bf16.mxu0 0
        %985 = vmatpush1.bf16.msra.mxu0 0
        %986 = vmatprep.subr.bf16.mxu0 0
        %987 = vmatpush1.bf16.msra.mxu0 0
        %988 = vmatprep.subr.bf16.mxu0 0
        %989 = vmatpush1.bf16.msra.mxu0 0
        %990 = vmatprep.subr.bf16.mxu0 0
        %991 = vmatpush1.bf16.msra.mxu0 0
        %992 = vmatprep.subr.bf16.mxu0 0
        %993 = vmatpush1.bf16.msra.mxu0 0
        %994 = vmatprep.subr.bf16.mxu0 0
        %995 = vmatpush1.bf16.msra.mxu0 0
        %996 = vmatprep.subr.bf16.mxu0 0
        %997 = vmatpush1.bf16.msra.mxu0 0
        %998 = vmatprep.subr.bf16.mxu0 0
        %999 = vmatpush1.bf16.msra.mxu0 0
        %1000 = vmatprep.subr.bf16.mxu0 0
        %1001 = vmatpush1.bf16.msra.mxu0 0
        %1002 = vmatprep.subr.bf16.mxu0 0
        %1003 = vmatpush1.bf16.msra.mxu0 0
        %1004 = vmatprep.subr.bf16.mxu0 0
        %1005 = vmatpush1.bf16.msra.mxu0 0
        %1006 = vmatprep.mubr.bf16.mxu0 0
        %1007 = vmatmul.mubr.bf16.gmra.mrb[0].mxu0 %v846
        %v1008 = vpop.f32.mrb[0].mxu0
        %v1009 = vadd.f32 %v960, %v1008
        %v1010 = vpop.f32.mrb[0].mxu0
        %v1011 = vpop.f32.mrb[0].mxu0
        %v1012 = vpop.f32.mrb[0].mxu0
        %1013 = vdwg.mxu0
        %v1014 = vpack.c.bf16 %v883, %v883
        %v1015 = vpack.c.bf16 %v946, %v946
        %v1016 = vpack.c.bf16 %v1009, %v1009
        %vm1017 = vcmask 64512
        %v1019 = vsel %vm1017, %v1014, 0
        %v1022 = vsel %vm1017, %v1015, 0
        %1024 = vmatprep.subr.bf16.mxu0 0
        %1025 = vmatpush1.bf16.xpose.msra.mxu0 %v1022
        %1026 = vmatprep.subr.bf16.mxu0 0
        %1027 = vmatpush1.bf16.xpose.msra.mxu0 0
        %1028 = vmatprep.subr.bf16.mxu0 0
        %1029 = vmatpush1.bf16.xpose.msra.mxu0 0
        %1030 = vmatprep.subr.bf16.mxu0 0
        %1031 = vmatpush1.bf16.xpose.msra.mxu0 0
        %1032 = vmatprep.subr.bf16.mxu0 0
        %1033 = vmatpush1.bf16.xpose.msra.mxu0 0
        %1034 = vmatprep.subr.bf16.mxu0 0
        %1035 = vmatpush1.bf16.xpose.msra.mxu0 0
        %1036 = vmatprep.subr.bf16.mxu0 0
        %1037 = vmatpush1.bf16.xpose.msra.mxu0 0
        %1038 = vmatprep.subr.bf16.mxu0 0
        %1039 = vmatpush1.bf16.xpose.msra.mxu0 0
        %1040 = vmatprep.subr.bf16.mxu0 0
        %1041 = vmatpush1.bf16.xpose.msra.mxu0 0
        %1042 = vmatprep.subr.bf16.mxu0 0
        %1043 = vmatpush1.bf16.xpose.msra.mxu0 0
        %1044 = vmatprep.subr.bf16.mxu0 0
        %1045 = vmatpush1.bf16.xpose.msra.mxu0 0
        %1046 = vmatprep.subr.bf16.mxu0 0
        %1047 = vmatpush1.bf16.xpose.msra.mxu0 0
        %1048 = vmatprep.subr.bf16.mxu0 0
        %1049 = vmatpush1.bf16.xpose.msra.mxu0 0
        %1050 = vmatprep.subr.bf16.mxu0 0
        %1051 = vmatpush1.bf16.xpose.msra.mxu0 0
        %1052 = vmatprep.subr.bf16.mxu0 0
        %1053 = vmatpush1.bf16.xpose.msra.mxu0 0
        %1054 = vmatprep.subr.bf16.mxu0 0
        %1055 = vmatpush1.bf16.xpose.msra.mxu0 0
        %1056 = vmatprep.mubr.bf16.mxu0 0
        %1057 = vmatmul.mubr.bf16.gmra.mrb[0].mxu0 %v1019
        %v1058 = vpop.f32.mrb[0].mxu0
        %v1059 = vadd.f32 0.0, %v1058
        %v1060 = vpop.f32.mrb[0].mxu0
        %v1061 = vpop.f32.mrb[0].mxu0
        %v1062 = vpop.f32.mrb[0].mxu0
        %1063 = vdwg.mxu0
        %v1064 = vsel %vm1017, %v1059, -inf
        %1065 = vmax.xlane.f32.xlu0 %v1064
        %v1066 = vpop.xlane.xlu0 %1065
        %v1067 = vsub.f32 %v1059, %v1066
        %v1068 = vmul.f32 %v1067, 1.442695
        %v1069 = vpow.pop %v1068
        %v1070 = vsel %vm1017, %v1069, 0.0
        %1071 = vadd.xlane.f32.xlu0 %v1070
        %v1072 = vpop.xlane.xlu0 %1071
        %v1073 = vrcp.pop %v1072
        %v1074 = vmul.f32 %v1069, %v1073
        %v1075 = vpack.c.bf16 %v1074, %v1074
        %v1077 = vsel %vm1017, %v1075, 0
        %vm1079 = vcmask 1043456
        %v1081 = vsel %vm1079, %v1016, 0
        %1083 = vmatprep.subr.bf16.mxu0 0
        %1084 = vmatpush1.bf16.msra.mxu0 %v1081
        %1085 = vmatprep.subr.bf16.mxu0 0
        %1086 = vmatpush1.bf16.msra.mxu0 0
        %1087 = vmatprep.subr.bf16.mxu0 0
        %1088 = vmatpush1.bf16.msra.mxu0 0
        %1089 = vmatprep.subr.bf16.mxu0 0
        %1090 = vmatpush1.bf16.msra.mxu0 0
        %1091 = vmatprep.subr.bf16.mxu0 0
        %1092 = vmatpush1.bf16.msra.mxu0 0
        %1093 = vmatprep.subr.bf16.mxu0 0
        %1094 = vmatpush1.bf16.msra.mxu0 0
        %1095 = vmatprep.subr.bf16.mxu0 0
        %1096 = vmatpush1.bf16.msra.mxu0 0
        %1097 = vmatprep.subr.bf16.mxu0 0
        %1098 = vmatpush1.bf16.msra.mxu0 0
        %1099 = vmatprep.subr.bf16.mxu0 0
        %1100 = vmatpush1.bf16.msra.mxu0 0
        %1101 = vmatprep.subr.bf16.mxu0 0
        %1102 = vmatpush1.bf16.msra.mxu0 0
        %1103 = vmatprep.subr.bf16.mxu0 0
        %1104 = vmatpush1.bf16.msra.mxu0 0
        %1105 = vmatprep.subr.bf16.mxu0 0
        %1106 = vmatpush1.bf16.msra.mxu0 0
        %1107 = vmatprep.subr.bf16.mxu0 0
        %1108 = vmatpush1.bf16.msra.mxu0 0
        %1109 = vmatprep.subr.bf16.mxu0 0
        %1110 = vmatpush1.bf16.msra.mxu0 0
        %1111 = vmatprep.subr.bf16.mxu0 0
        %1112 = vmatpush1.bf16.msra.mxu0 0
        %1113 = vmatprep.subr.bf16.mxu0 0
        %1114 = vmatpush1.bf16.msra.mxu0 0
        %1115 = vmatprep.mubr.bf16.mxu0 0
        %1116 = vmatmul.mubr.bf16.gmra.mrb[0].mxu0 %v1077
        %v1117 = vpop.f32.mrb[0].mxu0
        %v1118 = vadd.f32 0.0, %v1117
        %v1119 = vpop.f32.mrb[0].mxu0
        %v1120 = vpop.f32.mrb[0].mxu0
        %v1121 = vpop.f32.mrb[0].mxu0
        %1122 = vdwg.mxu0
        %v1123 = vpack.c.bf16 %v1118, %v1118
        %1125 = vrot.lane.b32.xlu0 %v1014, 120
        %v1126 = vpop.permute.xlu0 %1125
        %1128 = vrot.lane.b32.xlu0 %v1015, 120
        %v1129 = vpop.permute.xlu0 %1128
        %v1131 = vsel %vm1017, %v1126, 0
        %v1134 = vsel %vm1017, %v1129, 0
        %1136 = vmatprep.subr.bf16.mxu0 0
        %1137 = vmatpush1.bf16.xpose.msra.mxu0 %v1134
        %1138 = vmatprep.subr.bf16.mxu0 0
        %1139 = vmatpush1.bf16.xpose.msra.mxu0 0
        %1140 = vmatprep.subr.bf16.mxu0 0
        %1141 = vmatpush1.bf16.xpose.msra.mxu0 0
        %1142 = vmatprep.subr.bf16.mxu0 0
        %1143 = vmatpush1.bf16.xpose.msra.mxu0 0
        %1144 = vmatprep.subr.bf16.mxu0 0
        %1145 = vmatpush1.bf16.xpose.msra.mxu0 0
        %1146 = vmatprep.subr.bf16.mxu0 0
        %1147 = vmatpush1.bf16.xpose.msra.mxu0 0
        %1148 = vmatprep.subr.bf16.mxu0 0
        %1149 = vmatpush1.bf16.xpose.msra.mxu0 0
        %1150 = vmatprep.subr.bf16.mxu0 0
        %1151 = vmatpush1.bf16.xpose.msra.mxu0 0
        %1152 = vmatprep.subr.bf16.mxu0 0
        %1153 = vmatpush1.bf16.xpose.msra.mxu0 0
        %1154 = vmatprep.subr.bf16.mxu0 0
        %1155 = vmatpush1.bf16.xpose.msra.mxu0 0
        %1156 = vmatprep.subr.bf16.mxu0 0
        %1157 = vmatpush1.bf16.xpose.msra.mxu0 0
        %1158 = vmatprep.subr.bf16.mxu0 0
        %1159 = vmatpush1.bf16.xpose.msra.mxu0 0
        %1160 = vmatprep.subr.bf16.mxu0 0
        %1161 = vmatpush1.bf16.xpose.msra.mxu0 0
        %1162 = vmatprep.subr.bf16.mxu0 0
        %1163 = vmatpush1.bf16.xpose.msra.mxu0 0
        %1164 = vmatprep.subr.bf16.mxu0 0
        %1165 = vmatpush1.bf16.xpose.msra.mxu0 0
        %1166 = vmatprep.subr.bf16.mxu0 0
        %1167 = vmatpush1.bf16.xpose.msra.mxu0 0
        %1168 = vmatprep.mubr.bf16.mxu0 0
        %1169 = vmatmul.mubr.bf16.gmra.mrb[0].mxu0 %v1131
        %v1170 = vpop.f32.mrb[0].mxu0
        %v1171 = vadd.f32 0.0, %v1170
        %v1172 = vpop.f32.mrb[0].mxu0
        %v1173 = vpop.f32.mrb[0].mxu0
        %v1174 = vpop.f32.mrb[0].mxu0
        %1175 = vdwg.mxu0
        %v1176 = vsel %vm1017, %v1171, -inf
        %1177 = vmax.xlane.f32.xlu0 %v1176
        %v1178 = vpop.xlane.xlu0 %1177
        %v1179 = vsub.f32 %v1171, %v1178
        %v1180 = vmul.f32 %v1179, 1.442695
        %v1181 = vpow.pop %v1180
        %v1182 = vsel %vm1017, %v1181, 0.0
        %1183 = vadd.xlane.f32.xlu0 %v1182
        %v1184 = vpop.xlane.xlu0 %1183
        %v1185 = vrcp.pop %v1184
        %v1186 = vmul.f32 %v1181, %v1185
        %v1187 = vpack.c.bf16 %v1186, %v1186
        %1189 = vrot.lane.b32.xlu0 %v1016, 120
        %v1190 = vpop.permute.xlu0 %1189
        %v1192 = vsel %vm1017, %v1187, 0
        %v1195 = vsel %vm1079, %v1190, 0
        %1197 = vmatprep.subr.bf16.mxu0 0
        %1198 = vmatpush1.bf16.msra.mxu0 %v1195
        %1199 = vmatprep.subr.bf16.mxu0 0
        %1200 = vmatpush1.bf16.msra.mxu0 0
        %1201 = vmatprep.subr.bf16.mxu0 0
        %1202 = vmatpush1.bf16.msra.mxu0 0
        %1203 = vmatprep.subr.bf16.mxu0 0
        %1204 = vmatpush1.bf16.msra.mxu0 0
        %1205 = vmatprep.subr.bf16.mxu0 0
        %1206 = vmatpush1.bf16.msra.mxu0 0
        %1207 = vmatprep.subr.bf16.mxu0 0
        %1208 = vmatpush1.bf16.msra.mxu0 0
        %1209 = vmatprep.subr.bf16.mxu0 0
        %1210 = vmatpush1.bf16.msra.mxu0 0
        %1211 = vmatprep.subr.bf16.mxu0 0
        %1212 = vmatpush1.bf16.msra.mxu0 0
        %1213 = vmatprep.subr.bf16.mxu0 0
        %1214 = vmatpush1.bf16.msra.mxu0 0
        %1215 = vmatprep.subr.bf16.mxu0 0
        %1216 = vmatpush1.bf16.msra.mxu0 0
        %1217 = vmatprep.subr.bf16.mxu0 0
        %1218 = vmatpush1.bf16.msra.mxu0 0
        %1219 = vmatprep.subr.bf16.mxu0 0
        %1220 = vmatpush1.bf16.msra.mxu0 0
        %1221 = vmatprep.subr.bf16.mxu0 0
        %1222 = vmatpush1.bf16.msra.mxu0 0
        %1223 = vmatprep.subr.bf16.mxu0 0
        %1224 = vmatpush1.bf16.msra.mxu0 0
        %1225 = vmatprep.subr.bf16.mxu0 0
        %1226 = vmatpush1.bf16.msra.mxu0 0
        %1227 = vmatprep.subr.bf16.mxu0 0
        %1228 = vmatpush1.bf16.msra.mxu0 0
        %1229 = vmatprep.mubr.bf16.mxu0 0
        %1230 = vmatmul.mubr.bf16.gmra.mrb[0].mxu0 %v1192
        %v1231 = vpop.f32.mrb[0].mxu0
        %v1232 = vadd.f32 0.0, %v1231
        %v1233 = vpop.f32.mrb[0].mxu0
        %v1234 = vpop.f32.mrb[0].mxu0
        %v1235 = vpop.f32.mrb[0].mxu0
        %1236 = vdwg.mxu0
        %v1237 = vpack.c.bf16 %v1232, %v1232
        %1238 = vrot.lane.b32.xlu0 %v1014, 112
        %v1239 = vpop.permute.xlu0 %1238
        %1240 = vrot.lane.b32.xlu0 %v1015, 112
        %v1241 = vpop.permute.xlu0 %1240
        %v1243 = vsel %vm1017, %v1239, 0
        %v1246 = vsel %vm1017, %v1241, 0
        %1248 = vmatprep.subr.bf16.mxu0 0
        %1249 = vmatpush1.bf16.xpose.msra.mxu0 %v1246
        %1250 = vmatprep.subr.bf16.mxu0 0
        %1251 = vmatpush1.bf16.xpose.msra.mxu0 0
        %1252 = vmatprep.subr.bf16.mxu0 0
        %1253 = vmatpush1.bf16.xpose.msra.mxu0 0
        %1254 = vmatprep.subr.bf16.mxu0 0
        %1255 = vmatpush1.bf16.xpose.msra.mxu0 0
        %1256 = vmatprep.subr.bf16.mxu0 0
        %1257 = vmatpush1.bf16.xpose.msra.mxu0 0
        %1258 = vmatprep.subr.bf16.mxu0 0
        %1259 = vmatpush1.bf16.xpose.msra.mxu0 0
        %1260 = vmatprep.subr.bf16.mxu0 0
        %1261 = vmatpush1.bf16.xpose.msra.mxu0 0
        %1262 = vmatprep.subr.bf16.mxu0 0
        %1263 = vmatpush1.bf16.xpose.msra.mxu0 0
        %1264 = vmatprep.subr.bf16.mxu0 0
        %1265 = vmatpush1.bf16.xpose.msra.mxu0 0
        %1266 = vmatprep.subr.bf16.mxu0 0
        %1267 = vmatpush1.bf16.xpose.msra.mxu0 0
        %1268 = vmatprep.subr.bf16.mxu0 0
        %1269 = vmatpush1.bf16.xpose.msra.mxu0 0
        %1270 = vmatprep.subr.bf16.mxu0 0
        %1271 = vmatpush1.bf16.xpose.msra.mxu0 0
        %1272 = vmatprep.subr.bf16.mxu0 0
        %1273 = vmatpush1.bf16.xpose.msra.mxu0 0
        %1274 = vmatprep.subr.bf16.mxu0 0
        %1275 = vmatpush1.bf16.xpose.msra.mxu0 0
        %1276 = vmatprep.subr.bf16.mxu0 0
        %1277 = vmatpush1.bf16.xpose.msra.mxu0 0
        %1278 = vmatprep.subr.bf16.mxu0 0
        %1279 = vmatpush1.bf16.xpose.msra.mxu0 0
        %1280 = vmatprep.mubr.bf16.mxu0 0
        %1281 = vmatmul.mubr.bf16.gmra.mrb[0].mxu0 %v1243
        %v1282 = vpop.f32.mrb[0].mxu0
        %v1283 = vadd.f32 0.0, %v1282
        %v1284 = vpop.f32.mrb[0].mxu0
        %v1285 = vpop.f32.mrb[0].mxu0
        %v1286 = vpop.f32.mrb[0].mxu0
        %1287 = vdwg.mxu0
        %v1288 = vsel %vm1017, %v1283, -inf
        %1289 = vmax.xlane.f32.xlu0 %v1288
        %v1290 = vpop.xlane.xlu0 %1289
        %v1291 = vsub.f32 %v1283, %v1290
        %v1292 = vmul.f32 %v1291, 1.442695
        %v1293 = vpow.pop %v1292
        %v1294 = vsel %vm1017, %v1293, 0.0
        %1295 = vadd.xlane.f32.xlu0 %v1294
        %v1296 = vpop.xlane.xlu0 %1295
        %v1297 = vrcp.pop %v1296
        %v1298 = vmul.f32 %v1293, %v1297
        %v1299 = vpack.c.bf16 %v1298, %v1298
        %1300 = vrot.lane.b32.xlu0 %v1016, 112
        %v1301 = vpop.permute.xlu0 %1300
        %v1303 = vsel %vm1017, %v1299, 0
        %v1306 = vsel %vm1079, %v1301, 0
        %1308 = vmatprep.subr.bf16.mxu0 0
        %1309 = vmatpush1.bf16.msra.mxu0 %v1306
        %1310 = vmatprep.subr.bf16.mxu0 0
        %1311 = vmatpush1.bf16.msra.mxu0 0
        %1312 = vmatprep.subr.bf16.mxu0 0
        %1313 = vmatpush1.bf16.msra.mxu0 0
        %1314 = vmatprep.subr.bf16.mxu0 0
        %1315 = vmatpush1.bf16.msra.mxu0 0
        %1316 = vmatprep.subr.bf16.mxu0 0
        %1317 = vmatpush1.bf16.msra.mxu0 0
        %1318 = vmatprep.subr.bf16.mxu0 0
        %1319 = vmatpush1.bf16.msra.mxu0 0
        %1320 = vmatprep.subr.bf16.mxu0 0
        %1321 = vmatpush1.bf16.msra.mxu0 0
        %1322 = vmatprep.subr.bf16.mxu0 0
        %1323 = vmatpush1.bf16.msra.mxu0 0
        %1324 = vmatprep.subr.bf16.mxu0 0
        %1325 = vmatpush1.bf16.msra.mxu0 0
        %1326 = vmatprep.subr.bf16.mxu0 0
        %1327 = vmatpush1.bf16.msra.mxu0 0
        %1328 = vmatprep.subr.bf16.mxu0 0
        %1329 = vmatpush1.bf16.msra.mxu0 0
        %1330 = vmatprep.subr.bf16.mxu0 0
        %1331 = vmatpush1.bf16.msra.mxu0 0
        %1332 = vmatprep.subr.bf16.mxu0 0
        %1333 = vmatpush1.bf16.msra.mxu0 0
        %1334 = vmatprep.subr.bf16.mxu0 0
        %1335 = vmatpush1.bf16.msra.mxu0 0
        %1336 = vmatprep.subr.bf16.mxu0 0
        %1337 = vmatpush1.bf16.msra.mxu0 0
        %1338 = vmatprep.subr.bf16.mxu0 0
        %1339 = vmatpush1.bf16.msra.mxu0 0
        %1340 = vmatprep.mubr.bf16.mxu0 0
        %1341 = vmatmul.mubr.bf16.gmra.mrb[0].mxu0 %v1303
        %v1342 = vpop.f32.mrb[0].mxu0
        %v1343 = vadd.f32 0.0, %v1342
        %v1344 = vpop.f32.mrb[0].mxu0
        %v1345 = vpop.f32.mrb[0].mxu0
        %v1346 = vpop.f32.mrb[0].mxu0
        %1347 = vdwg.mxu0
        %v1348 = vpack.c.bf16 %v1343, %v1343
        %1349 = vrot.lane.b32.xlu0 %v1014, 104
        %v1350 = vpop.permute.xlu0 %1349
        %1351 = vrot.lane.b32.xlu0 %v1015, 104
        %v1352 = vpop.permute.xlu0 %1351
        %v1354 = vsel %vm1017, %v1350, 0
        %v1357 = vsel %vm1017, %v1352, 0
        %1359 = vmatprep.subr.bf16.mxu0 0
        %1360 = vmatpush1.bf16.xpose.msra.mxu0 %v1357
        %1361 = vmatprep.subr.bf16.mxu0 0
        %1362 = vmatpush1.bf16.xpose.msra.mxu0 0
        %1363 = vmatprep.subr.bf16.mxu0 0
        %1364 = vmatpush1.bf16.xpose.msra.mxu0 0
        %1365 = vmatprep.subr.bf16.mxu0 0
        %1366 = vmatpush1.bf16.xpose.msra.mxu0 0
        %1367 = vmatprep.subr.bf16.mxu0 0
        %1368 = vmatpush1.bf16.xpose.msra.mxu0 0
        %1369 = vmatprep.subr.bf16.mxu0 0
        %1370 = vmatpush1.bf16.xpose.msra.mxu0 0
        %1371 = vmatprep.subr.bf16.mxu0 0
        %1372 = vmatpush1.bf16.xpose.msra.mxu0 0
        %1373 = vmatprep.subr.bf16.mxu0 0
        %1374 = vmatpush1.bf16.xpose.msra.mxu0 0
        %1375 = vmatprep.subr.bf16.mxu0 0
        %1376 = vmatpush1.bf16.xpose.msra.mxu0 0
        %1377 = vmatprep.subr.bf16.mxu0 0
        %1378 = vmatpush1.bf16.xpose.msra.mxu0 0
        %1379 = vmatprep.subr.bf16.mxu0 0
        %1380 = vmatpush1.bf16.xpose.msra.mxu0 0
        %1381 = vmatprep.subr.bf16.mxu0 0
        %1382 = vmatpush1.bf16.xpose.msra.mxu0 0
        %1383 = vmatprep.subr.bf16.mxu0 0
        %1384 = vmatpush1.bf16.xpose.msra.mxu0 0
        %1385 = vmatprep.subr.bf16.mxu0 0
        %1386 = vmatpush1.bf16.xpose.msra.mxu0 0
        %1387 = vmatprep.subr.bf16.mxu0 0
        %1388 = vmatpush1.bf16.xpose.msra.mxu0 0
        %1389 = vmatprep.subr.bf16.mxu0 0
        %1390 = vmatpush1.bf16.xpose.msra.mxu0 0
        %1391 = vmatprep.mubr.bf16.mxu0 0
        %1392 = vmatmul.mubr.bf16.gmra.mrb[0].mxu0 %v1354
        %v1393 = vpop.f32.mrb[0].mxu0
        %v1394 = vadd.f32 0.0, %v1393
        %v1395 = vpop.f32.mrb[0].mxu0
        %v1396 = vpop.f32.mrb[0].mxu0
        %v1397 = vpop.f32.mrb[0].mxu0
        %1398 = vdwg.mxu0
        %v1399 = vsel %vm1017, %v1394, -inf
        %1400 = vmax.xlane.f32.xlu0 %v1399
        %v1401 = vpop.xlane.xlu0 %1400
        %v1402 = vsub.f32 %v1394, %v1401
        %v1403 = vmul.f32 %v1402, 1.442695
        %v1404 = vpow.pop %v1403
        %v1405 = vsel %vm1017, %v1404, 0.0
        %1406 = vadd.xlane.f32.xlu0 %v1405
        %v1407 = vpop.xlane.xlu0 %1406
        %v1408 = vrcp.pop %v1407
        %v1409 = vmul.f32 %v1404, %v1408
        %v1410 = vpack.c.bf16 %v1409, %v1409
        %1411 = vrot.lane.b32.xlu0 %v1016, 104
        %v1412 = vpop.permute.xlu0 %1411
        %v1414 = vsel %vm1017, %v1410, 0
        %v1417 = vsel %vm1079, %v1412, 0
        %1419 = vmatprep.subr.bf16.mxu0 0
        %1420 = vmatpush1.bf16.msra.mxu0 %v1417
        %1421 = vmatprep.subr.bf16.mxu0 0
        %1422 = vmatpush1.bf16.msra.mxu0 0
        %1423 = vmatprep.subr.bf16.mxu0 0
        %1424 = vmatpush1.bf16.msra.mxu0 0
        %1425 = vmatprep.subr.bf16.mxu0 0
        %1426 = vmatpush1.bf16.msra.mxu0 0
        %1427 = vmatprep.subr.bf16.mxu0 0
        %1428 = vmatpush1.bf16.msra.mxu0 0
        %1429 = vmatprep.subr.bf16.mxu0 0
        %1430 = vmatpush1.bf16.msra.mxu0 0
        %1431 = vmatprep.subr.bf16.mxu0 0
        %1432 = vmatpush1.bf16.msra.mxu0 0
        %1433 = vmatprep.subr.bf16.mxu0 0
        %1434 = vmatpush1.bf16.msra.mxu0 0
        %1435 = vmatprep.subr.bf16.mxu0 0
        %1436 = vmatpush1.bf16.msra.mxu0 0
        %1437 = vmatprep.subr.bf16.mxu0 0
        %1438 = vmatpush1.bf16.msra.mxu0 0
        %1439 = vmatprep.subr.bf16.mxu0 0
        %1440 = vmatpush1.bf16.msra.mxu0 0
        %1441 = vmatprep.subr.bf16.mxu0 0
        %1442 = vmatpush1.bf16.msra.mxu0 0
        %1443 = vmatprep.subr.bf16.mxu0 0
        %1444 = vmatpush1.bf16.msra.mxu0 0
        %1445 = vmatprep.subr.bf16.mxu0 0
        %1446 = vmatpush1.bf16.msra.mxu0 0
        %1447 = vmatprep.subr.bf16.mxu0 0
        %1448 = vmatpush1.bf16.msra.mxu0 0
        %1449 = vmatprep.subr.bf16.mxu0 0
        %1450 = vmatpush1.bf16.msra.mxu0 0
        %1451 = vmatprep.mubr.bf16.mxu0 0
        %1452 = vmatmul.mubr.bf16.gmra.mrb[0].mxu0 %v1414
        %v1453 = vpop.f32.mrb[0].mxu0
        %v1454 = vadd.f32 0.0, %v1453
        %v1455 = vpop.f32.mrb[0].mxu0
        %v1456 = vpop.f32.mrb[0].mxu0
        %v1457 = vpop.f32.mrb[0].mxu0
        %1458 = vdwg.mxu0
        %v1459 = vpack.c.bf16 %v1454, %v1454
        %1461 = vrot.lane.b32.xlu0 %v1237, 8
        %v1462 = vpop.permute.xlu0 %1461
        %1464 = vrot.lane.b32.xlu0 %v1348, 16
        %v1465 = vpop.permute.xlu0 %1464
        %1467 = vrot.lane.b32.xlu0 %v1459, 24
        %v1468 = vpop.permute.xlu0 %1467
        %v1471 = vsel %vm1017, %v1123, %v1462
        %vm1472 = vcmask 130048
        %v1474 = vsel %vm1472, %v1471, %v1465
        %vm1475 = vcmask 195584
        %v1477 = vsel %vm1475, %v1474, %v1468
        %v1478 = vld [vmem:[#allocation16] sm:$0xf]
        %v1479 = vld [vmem:[#allocation16 + $0x4] sm:$0xf]
        %v1480 = vld [vmem:[#allocation16 + $0x8] sm:$0xf]
        %v1481 = vld [vmem:[#allocation16 + $0xc] sm:$0xf]
        %v1482 = vld [vmem:[#allocation17] sm:$0x1]
        %v1484 = vlaneseq
        %v1485 = vshrl.u32 %v1484, 7
        %v1486 = vsub.s32 0, %v1485
        %v1487 = vrot.slane %v1482, %v1486
        %v1493 = vunpack.c.l.b16 %v1478
        %v1494 = vunpack.c.l.b16 %v1479
        %v1495 = vunpack.c.l.b16 %v1480
        %v1496 = vunpack.c.l.b16 %v1481
        %v1497 = vpack.c.b16 %v1494, %v1493
        %v1498 = vpack.c.b16 %v1496, %v1495
        %v1501 = vsel %vm844, %v1477, 0
        %1503 = vmatprep.subr.bf16.mxu0 0
        %1504 = vmatpush1.bf16.msra.mxu0 %v1497
        %1505 = vmatprep.subr.bf16.mxu0 0
        %1506 = vmatpush1.bf16.msra.mxu0 %v1498
        %1507 = vmatprep.subr.bf16.mxu0 0
        %1508 = vmatpush1.bf16.msra.mxu0 0
        %1509 = vmatprep.subr.bf16.mxu0 0
        %1510 = vmatpush1.bf16.msra.mxu0 0
        %1511 = vmatprep.subr.bf16.mxu0 0
        %1512 = vmatpush1.bf16.msra.mxu0 0
        %1513 = vmatprep.subr.bf16.mxu0 0
        %1514 = vmatpush1.bf16.msra.mxu0 0
        %1515 = vmatprep.subr.bf16.mxu0 0
        %1516 = vmatpush1.bf16.msra.mxu0 0
        %1517 = vmatprep.subr.bf16.mxu0 0
        %1518 = vmatpush1.bf16.msra.mxu0 0
        %1519 = vmatprep.subr.bf16.mxu0 0
        %1520 = vmatpush1.bf16.msra.mxu0 0
        %1521 = vmatprep.subr.bf16.mxu0 0
        %1522 = vmatpush1.bf16.msra.mxu0 0
        %1523 = vmatprep.subr.bf16.mxu0 0
        %1524 = vmatpush1.bf16.msra.mxu0 0
        %1525 = vmatprep.subr.bf16.mxu0 0
        %1526 = vmatpush1.bf16.msra.mxu0 0
        %1527 = vmatprep.subr.bf16.mxu0 0
        %1528 = vmatpush1.bf16.msra.mxu0 0
        %1529 = vmatprep.subr.bf16.mxu0 0
        %1530 = vmatpush1.bf16.msra.mxu0 0
        %1531 = vmatprep.subr.bf16.mxu0 0
        %1532 = vmatpush1.bf16.msra.mxu0 0
        %1533 = vmatprep.subr.bf16.mxu0 0
        %1534 = vmatpush1.bf16.msra.mxu0 0
        %1535 = vmatprep.mubr.bf16.mxu0 0
        %1536 = vmatmul.mubr.bf16.gmra.mrb[0].mxu0 %v1501
        %v1537 = vpop.f32.mrb[0].mxu0
        %v1538 = vadd.f32 %v1487, %v1537
        %v1539 = vpop.f32.mrb[0].mxu0
        %v1540 = vpop.f32.mrb[0].mxu0
        %v1541 = vpop.f32.mrb[0].mxu0
        %1542 = vdwg.mxu0
        %v1543 = vadd.f32 %v819, %v1538
        %v1544 = vld [vmem:[#allocation19] sm:$0x1]
        %v1545 = vld [vmem:[#allocation20] sm:$0x1]
        %v1546 = vsel %vm844, %v1543, 0.0
        %1547 = vadd.xlane.f32.xlu0 %v1546
        %v1548 = vpop.xlane.xlu0 %1547
        %v1549 = vrcp.pop 32.0
        %v1550 = vmul.f32 %v1548, %v1549
        %v1551 = vsub.f32 %v1543, %v1550
        %v1552 = vmul.f32 %v1551, %v1551
        %v1553 = vsel %vm844, %v1552, 0.0
        %1554 = vadd.xlane.f32.xlu0 %v1553
        %v1555 = vpop.xlane.xlu0 %1554
        %v1556 = vmul.f32 %v1555, %v1549
        %v1557 = vadd.f32 %v1556, 1e-05
        %v1558 = vrsqrt.pop %v1557
        %v1559 = vmul.f32 %v1551, %v1558
        %v1561 = vlaneseq
        %v1562 = vshrl.u32 %v1561, 7
        %v1563 = vsub.s32 0, %v1562
        %v1564 = vrot.slane %v1544, %v1563
        %v1566 = vmul.f32 %v1559, %v1564
        %v1568 = vlaneseq
        %v1569 = vshrl.u32 %v1568, 7
        %v1570 = vsub.s32 0, %v1569
        %v1571 = vrot.slane %v1545, %v1570
        %v1573 = vadd.f32 %v1566, %v1571
        %v1574 = vpack.c.bf16 %v1573, %v1573
        %v1575 = vld [vmem:[#allocation22] sm:$0xf]
        %v1576 = vld [vmem:[#allocation22 + $0x4] sm:$0xf]
        %v1577 = vld [vmem:[#allocation22 + $0x8] sm:$0xf]
        %v1578 = vld [vmem:[#allocation22 + $0xc] sm:$0xf]
        %v1579 = vld [vmem:[#allocation23] sm:$0x1]
        %v1581 = vlaneseq
        %v1582 = vshrl.u32 %v1581, 7
        %v1583 = vsub.s32 0, %v1582
        %v1584 = vrot.slane %v1579, %v1583
        %v1590 = vunpack.c.l.b16 %v1575
        %v1591 = vunpack.c.l.b16 %v1576
        %v1592 = vunpack.c.l.b16 %v1577
        %v1593 = vunpack.c.l.b16 %v1578
        %v1594 = vpack.c.b16 %v1591, %v1590
        %v1595 = vpack.c.b16 %v1593, %v1592
        %v1599 = vsel %vm844, %v1574, 0
        %1601 = vmatprep.subr.bf16.mxu0 0
        %1602 = vmatpush1.bf16.msra.mxu0 %v1594
        %1603 = vmatprep.subr.bf16.mxu0 0
        %1604 = vmatpush1.bf16.msra.mxu0 %v1595
        %1605 = vmatprep.subr.bf16.mxu0 0
        %1606 = vmatpush1.bf16.msra.mxu0 0
        %1607 = vmatprep.subr.bf16.mxu0 0
        %1608 = vmatpush1.bf16.msra.mxu0 0
        %1609 = vmatprep.subr.bf16.mxu0 0
        %1610 = vmatpush1.bf16.msra.mxu0 0
        %1611 = vmatprep.subr.bf16.mxu0 0
        %1612 = vmatpush1.bf16.msra.mxu0 0
        %1613 = vmatprep.subr.bf16.mxu0 0
        %1614 = vmatpush1.bf16.msra.mxu0 0
        %1615 = vmatprep.subr.bf16.mxu0 0
        %1616 = vmatpush1.bf16.msra.mxu0 0
        %1617 = vmatprep.subr.bf16.mxu0 0
        %1618 = vmatpush1.bf16.msra.mxu0 0
        %1619 = vmatprep.subr.bf16.mxu0 0
        %1620 = vmatpush1.bf16.msra.mxu0 0
        %1621 = vmatprep.subr.bf16.mxu0 0
        %1622 = vmatpush1.bf16.msra.mxu0 0
        %1623 = vmatprep.subr.bf16.mxu0 0
        %1624 = vmatpush1.bf16.msra.mxu0 0
        %1625 = vmatprep.subr.bf16.mxu0 0
        %1626 = vmatpush1.bf16.msra.mxu0 0
        %1627 = vmatprep.subr.bf16.mxu0 0
        %1628 = vmatpush1.bf16.msra.mxu0 0
        %1629 = vmatprep.subr.bf16.mxu0 0
        %1630 = vmatpush1.bf16.msra.mxu0 0
        %1631 = vmatprep.subr.bf16.mxu0 0
        %1632 = vmatpush1.bf16.msra.mxu0 0
        %1633 = vmatprep.mubr.bf16.mxu0 0
        %1634 = vmatmul.mubr.bf16.gmra.mrb[0].mxu0 %v1599
        %v1635 = vpop.f32.mrb[0].mxu0
        %v1636 = vadd.f32 %v1584, %v1635
        %v1637 = vpop.f32.mrb[0].mxu0
        %v1638 = vpop.f32.mrb[0].mxu0
        %v1639 = vpop.f32.mrb[0].mxu0
        %1640 = vdwg.mxu0
        %v1641 = vmax.f32 %v1636, 0.0
        %v1642 = vpack.c.bf16 %v1641, %v1641
        %v1643 = vld [vmem:[#allocation25] sm:$0xf]
        %v1644 = vld [vmem:[#allocation25 + $0x4] sm:$0xf]
        %v1645 = vld [vmem:[#allocation25 + $0x8] sm:$0xf]
        %v1646 = vld [vmem:[#allocation25 + $0xc] sm:$0xf]
        %v1647 = vld [vmem:[#allocation25 + $0x10] sm:$0xf]
        %v1648 = vld [vmem:[#allocation25 + $0x14] sm:$0xf]
        %v1649 = vld [vmem:[#allocation25 + $0x18] sm:$0xf]
        %v1650 = vld [vmem:[#allocation25 + $0x1c] sm:$0xf]
        %v1651 = vld [vmem:[#allocation26] sm:$0x1]
        %v1653 = vlaneseq
        %v1654 = vshrl.u32 %v1653, 7
        %v1655 = vsub.s32 0, %v1654
        %v1656 = vrot.slane %v1651, %v1655
        %v1666 = vunpack.c.l.b16 %v1643
        %v1667 = vunpack.c.l.b16 %v1644
        %v1668 = vunpack.c.l.b16 %v1645
        %v1669 = vunpack.c.l.b16 %v1646
        %v1670 = vunpack.c.l.b16 %v1647
        %v1671 = vunpack.c.l.b16 %v1648
        %v1672 = vunpack.c.l.b16 %v1649
        %v1673 = vunpack.c.l.b16 %v1650
        %v1674 = vpack.c.b16 %v1667, %v1666
        %v1675 = vpack.c.b16 %v1669, %v1668
        %v1676 = vpack.c.b16 %v1671, %v1670
        %v1677 = vpack.c.b16 %v1673, %v1672
        %vm1682 = vcmask 523264
        %v1684 = vsel %vm1682, %v1642, 0
        %1686 = vmatprep.subr.bf16.mxu0 0
        %1687 = vmatpush1.bf16.msra.mxu0 %v1674
        %1688 = vmatprep.subr.bf16.mxu0 0
        %1689 = vmatpush1.bf16.msra.mxu0 %v1675
        %1690 = vmatprep.subr.bf16.mxu0 0
        %1691 = vmatpush1.bf16.msra.mxu0 %v1676
        %1692 = vmatprep.subr.bf16.mxu0 0
        %1693 = vmatpush1.bf16.msra.mxu0 %v1677
        %1694 = vmatprep.subr.bf16.mxu0 0
        %1695 = vmatpush1.bf16.msra.mxu0 0
        %1696 = vmatprep.subr.bf16.mxu0 0
        %1697 = vmatpush1.bf16.msra.mxu0 0
        %1698 = vmatprep.subr.bf16.mxu0 0
        %1699 = vmatpush1.bf16.msra.mxu0 0
        %1700 = vmatprep.subr.bf16.mxu0 0
        %1701 = vmatpush1.bf16.msra.mxu0 0
        %1702 = vmatprep.subr.bf16.mxu0 0
        %1703 = vmatpush1.bf16.msra.mxu0 0
        %1704 = vmatprep.subr.bf16.mxu0 0
        %1705 = vmatpush1.bf16.msra.mxu0 0
        %1706 = vmatprep.subr.bf16.mxu0 0
        %1707 = vmatpush1.bf16.msra.mxu0 0
        %1708 = vmatprep.subr.bf16.mxu0 0
        %1709 = vmatpush1.bf16.msra.mxu0 0
        %1710 = vmatprep.subr.bf16.mxu0 0
        %1711 = vmatpush1.bf16.msra.mxu0 0
        %1712 = vmatprep.subr.bf16.mxu0 0
        %1713 = vmatpush1.bf16.msra.mxu0 0
        %1714 = vmatprep.subr.bf16.mxu0 0
        %1715 = vmatpush1.bf16.msra.mxu0 0
        %1716 = vmatprep.subr.bf16.mxu0 0
        %1717 = vmatpush1.bf16.msra.mxu0 0
        %1718 = vmatprep.mubr.bf16.mxu0 0
        %1719 = vmatmul.mubr.bf16.gmra.mrb[0].mxu0 %v1684
        %v1720 = vpop.f32.mrb[0].mxu0
        %v1721 = vadd.f32 %v1656, %v1720
        %v1722 = vpop.f32.mrb[0].mxu0
        %v1723 = vpop.f32.mrb[0].mxu0
        %v1724 = vpop.f32.mrb[0].mxu0
        %1725 = vdwg.mxu0
        %v1726 = vadd.f32 %v1573, %v1721
        %v1727 = vld [vmem:[#allocation28] sm:$0x1]
        %v1728 = vld [vmem:[#allocation29] sm:$0x1]
        %v1729 = vsel %vm844, %v1726, 0.0
        %1730 = vadd.xlane.f32.xlu0 %v1729
        %v1731 = vpop.xlane.xlu0 %1730
        %v1732 = vmul.f32 %v1731, %v1549
        %v1733 = vsub.f32 %v1726, %v1732
        %v1734 = vmul.f32 %v1733, %v1733
        %v1735 = vsel %vm844, %v1734, 0.0
        %1736 = vadd.xlane.f32.xlu0 %v1735
        %v1737 = vpop.xlane.xlu0 %1736
        %v1738 = vmul.f32 %v1737, %v1549
        %v1739 = vadd.f32 %v1738, 1e-05
        %v1740 = vrsqrt.pop %v1739
        %v1741 = vmul.f32 %v1733, %v1740
        %v1743 = vlaneseq
        %v1744 = vshrl.u32 %v1743, 7
        %v1745 = vsub.s32 0, %v1744
        %v1746 = vrot.slane %v1727, %v1745
        %v1748 = vmul.f32 %v1741, %v1746
        %v1750 = vlaneseq
        %v1751 = vshrl.u32 %v1750, 7
        %v1752 = vsub.s32 0, %v1751
        %v1753 = vrot.slane %v1728, %v1752
        %v1755 = vadd.f32 %v1748, %v1753
        %1756 = vst.msk [vmem:[%s815] sm:$0xff] %vm844, %v1755
        %s1757 = sand.u32 %s435, 1
        %s1758 = scalar_lea.sflag [#allocation4], %s1757
        %s1759 = sand.u32 %s435, 1
        %s1760 = smul.addr %s1759, 8
        %s1761 = scalar_lea.vmem [#allocation31], %s1760
        // Predicated region
        $region165: #{tpu_custom_call.1} parent=91 // pred_check
          %p1762 = pneg %p445
        $region166: #{tpu_custom_call.1} parent=91 // pred_check_branch
          %1764 = sbr.rel (%p1762) target = $region168
        $region167: #{tpu_custom_call.1} parent=91 // pred_region
          %s1766 = ssub.s32 128, 128
          %1767 = vsyncadd %s1758, %s1766
          %s1768 = smul.addr %s44, 128
          %s1769 = scalar_lea.hbm %s18, %s1768
          %s1771 = sshll.u32 %s1761, 4
          %s1772 = int_to_ptr.vmem [resolvable:$true] %s1771
          %1774 = dma.vmem_to_hbm [thread:$0]  %s1772, 128, %s1769, %s1758
        $region168: #{tpu_custom_call.1} parent=91 // pred_fallthru
          _
      $region92: #{tpu_custom_call.1} parent=5 // pred_fallthru
        _
      %p1775 = scmp.le.s32.totalorder 2, %s39
      // Predicated region
      $region169: #{tpu_custom_call.1} parent=5 // pred_check
        %p1776 = pneg %p1775
      $region170: #{tpu_custom_call.1} parent=5 // pred_check_branch
        %1778 = sbr.rel (%p1776) target = $region172
      $region171: #{tpu_custom_call.1} parent=5 // pred_region
        %s1779 = ssub.s32 %s39, 2
        // Predicated region
        $region173: #{tpu_custom_call.1} parent=171 // pred_check
          %p1780 = pneg %p451
        $region174: #{tpu_custom_call.1} parent=171 // pred_check_branch
          %1782 = sbr.rel (%p1780) target = $region176
        $region175: #{tpu_custom_call.1} parent=171 // pred_region
          %s1783 = sand.u32 %s436, 1
          %s1784 = scalar_lea.sflag [#allocation4], %s1783
          %s1785 = sand.u32 %s436, 1
          %s1786 = smul.addr %s1785, 8
          %s1787 = scalar_lea.vmem [#allocation31], %s1786
          %1788 = dma.done %s1784, 128
        $region176: #{tpu_custom_call.1} parent=171 // pred_fallthru
          _
      $region172: #{tpu_custom_call.1} parent=5 // pred_fallthru
        _
    $region6: #{tpu_custom_call.1} parent=1 // loop_footer
      %s43 = sadd.s32 1, %s39
    $region7: #{tpu_custom_call.1} parent=1 // loop_footer_branch
      %38 = sbr.rel target = $region3
    $region8: #{tpu_custom_call.1} parent=1 // loop_exit
      _
    %1789 = vsyncpa [#allocation3], 1
    %s1790 = scalar_lea.sflag [#allocation3], 1
    %1791 = vsyncpa %s1790, 1
    %1792 = vsyncpa [#allocation6], 1
    %1793 = vsyncpa [#allocation9], 1
    %1794 = vsyncpa [#allocation12], 1
    %1795 = vsyncpa [#allocation15], 1
    %1796 = vsyncpa [#allocation18], 1
    %1797 = vsyncpa [#allocation21], 1
    %1798 = vsyncpa [#allocation24], 1
    %1799 = vsyncpa [#allocation27], 1
    %1800 = vsyncpa [#allocation30], 1
    %1801 = vsyncpa [#allocation4], 1
    %s1802 = scalar_lea.sflag [#allocation4], 1
    %1803 = vsyncpa %s1802, 1

</llo_original>
